<compile_context>
chip_gen: v7x
topology: tpu7x:2x2x1
jax: 0.10.0
libtpu: 0.0.40
codegen_flags: <defaults>
</compile_context>

<pallas_src>
import math
import jax
import jax.numpy as jnp
from jax.experimental import pallas as pl
from jax.experimental.pallas import tpu as pltpu

# ----------------------------- config ---------------------------------------
HIDDEN = 32
NUM_HEADS = 4
HEAD_DIM = HIDDEN // NUM_HEADS
INTERMEDIATE = 64
N_ATT_EXPERTS = 2          # LoRA attention experts in ExpertAttention
N_FFN_EXPERTS = 2          # SwitchFeedForward experts
LORA_R = 4
LORA_ALPHA = 8
LN_EPS = 1e-12
BATCH = 2
SEQ = 8


# --------------------------- fused Pallas kernel -----------------------------
def _momo_fused_kernel(x_ref, mask_ref,
                       wqkv_ref, bqkv_ref, wo_ref, bo_ref,
                       wr_ref, br_ref, w1_ref, b1_ref, w2_ref, b2_ref,
                       gamma_ref, beta_ref, out_ref):
    """One batch element per grid step: both attention experts + switch FFN + LN."""
    x = x_ref[0]                             # (S, H)
    m = mask_ref[0]                          # (1, S) additive mask (broadcast over queries)
    S, H = x.shape
    scale = 1.0 / math.sqrt(HEAD_DIM)

    # ---- fused QKV projection for BOTH attention experts: (S, 6H) ----
    qkv = jnp.dot(x, wqkv_ref[...], preferred_element_type=jnp.float32) + bqkv_ref[...]

    # ---- multi-head attention, accumulate through the output projection ----
    att = jnp.zeros((S, H), jnp.float32)
    for e in range(2):                       # e=0: selected LoRA expert, e=1: common expert
        off = e * 3 * H
        q = qkv[:, off:off + H]
        k = qkv[:, off + H:off + 2 * H]
        v = qkv[:, off + 2 * H:off + 3 * H]
        wo_e = wo_ref[e]                     # (H, H)
        for h in range(NUM_HEADS):
            sl = slice(h * HEAD_DIM, (h + 1) * HEAD_DIM)
            qh, kh, vh = q[:, sl], k[:, sl], v[:, sl]
            s = jnp.dot(qh, kh.T, preferred_element_type=jnp.float32) * scale + m
            s = s - jnp.max(s, axis=-1, keepdims=True)
            p = jnp.exp(s)
            p = p * pl.reciprocal(jnp.sum(p, axis=-1, keepdims=True), approx=True)
            ctx = jnp.dot(p, vh, preferred_element_type=jnp.float32)          # (S, HD)
            # accumulate straight through this head's rows of W_o (no concat)
            att = att + jnp.dot(ctx, wo_e[sl, :], preferred_element_type=jnp.float32)
    att = att + bo_ref[...]                  # bo_ref = b_o(selected) + b_o(common)

    # ---- switch-FFN router (top-1) ----
    logits = jnp.dot(att, wr_ref[...], preferred_element_type=jnp.float32) + br_ref[...]
    logits = logits - jnp.max(logits, axis=-1, keepdims=True)
    ex = jnp.exp(logits)
    probs = ex * pl.reciprocal(jnp.sum(ex, axis=-1, keepdims=True), approx=True)  # (S, E)
    maxp = jnp.max(probs, axis=-1, keepdims=True)                                 # (S, 1)
    ids = jax.lax.broadcasted_iota(jnp.int32, probs.shape, 1)
    # first-argmax built from compare/where/min (matches torch.max first-index ties)
    idx = jnp.min(jnp.where(probs >= maxp, ids, N_FFN_EXPERTS),
                  axis=-1, keepdims=True)                                          # (S, 1)

    # ---- both expert FFNs with merged matmuls, masked top-1 select ----
    h1 = jnp.dot(att, w1_ref[...], preferred_element_type=jnp.float32) + b1_ref[...]   # (S, E*I)
    # TODO(synk): PyTorch nn.GELU() defaults to the exact erf form; tanh approximation used here.
    h1 = jax.nn.gelu(h1, approximate=True)
    # w2_ref is block-diagonal (E*I, E*H) so one matmul produces [o_0 | o_1].
    o_cat = jnp.dot(h1, w2_ref[...], preferred_element_type=jnp.float32) + b2_ref[...]  # (S, E*H)
    ffn = o_cat[:, :H]
    for e in range(1, N_FFN_EXPERTS):
        ffn = jnp.where(idx == e, o_cat[:, e * H:(e + 1) * H], ffn)
    ffn = ffn * maxp                         # scale selected expert output by routing prob

    # TODO(synk): nn.Dropout is identity in eval mode; training-mode dropout not implemented.
    y = att + ffn

    # ---- LayerNorm ----
    mu = jnp.mean(y, axis=-1, keepdims=True)
    var = jnp.mean((y - mu) * (y - mu), axis=-1, keepdims=True)
    norm = (y - mu) * jax.lax.rsqrt(var + LN_EPS)
    out_ref[0] = norm * gamma_ref[...] + beta_ref[...]


# ------------------------------ wrapper --------------------------------------
def _full_spec(shape):
    n = len(shape)
    return pl.BlockSpec(shape, lambda b, _n=n: (0,) * _n)


def momo_share_layer(prepped, hidden_states, attention_mask):
    """hidden_states: (B, S, H) f32; attention_mask: (B, S) of 1/0; prepped from prepare_weights()."""
    B, S, H = hidden_states.shape
    add_mask = ((1.0 - attention_mask.astype(jnp.float32)) * -1e9).reshape(B, 1, S)

    weights = prepped                        # 12 pre-packed weight/bias arrays
    batch_spec = pl.BlockSpec((1, S, H), lambda b: (b, 0, 0))
    mask_spec = pl.BlockSpec((1, 1, S), lambda b: (b, 0, 0))

    # advisory cost estimate (flops / transcendentals / bytes)
    NH, HD, E, I = NUM_HEADS, HEAD_DIM, N_FFN_EXPERTS, INTERMEDIATE
    flops = B * (2 * S * H * 6 * H
                 + 2 * NH * (4 * S * S * HD + 2 * S * HD * H)
                 + 2 * S * H * E
                 + 2 * S * H * E * I
                 + 2 * S * (E * I) * (E * H))
    trans = B * (2 * NH * S * S + S * E + S * E * I + 2 * NH * S + 2 * S)
    bytes_acc = 4 * (int(hidden_states.size) + int(add_mask.size)
                     + sum(int(w.size) for w in weights) + B * S * H)

    return pl.pallas_call(
        _momo_fused_kernel,
        out_shape=jax.ShapeDtypeStruct((B, S, H), jnp.float32),
        grid=(B,),
        in_specs=[batch_spec, mask_spec] + [_full_spec(w.shape) for w in weights],
        out_specs=batch_spec,
        compiler_params=pltpu.CompilerParams(dimension_semantics=("parallel",)),
        cost_estimate=pl.CostEstimate(flops=int(flops), transcendentals=int(trans),
                                      bytes_accessed=int(bytes_acc)),
    )(hidden_states.astype(jnp.float32), add_mask, *weights)


# ------------------------- one-time weight preparation ------------------------
def prepare_weights(params, expert_index):
    """Hoisted out of the per-call path: LoRA merge + weight packing for the fused kernel."""
    p = params
    e = int(expert_index)
    scaling = LORA_ALPHA / LORA_R

    # effective weights of selected LoRA expert:  W + (alpha/r) * A @ B
    wq_e = p["exp_wq"][e] + scaling * (p["exp_lora_qa"][e] @ p["exp_lora_qb"][e])
    wv_e = p["exp_wv"][e] + scaling * (p["exp_lora_va"][e] @ p["exp_lora_vb"][e])
    wk_e, wo_e = p["exp_wk"][e], p["exp_wo"][e]

    # one wide QKV weight covering [selected expert | common expert]
    w_qkv = jnp.concatenate([wq_e, wk_e, wv_e,
                             p["com_wq"], p["com_wk"], p["com_wv"]], axis=1)        # (H, 6H)
    b_qkv = jnp.concatenate([p["exp_bq"][e], p["exp_bk"][e], p["exp_bv"][e],
                             p["com_bq"], p["com_bk"], p["com_bv"]]).reshape(1, 6 * HIDDEN)
    wo = jnp.stack([wo_e, p["com_wo"]])                                             # (2, H, H)
    bo_sum = (p["exp_bo"][e] + p["com_bo"]).reshape(1, HIDDEN)                      # summed output biases

    # SwitchFeedForward: router + merged expert FFN weights
    w_r = p["router_w"]                                                             # (H, E)
    b_r = p["router_b"].reshape(1, N_FFN_EXPERTS)
    w1_cat = jnp.concatenate([p["ffn_w1"][i] for i in range(N_FFN_EXPERTS)], axis=1)        # (H, E*I)
    b1_cat = jnp.concatenate([p["ffn_b1"][i] for i in range(N_FFN_EXPERTS)]
                             ).reshape(1, N_FFN_EXPERTS * INTERMEDIATE)
    w2_bd = jnp.zeros((N_FFN_EXPERTS * INTERMEDIATE, N_FFN_EXPERTS * HIDDEN), jnp.float32)
    for i in range(N_FFN_EXPERTS):                                                  # block-diagonal W2
        w2_bd = w2_bd.at[i * INTERMEDIATE:(i + 1) * INTERMEDIATE,
                         i * HIDDEN:(i + 1) * HIDDEN].set(p["ffn_w2"][i])
    b2_cat = jnp.concatenate([p["ffn_b2"][i] for i in range(N_FFN_EXPERTS)]
                             ).reshape(1, N_FFN_EXPERTS * HIDDEN)

    gamma = p["ln_gamma"].reshape(1, HIDDEN)
    beta = p["ln_beta"].reshape(1, HIDDEN)
    return (w_qkv, b_qkv, wo, bo_sum, w_r, b_r,
            w1_cat, b1_cat, w2_bd, b2_cat, gamma, beta)


# ------------------------------ parameters -----------------------------------
def init_params(key):
    ks = jax.random.split(key, 24)
    d = lambda k, shp: (0.02 * jax.random.normal(k, shp)).astype(jnp.float32)
    p = {}
    # LoRA attention experts (each has its own base QKVO + LoRA adapters on Q and V)
    p["exp_wq"] = d(ks[0], (N_ATT_EXPERTS, HIDDEN, HIDDEN))
    p["exp_wk"] = d(ks[1], (N_ATT_EXPERTS, HIDDEN, HIDDEN))
    p["exp_wv"] = d(ks[2], (N_ATT_EXPERTS, HIDDEN, HIDDEN))
    p["exp_wo"] = d(ks[3], (N_ATT_EXPERTS, HIDDEN, HIDDEN))
    for n in ("exp_bq", "exp_bk", "exp_bv", "exp_bo"):
        p[n] = jnp.zeros((N_ATT_EXPERTS, HIDDEN), jnp.float32)
    p["exp_lora_qa"] = d(ks[4], (N_ATT_EXPERTS, HIDDEN, LORA_R))
    p["exp_lora_qb"] = d(ks[5], (N_ATT_EXPERTS, LORA_R, HIDDEN))
    p["exp_lora_va"] = d(ks[6], (N_ATT_EXPERTS, HIDDEN, LORA_R))
    p["exp_lora_vb"] = d(ks[7], (N_ATT_EXPERTS, LORA_R, HIDDEN))
    # common (shared) attention expert
    p["com_wq"] = d(ks[8], (HIDDEN, HIDDEN))
    p["com_wk"] = d(ks[9], (HIDDEN, HIDDEN))
    p["com_wv"] = d(ks[10], (HIDDEN, HIDDEN))
    p["com_wo"] = d(ks[11], (HIDDEN, HIDDEN))
    for n in ("com_bq", "com_bk", "com_bv", "com_bo"):
        p[n] = jnp.zeros((HIDDEN,), jnp.float32)
    # SwitchFeedForward
    p["router_w"] = d(ks[12], (HIDDEN, N_FFN_EXPERTS))
    p["router_b"] = jnp.zeros((N_FFN_EXPERTS,), jnp.float32)
    p["ffn_w1"] = d(ks[13], (N_FFN_EXPERTS, HIDDEN, INTERMEDIATE))
    p["ffn_b1"] = jnp.zeros((N_FFN_EXPERTS, INTERMEDIATE), jnp.float32)
    p["ffn_w2"] = d(ks[14], (N_FFN_EXPERTS, INTERMEDIATE, HIDDEN))
    p["ffn_b2"] = jnp.zeros((N_FFN_EXPERTS, HIDDEN), jnp.float32)
    # final LayerNorm
    p["ln_gamma"] = jnp.ones((HIDDEN,), jnp.float32)
    p["ln_beta"] = jnp.zeros((HIDDEN,), jnp.float32)
    # centers exist in the PyTorch module but are unused in forward() (routing()
    # is never called there); kept for parity.
    p["centers"] = d(ks[15], (N_ATT_EXPERTS, HIDDEN))
    return p


# ------------------------------ main -----------------------------------------
if __name__ == "__main__":
    key = jax.random.PRNGKey(0)
    pkey, xkey = jax.random.split(key)
    params = init_params(pkey)

    hidden_states = jax.random.normal(xkey, (BATCH, SEQ, HIDDEN), jnp.float32)
    attention_mask = jnp.ones((BATCH, SEQ), jnp.float32).at[1, SEQ - 2:].set(0.0)
    expert_index = 1

    # LoRA merge + weight packing done ONCE, outside the per-forward critical path.
    prepped = prepare_weights(params, expert_index)
    forward = jax.jit(momo_share_layer)

    out = forward(prepped, hidden_states, attention_mask)
    out = jax.block_until_ready(out)
    assert out.shape == (BATCH, SEQ, HIDDEN) and out.dtype == jnp.float32
    assert bool(jnp.all(jnp.isfinite(out)))
    print("KERNEL_OK")
</pallas_src>

<mosaic_0001>
module attributes {stable_mosaic.version = 11 : i64} {
  func.func @_momo_fused_kernel(%arg0: i32, %arg1: memref<1x8x32xf32, #tpu.memory_space<vmem>>, %arg2: memref<1x1x8xf32, #tpu.memory_space<vmem>>, %arg3: memref<32x192xf32, #tpu.memory_space<vmem>>, %arg4: memref<1x192xf32, #tpu.memory_space<vmem>>, %arg5: memref<2x32x32xf32, #tpu.memory_space<vmem>>, %arg6: memref<1x32xf32, #tpu.memory_space<vmem>>, %arg7: memref<32x2xf32, #tpu.memory_space<vmem>>, %arg8: memref<1x2xf32, #tpu.memory_space<vmem>>, %arg9: memref<32x128xf32, #tpu.memory_space<vmem>>, %arg10: memref<1x128xf32, #tpu.memory_space<vmem>>, %arg11: memref<128x64xf32, #tpu.memory_space<vmem>>, %arg12: memref<1x64xf32, #tpu.memory_space<vmem>>, %arg13: memref<1x32xf32, #tpu.memory_space<vmem>>, %arg14: memref<1x32xf32, #tpu.memory_space<vmem>>, %arg15: memref<1x8x32xf32, #tpu.memory_space<vmem>>) attributes {dimension_semantics = [#tpu.dimension_semantics<parallel>], iteration_bounds = array<i64: 2>, scalar_prefetch = 0 : i64, scratch_operands = 0 : i64, tpu.core_type = #tpu.core_type<tc>, window_params = [{transform_indices = @transform_0, window_bounds = array<i64: 1, 8, 32>}, {transform_indices = @transform_1, window_bounds = array<i64: 1, 1, 8>}, {pipeline_mode = #tpu.pipeline_mode<synchronous>, transform_indices = @transform_2, window_bounds = array<i64: 32, 192>}, {pipeline_mode = #tpu.pipeline_mode<synchronous>, transform_indices = @transform_3, window_bounds = array<i64: 1, 192>}, {pipeline_mode = #tpu.pipeline_mode<synchronous>, transform_indices = @transform_4, window_bounds = array<i64: 2, 32, 32>}, {pipeline_mode = #tpu.pipeline_mode<synchronous>, transform_indices = @transform_5, window_bounds = array<i64: 1, 32>}, {pipeline_mode = #tpu.pipeline_mode<synchronous>, transform_indices = @transform_6, window_bounds = array<i64: 32, 2>}, {pipeline_mode = #tpu.pipeline_mode<synchronous>, transform_indices = @transform_7, window_bounds = array<i64: 1, 2>}, {pipeline_mode = #tpu.pipeline_mode<synchronous>, transform_indices = @transform_8, window_bounds = array<i64: 32, 128>}, {pipeline_mode = #tpu.pipeline_mode<synchronous>, transform_indices = @transform_9, window_bounds = array<i64: 1, 128>}, {pipeline_mode = #tpu.pipeline_mode<synchronous>, transform_indices = @transform_10, window_bounds = array<i64: 128, 64>}, {pipeline_mode = #tpu.pipeline_mode<synchronous>, transform_indices = @transform_11, window_bounds = array<i64: 1, 64>}, {pipeline_mode = #tpu.pipeline_mode<synchronous>, transform_indices = @transform_12, window_bounds = array<i64: 1, 32>}, {pipeline_mode = #tpu.pipeline_mode<synchronous>, transform_indices = @transform_13, window_bounds = array<i64: 1, 32>}, {transform_indices = @transform_14, window_bounds = array<i64: 1, 8, 32>}]} {
    %c0 = arith.constant 0 : index
    %c0_0 = arith.constant 0 : index
    %c0_1 = arith.constant 0 : index
    %0 = vector.load %arg1[%c0, %c0_0, %c0_1] : memref<1x8x32xf32, #tpu.memory_space<vmem>>, vector<1x8x32xf32>
    %1 = vector.shape_cast %0 : vector<1x8x32xf32> to vector<8x32xf32>
    %c0_2 = arith.constant 0 : index
    %c0_3 = arith.constant 0 : index
    %c0_4 = arith.constant 0 : index
    %2 = vector.load %arg2[%c0_2, %c0_3, %c0_4] : memref<1x1x8xf32, #tpu.memory_space<vmem>>, vector<1x1x8xf32>
    %3 = vector.shape_cast %2 : vector<1x1x8xf32> to vector<1x8xf32>
    %c0_5 = arith.constant 0 : index
    %c0_6 = arith.constant 0 : index
    %4 = vector.load %arg3[%c0_5, %c0_6] : memref<32x192xf32, #tpu.memory_space<vmem>>, vector<32x192xf32>
    %cst = arith.constant dense<0.000000e+00> : vector<8x192xf32>
    %5 = tpu.matmul %1, %4, %cst {dimension_numbers = #tpu.dot_dimension_numbers<[1], [0], [0], [1], [0, 0, 1, 1], [], []>} : vector<8x32xf32>, vector<32x192xf32>, vector<8x192xf32> -> vector<8x192xf32>
    %c0_7 = arith.constant 0 : index
    %c0_8 = arith.constant 0 : index
    %6 = vector.load %arg4[%c0_7, %c0_8] : memref<1x192xf32, #tpu.memory_space<vmem>>, vector<1x192xf32>
    %7 = vector.broadcast %6 : vector<1x192xf32> to vector<8x192xf32>
    %8 = arith.addf %5, %7 : vector<8x192xf32>
    %cst_9 = arith.constant 0.000000e+00 : f32
    %9 = vector.broadcast %cst_9 : f32 to vector<8x32xf32>
    %10 = vector.extract_strided_slice %8 {offsets = [0, 0], sizes = [8, 32], strides = [1, 1]} : vector<8x192xf32> to vector<8x32xf32>
    %11 = vector.extract_strided_slice %8 {offsets = [0, 32], sizes = [8, 32], strides = [1, 1]} : vector<8x192xf32> to vector<8x32xf32>
    %12 = vector.extract_strided_slice %8 {offsets = [0, 64], sizes = [8, 32], strides = [1, 1]} : vector<8x192xf32> to vector<8x32xf32>
    %c0_10 = arith.constant 0 : index
    %c0_11 = arith.constant 0 : index
    %c0_12 = arith.constant 0 : index
    %13 = vector.load %arg5[%c0_10, %c0_11, %c0_12] : memref<2x32x32xf32, #tpu.memory_space<vmem>>, vector<1x32x32xf32>
    %14 = vector.shape_cast %13 : vector<1x32x32xf32> to vector<32x32xf32>
    %15 = vector.extract_strided_slice %10 {offsets = [0, 0], sizes = [8, 8], strides = [1, 1]} : vector<8x32xf32> to vector<8x8xf32>
    %16 = vector.extract_strided_slice %11 {offsets = [0, 0], sizes = [8, 8], strides = [1, 1]} : vector<8x32xf32> to vector<8x8xf32>
    %17 = vector.extract_strided_slice %12 {offsets = [0, 0], sizes = [8, 8], strides = [1, 1]} : vector<8x32xf32> to vector<8x8xf32>
    %18 = tpu.transpose %16, [1, 0] : vector<8x8xf32> -> vector<8x8xf32>
    %cst_13 = arith.constant dense<0.000000e+00> : vector<8x8xf32>
    %19 = tpu.matmul %15, %18, %cst_13 {dimension_numbers = #tpu.dot_dimension_numbers<[1], [0], [0], [1], [0, 0, 1, 1], [], []>} : vector<8x8xf32>, vector<8x8xf32>, vector<8x8xf32> -> vector<8x8xf32>
    %cst_14 = arith.constant 0.353553385 : f32
    %20 = vector.broadcast %cst_14 : f32 to vector<8x8xf32>
    %21 = arith.mulf %19, %20 : vector<8x8xf32>
    %22 = vector.broadcast %3 : vector<1x8xf32> to vector<8x8xf32>
    %23 = arith.addf %21, %22 : vector<8x8xf32>
    %cst_15 = arith.constant dense<0xFF800000> : vector<8xf32>
    %24 = vector.multi_reduction <maximumf>, %23, %cst_15 [1] : vector<8x8xf32> to vector<8xf32>
    %25 = vector.shape_cast %24 : vector<8xf32> to vector<8x1xf32>
    %26 = vector.broadcast %25 : vector<8x1xf32> to vector<8x8xf32>
    %27 = arith.subf %23, %26 : vector<8x8xf32>
    %28 = math.exp %27 : vector<8x8xf32>
    %cst_16 = arith.constant dense<0.000000e+00> : vector<8xf32>
    %29 = vector.multi_reduction <add>, %28, %cst_16 [1] : vector<8x8xf32> to vector<8xf32>
    %30 = vector.shape_cast %29 : vector<8xf32> to vector<8x1xf32>
    %31 = tpu.reciprocal %30 {approx = true} : vector<8x1xf32> -> vector<8x1xf32>
    %32 = vector.broadcast %31 : vector<8x1xf32> to vector<8x8xf32>
    %33 = arith.mulf %28, %32 : vector<8x8xf32>
    %cst_17 = arith.constant dense<0.000000e+00> : vector<8x8xf32>
    %34 = tpu.matmul %33, %17, %cst_17 {dimension_numbers = #tpu.dot_dimension_numbers<[1], [0], [0], [1], [0, 0, 1, 1], [], []>} : vector<8x8xf32>, vector<8x8xf32>, vector<8x8xf32> -> vector<8x8xf32>
    %35 = vector.extract_strided_slice %14 {offsets = [0, 0], sizes = [8, 32], strides = [1, 1]} : vector<32x32xf32> to vector<8x32xf32>
    %cst_18 = arith.constant dense<0.000000e+00> : vector<8x32xf32>
    %36 = tpu.matmul %34, %35, %cst_18 {dimension_numbers = #tpu.dot_dimension_numbers<[1], [0], [0], [1], [0, 0, 1, 1], [], []>} : vector<8x8xf32>, vector<8x32xf32>, vector<8x32xf32> -> vector<8x32xf32>
    %37 = arith.addf %9, %36 : vector<8x32xf32>
    %38 = vector.extract_strided_slice %10 {offsets = [0, 8], sizes = [8, 8], strides = [1, 1]} : vector<8x32xf32> to vector<8x8xf32>
    %39 = vector.extract_strided_slice %11 {offsets = [0, 8], sizes = [8, 8], strides = [1, 1]} : vector<8x32xf32> to vector<8x8xf32>
    %40 = vector.extract_strided_slice %12 {offsets = [0, 8], sizes = [8, 8], strides = [1, 1]} : vector<8x32xf32> to vector<8x8xf32>
    %41 = tpu.transpose %39, [1, 0] : vector<8x8xf32> -> vector<8x8xf32>
    %cst_19 = arith.constant dense<0.000000e+00> : vector<8x8xf32>
    %42 = tpu.matmul %38, %41, %cst_19 {dimension_numbers = #tpu.dot_dimension_numbers<[1], [0], [0], [1], [0, 0, 1, 1], [], []>} : vector<8x8xf32>, vector<8x8xf32>, vector<8x8xf32> -> vector<8x8xf32>
    %cst_20 = arith.constant 0.353553385 : f32
    %43 = vector.broadcast %cst_20 : f32 to vector<8x8xf32>
    %44 = arith.mulf %42, %43 : vector<8x8xf32>
    %45 = vector.broadcast %3 : vector<1x8xf32> to vector<8x8xf32>
    %46 = arith.addf %44, %45 : vector<8x8xf32>
    %cst_21 = arith.constant dense<0xFF800000> : vector<8xf32>
    %47 = vector.multi_reduction <maximumf>, %46, %cst_21 [1] : vector<8x8xf32> to vector<8xf32>
    %48 = vector.shape_cast %47 : vector<8xf32> to vector<8x1xf32>
    %49 = vector.broadcast %48 : vector<8x1xf32> to vector<8x8xf32>
    %50 = arith.subf %46, %49 : vector<8x8xf32>
    %51 = math.exp %50 : vector<8x8xf32>
    %cst_22 = arith.constant dense<0.000000e+00> : vector<8xf32>
    %52 = vector.multi_reduction <add>, %51, %cst_22 [1] : vector<8x8xf32> to vector<8xf32>
    %53 = vector.shape_cast %52 : vector<8xf32> to vector<8x1xf32>
    %54 = tpu.reciprocal %53 {approx = true} : vector<8x1xf32> -> vector<8x1xf32>
    %55 = vector.broadcast %54 : vector<8x1xf32> to vector<8x8xf32>
    %56 = arith.mulf %51, %55 : vector<8x8xf32>
    %cst_23 = arith.constant dense<0.000000e+00> : vector<8x8xf32>
    %57 = tpu.matmul %56, %40, %cst_23 {dimension_numbers = #tpu.dot_dimension_numbers<[1], [0], [0], [1], [0, 0, 1, 1], [], []>} : vector<8x8xf32>, vector<8x8xf32>, vector<8x8xf32> -> vector<8x8xf32>
    %58 = vector.extract_strided_slice %14 {offsets = [8, 0], sizes = [8, 32], strides = [1, 1]} : vector<32x32xf32> to vector<8x32xf32>
    %cst_24 = arith.constant dense<0.000000e+00> : vector<8x32xf32>
    %59 = tpu.matmul %57, %58, %cst_24 {dimension_numbers = #tpu.dot_dimension_numbers<[1], [0], [0], [1], [0, 0, 1, 1], [], []>} : vector<8x8xf32>, vector<8x32xf32>, vector<8x32xf32> -> vector<8x32xf32>
    %60 = arith.addf %37, %59 : vector<8x32xf32>
    %61 = vector.extract_strided_slice %10 {offsets = [0, 16], sizes = [8, 8], strides = [1, 1]} : vector<8x32xf32> to vector<8x8xf32>
    %62 = vector.extract_strided_slice %11 {offsets = [0, 16], sizes = [8, 8], strides = [1, 1]} : vector<8x32xf32> to vector<8x8xf32>
    %63 = vector.extract_strided_slice %12 {offsets = [0, 16], sizes = [8, 8], strides = [1, 1]} : vector<8x32xf32> to vector<8x8xf32>
    %64 = tpu.transpose %62, [1, 0] : vector<8x8xf32> -> vector<8x8xf32>
    %cst_25 = arith.constant dense<0.000000e+00> : vector<8x8xf32>
    %65 = tpu.matmul %61, %64, %cst_25 {dimension_numbers = #tpu.dot_dimension_numbers<[1], [0], [0], [1], [0, 0, 1, 1], [], []>} : vector<8x8xf32>, vector<8x8xf32>, vector<8x8xf32> -> vector<8x8xf32>
    %cst_26 = arith.constant 0.353553385 : f32
    %66 = vector.broadcast %cst_26 : f32 to vector<8x8xf32>
    %67 = arith.mulf %65, %66 : vector<8x8xf32>
    %68 = vector.broadcast %3 : vector<1x8xf32> to vector<8x8xf32>
    %69 = arith.addf %67, %68 : vector<8x8xf32>
    %cst_27 = arith.constant dense<0xFF800000> : vector<8xf32>
    %70 = vector.multi_reduction <maximumf>, %69, %cst_27 [1] : vector<8x8xf32> to vector<8xf32>
    %71 = vector.shape_cast %70 : vector<8xf32> to vector<8x1xf32>
    %72 = vector.broadcast %71 : vector<8x1xf32> to vector<8x8xf32>
    %73 = arith.subf %69, %72 : vector<8x8xf32>
    %74 = math.exp %73 : vector<8x8xf32>
    %cst_28 = arith.constant dense<0.000000e+00> : vector<8xf32>
    %75 = vector.multi_reduction <add>, %74, %cst_28 [1] : vector<8x8xf32> to vector<8xf32>
    %76 = vector.shape_cast %75 : vector<8xf32> to vector<8x1xf32>
    %77 = tpu.reciprocal %76 {approx = true} : vector<8x1xf32> -> vector<8x1xf32>
    %78 = vector.broadcast %77 : vector<8x1xf32> to vector<8x8xf32>
    %79 = arith.mulf %74, %78 : vector<8x8xf32>
    %cst_29 = arith.constant dense<0.000000e+00> : vector<8x8xf32>
    %80 = tpu.matmul %79, %63, %cst_29 {dimension_numbers = #tpu.dot_dimension_numbers<[1], [0], [0], [1], [0, 0, 1, 1], [], []>} : vector<8x8xf32>, vector<8x8xf32>, vector<8x8xf32> -> vector<8x8xf32>
    %81 = vector.extract_strided_slice %14 {offsets = [16, 0], sizes = [8, 32], strides = [1, 1]} : vector<32x32xf32> to vector<8x32xf32>
    %cst_30 = arith.constant dense<0.000000e+00> : vector<8x32xf32>
    %82 = tpu.matmul %80, %81, %cst_30 {dimension_numbers = #tpu.dot_dimension_numbers<[1], [0], [0], [1], [0, 0, 1, 1], [], []>} : vector<8x8xf32>, vector<8x32xf32>, vector<8x32xf32> -> vector<8x32xf32>
    %83 = arith.addf %60, %82 : vector<8x32xf32>
    %84 = vector.extract_strided_slice %10 {offsets = [0, 24], sizes = [8, 8], strides = [1, 1]} : vector<8x32xf32> to vector<8x8xf32>
    %85 = vector.extract_strided_slice %11 {offsets = [0, 24], sizes = [8, 8], strides = [1, 1]} : vector<8x32xf32> to vector<8x8xf32>
    %86 = vector.extract_strided_slice %12 {offsets = [0, 24], sizes = [8, 8], strides = [1, 1]} : vector<8x32xf32> to vector<8x8xf32>
    %87 = tpu.transpose %85, [1, 0] : vector<8x8xf32> -> vector<8x8xf32>
    %cst_31 = arith.constant dense<0.000000e+00> : vector<8x8xf32>
    %88 = tpu.matmul %84, %87, %cst_31 {dimension_numbers = #tpu.dot_dimension_numbers<[1], [0], [0], [1], [0, 0, 1, 1], [], []>} : vector<8x8xf32>, vector<8x8xf32>, vector<8x8xf32> -> vector<8x8xf32>
    %cst_32 = arith.constant 0.353553385 : f32
    %89 = vector.broadcast %cst_32 : f32 to vector<8x8xf32>
    %90 = arith.mulf %88, %89 : vector<8x8xf32>
    %91 = vector.broadcast %3 : vector<1x8xf32> to vector<8x8xf32>
    %92 = arith.addf %90, %91 : vector<8x8xf32>
    %cst_33 = arith.constant dense<0xFF800000> : vector<8xf32>
    %93 = vector.multi_reduction <maximumf>, %92, %cst_33 [1] : vector<8x8xf32> to vector<8xf32>
    %94 = vector.shape_cast %93 : vector<8xf32> to vector<8x1xf32>
    %95 = vector.broadcast %94 : vector<8x1xf32> to vector<8x8xf32>
    %96 = arith.subf %92, %95 : vector<8x8xf32>
    %97 = math.exp %96 : vector<8x8xf32>
    %cst_34 = arith.constant dense<0.000000e+00> : vector<8xf32>
    %98 = vector.multi_reduction <add>, %97, %cst_34 [1] : vector<8x8xf32> to vector<8xf32>
    %99 = vector.shape_cast %98 : vector<8xf32> to vector<8x1xf32>
    %100 = tpu.reciprocal %99 {approx = true} : vector<8x1xf32> -> vector<8x1xf32>
    %101 = vector.broadcast %100 : vector<8x1xf32> to vector<8x8xf32>
    %102 = arith.mulf %97, %101 : vector<8x8xf32>
    %cst_35 = arith.constant dense<0.000000e+00> : vector<8x8xf32>
    %103 = tpu.matmul %102, %86, %cst_35 {dimension_numbers = #tpu.dot_dimension_numbers<[1], [0], [0], [1], [0, 0, 1, 1], [], []>} : vector<8x8xf32>, vector<8x8xf32>, vector<8x8xf32> -> vector<8x8xf32>
    %104 = vector.extract_strided_slice %14 {offsets = [24, 0], sizes = [8, 32], strides = [1, 1]} : vector<32x32xf32> to vector<8x32xf32>
    %cst_36 = arith.constant dense<0.000000e+00> : vector<8x32xf32>
    %105 = tpu.matmul %103, %104, %cst_36 {dimension_numbers = #tpu.dot_dimension_numbers<[1], [0], [0], [1], [0, 0, 1, 1], [], []>} : vector<8x8xf32>, vector<8x32xf32>, vector<8x32xf32> -> vector<8x32xf32>
    %106 = arith.addf %83, %105 : vector<8x32xf32>
    %107 = vector.extract_strided_slice %8 {offsets = [0, 96], sizes = [8, 32], strides = [1, 1]} : vector<8x192xf32> to vector<8x32xf32>
    %108 = vector.extract_strided_slice %8 {offsets = [0, 128], sizes = [8, 32], strides = [1, 1]} : vector<8x192xf32> to vector<8x32xf32>
    %109 = vector.extract_strided_slice %8 {offsets = [0, 160], sizes = [8, 32], strides = [1, 1]} : vector<8x192xf32> to vector<8x32xf32>
    %c1 = arith.constant 1 : index
    %c0_37 = arith.constant 0 : index
    %c0_38 = arith.constant 0 : index
    %110 = vector.load %arg5[%c1, %c0_37, %c0_38] : memref<2x32x32xf32, #tpu.memory_space<vmem>>, vector<1x32x32xf32>
    %111 = vector.shape_cast %110 : vector<1x32x32xf32> to vector<32x32xf32>
    %112 = vector.extract_strided_slice %107 {offsets = [0, 0], sizes = [8, 8], strides = [1, 1]} : vector<8x32xf32> to vector<8x8xf32>
    %113 = vector.extract_strided_slice %108 {offsets = [0, 0], sizes = [8, 8], strides = [1, 1]} : vector<8x32xf32> to vector<8x8xf32>
    %114 = vector.extract_strided_slice %109 {offsets = [0, 0], sizes = [8, 8], strides = [1, 1]} : vector<8x32xf32> to vector<8x8xf32>
    %115 = tpu.transpose %113, [1, 0] : vector<8x8xf32> -> vector<8x8xf32>
    %cst_39 = arith.constant dense<0.000000e+00> : vector<8x8xf32>
    %116 = tpu.matmul %112, %115, %cst_39 {dimension_numbers = #tpu.dot_dimension_numbers<[1], [0], [0], [1], [0, 0, 1, 1], [], []>} : vector<8x8xf32>, vector<8x8xf32>, vector<8x8xf32> -> vector<8x8xf32>
    %cst_40 = arith.constant 0.353553385 : f32
    %117 = vector.broadcast %cst_40 : f32 to vector<8x8xf32>
    %118 = arith.mulf %116, %117 : vector<8x8xf32>
    %119 = vector.broadcast %3 : vector<1x8xf32> to vector<8x8xf32>
    %120 = arith.addf %118, %119 : vector<8x8xf32>
    %cst_41 = arith.constant dense<0xFF800000> : vector<8xf32>
    %121 = vector.multi_reduction <maximumf>, %120, %cst_41 [1] : vector<8x8xf32> to vector<8xf32>
    %122 = vector.shape_cast %121 : vector<8xf32> to vector<8x1xf32>
    %123 = vector.broadcast %122 : vector<8x1xf32> to vector<8x8xf32>
    %124 = arith.subf %120, %123 : vector<8x8xf32>
    %125 = math.exp %124 : vector<8x8xf32>
    %cst_42 = arith.constant dense<0.000000e+00> : vector<8xf32>
    %126 = vector.multi_reduction <add>, %125, %cst_42 [1] : vector<8x8xf32> to vector<8xf32>
    %127 = vector.shape_cast %126 : vector<8xf32> to vector<8x1xf32>
    %128 = tpu.reciprocal %127 {approx = true} : vector<8x1xf32> -> vector<8x1xf32>
    %129 = vector.broadcast %128 : vector<8x1xf32> to vector<8x8xf32>
    %130 = arith.mulf %125, %129 : vector<8x8xf32>
    %cst_43 = arith.constant dense<0.000000e+00> : vector<8x8xf32>
    %131 = tpu.matmul %130, %114, %cst_43 {dimension_numbers = #tpu.dot_dimension_numbers<[1], [0], [0], [1], [0, 0, 1, 1], [], []>} : vector<8x8xf32>, vector<8x8xf32>, vector<8x8xf32> -> vector<8x8xf32>
    %132 = vector.extract_strided_slice %111 {offsets = [0, 0], sizes = [8, 32], strides = [1, 1]} : vector<32x32xf32> to vector<8x32xf32>
    %cst_44 = arith.constant dense<0.000000e+00> : vector<8x32xf32>
    %133 = tpu.matmul %131, %132, %cst_44 {dimension_numbers = #tpu.dot_dimension_numbers<[1], [0], [0], [1], [0, 0, 1, 1], [], []>} : vector<8x8xf32>, vector<8x32xf32>, vector<8x32xf32> -> vector<8x32xf32>
    %134 = arith.addf %106, %133 : vector<8x32xf32>
    %135 = vector.extract_strided_slice %107 {offsets = [0, 8], sizes = [8, 8], strides = [1, 1]} : vector<8x32xf32> to vector<8x8xf32>
    %136 = vector.extract_strided_slice %108 {offsets = [0, 8], sizes = [8, 8], strides = [1, 1]} : vector<8x32xf32> to vector<8x8xf32>
    %137 = vector.extract_strided_slice %109 {offsets = [0, 8], sizes = [8, 8], strides = [1, 1]} : vector<8x32xf32> to vector<8x8xf32>
    %138 = tpu.transpose %136, [1, 0] : vector<8x8xf32> -> vector<8x8xf32>
    %cst_45 = arith.constant dense<0.000000e+00> : vector<8x8xf32>
    %139 = tpu.matmul %135, %138, %cst_45 {dimension_numbers = #tpu.dot_dimension_numbers<[1], [0], [0], [1], [0, 0, 1, 1], [], []>} : vector<8x8xf32>, vector<8x8xf32>, vector<8x8xf32> -> vector<8x8xf32>
    %cst_46 = arith.constant 0.353553385 : f32
    %140 = vector.broadcast %cst_46 : f32 to vector<8x8xf32>
    %141 = arith.mulf %139, %140 : vector<8x8xf32>
    %142 = vector.broadcast %3 : vector<1x8xf32> to vector<8x8xf32>
    %143 = arith.addf %141, %142 : vector<8x8xf32>
    %cst_47 = arith.constant dense<0xFF800000> : vector<8xf32>
    %144 = vector.multi_reduction <maximumf>, %143, %cst_47 [1] : vector<8x8xf32> to vector<8xf32>
    %145 = vector.shape_cast %144 : vector<8xf32> to vector<8x1xf32>
    %146 = vector.broadcast %145 : vector<8x1xf32> to vector<8x8xf32>
    %147 = arith.subf %143, %146 : vector<8x8xf32>
    %148 = math.exp %147 : vector<8x8xf32>
    %cst_48 = arith.constant dense<0.000000e+00> : vector<8xf32>
    %149 = vector.multi_reduction <add>, %148, %cst_48 [1] : vector<8x8xf32> to vector<8xf32>
    %150 = vector.shape_cast %149 : vector<8xf32> to vector<8x1xf32>
    %151 = tpu.reciprocal %150 {approx = true} : vector<8x1xf32> -> vector<8x1xf32>
    %152 = vector.broadcast %151 : vector<8x1xf32> to vector<8x8xf32>
    %153 = arith.mulf %148, %152 : vector<8x8xf32>
    %cst_49 = arith.constant dense<0.000000e+00> : vector<8x8xf32>
    %154 = tpu.matmul %153, %137, %cst_49 {dimension_numbers = #tpu.dot_dimension_numbers<[1], [0], [0], [1], [0, 0, 1, 1], [], []>} : vector<8x8xf32>, vector<8x8xf32>, vector<8x8xf32> -> vector<8x8xf32>
    %155 = vector.extract_strided_slice %111 {offsets = [8, 0], sizes = [8, 32], strides = [1, 1]} : vector<32x32xf32> to vector<8x32xf32>
    %cst_50 = arith.constant dense<0.000000e+00> : vector<8x32xf32>
    %156 = tpu.matmul %154, %155, %cst_50 {dimension_numbers = #tpu.dot_dimension_numbers<[1], [0], [0], [1], [0, 0, 1, 1], [], []>} : vector<8x8xf32>, vector<8x32xf32>, vector<8x32xf32> -> vector<8x32xf32>
    %157 = arith.addf %134, %156 : vector<8x32xf32>
    %158 = vector.extract_strided_slice %107 {offsets = [0, 16], sizes = [8, 8], strides = [1, 1]} : vector<8x32xf32> to vector<8x8xf32>
    %159 = vector.extract_strided_slice %108 {offsets = [0, 16], sizes = [8, 8], strides = [1, 1]} : vector<8x32xf32> to vector<8x8xf32>
    %160 = vector.extract_strided_slice %109 {offsets = [0, 16], sizes = [8, 8], strides = [1, 1]} : vector<8x32xf32> to vector<8x8xf32>
    %161 = tpu.transpose %159, [1, 0] : vector<8x8xf32> -> vector<8x8xf32>
    %cst_51 = arith.constant dense<0.000000e+00> : vector<8x8xf32>
    %162 = tpu.matmul %158, %161, %cst_51 {dimension_numbers = #tpu.dot_dimension_numbers<[1], [0], [0], [1], [0, 0, 1, 1], [], []>} : vector<8x8xf32>, vector<8x8xf32>, vector<8x8xf32> -> vector<8x8xf32>
    %cst_52 = arith.constant 0.353553385 : f32
    %163 = vector.broadcast %cst_52 : f32 to vector<8x8xf32>
    %164 = arith.mulf %162, %163 : vector<8x8xf32>
    %165 = vector.broadcast %3 : vector<1x8xf32> to vector<8x8xf32>
    %166 = arith.addf %164, %165 : vector<8x8xf32>
    %cst_53 = arith.constant dense<0xFF800000> : vector<8xf32>
    %167 = vector.multi_reduction <maximumf>, %166, %cst_53 [1] : vector<8x8xf32> to vector<8xf32>
    %168 = vector.shape_cast %167 : vector<8xf32> to vector<8x1xf32>
    %169 = vector.broadcast %168 : vector<8x1xf32> to vector<8x8xf32>
    %170 = arith.subf %166, %169 : vector<8x8xf32>
    %171 = math.exp %170 : vector<8x8xf32>
    %cst_54 = arith.constant dense<0.000000e+00> : vector<8xf32>
    %172 = vector.multi_reduction <add>, %171, %cst_54 [1] : vector<8x8xf32> to vector<8xf32>
    %173 = vector.shape_cast %172 : vector<8xf32> to vector<8x1xf32>
    %174 = tpu.reciprocal %173 {approx = true} : vector<8x1xf32> -> vector<8x1xf32>
    %175 = vector.broadcast %174 : vector<8x1xf32> to vector<8x8xf32>
    %176 = arith.mulf %171, %175 : vector<8x8xf32>
    %cst_55 = arith.constant dense<0.000000e+00> : vector<8x8xf32>
    %177 = tpu.matmul %176, %160, %cst_55 {dimension_numbers = #tpu.dot_dimension_numbers<[1], [0], [0], [1], [0, 0, 1, 1], [], []>} : vector<8x8xf32>, vector<8x8xf32>, vector<8x8xf32> -> vector<8x8xf32>
    %178 = vector.extract_strided_slice %111 {offsets = [16, 0], sizes = [8, 32], strides = [1, 1]} : vector<32x32xf32> to vector<8x32xf32>
    %cst_56 = arith.constant dense<0.000000e+00> : vector<8x32xf32>
    %179 = tpu.matmul %177, %178, %cst_56 {dimension_numbers = #tpu.dot_dimension_numbers<[1], [0], [0], [1], [0, 0, 1, 1], [], []>} : vector<8x8xf32>, vector<8x32xf32>, vector<8x32xf32> -> vector<8x32xf32>
    %180 = arith.addf %157, %179 : vector<8x32xf32>
    %181 = vector.extract_strided_slice %107 {offsets = [0, 24], sizes = [8, 8], strides = [1, 1]} : vector<8x32xf32> to vector<8x8xf32>
    %182 = vector.extract_strided_slice %108 {offsets = [0, 24], sizes = [8, 8], strides = [1, 1]} : vector<8x32xf32> to vector<8x8xf32>
    %183 = vector.extract_strided_slice %109 {offsets = [0, 24], sizes = [8, 8], strides = [1, 1]} : vector<8x32xf32> to vector<8x8xf32>
    %184 = tpu.transpose %182, [1, 0] : vector<8x8xf32> -> vector<8x8xf32>
    %cst_57 = arith.constant dense<0.000000e+00> : vector<8x8xf32>
    %185 = tpu.matmul %181, %184, %cst_57 {dimension_numbers = #tpu.dot_dimension_numbers<[1], [0], [0], [1], [0, 0, 1, 1], [], []>} : vector<8x8xf32>, vector<8x8xf32>, vector<8x8xf32> -> vector<8x8xf32>
    %cst_58 = arith.constant 0.353553385 : f32
    %186 = vector.broadcast %cst_58 : f32 to vector<8x8xf32>
    %187 = arith.mulf %185, %186 : vector<8x8xf32>
    %188 = vector.broadcast %3 : vector<1x8xf32> to vector<8x8xf32>
    %189 = arith.addf %187, %188 : vector<8x8xf32>
    %cst_59 = arith.constant dense<0xFF800000> : vector<8xf32>
    %190 = vector.multi_reduction <maximumf>, %189, %cst_59 [1] : vector<8x8xf32> to vector<8xf32>
    %191 = vector.shape_cast %190 : vector<8xf32> to vector<8x1xf32>
    %192 = vector.broadcast %191 : vector<8x1xf32> to vector<8x8xf32>
    %193 = arith.subf %189, %192 : vector<8x8xf32>
    %194 = math.exp %193 : vector<8x8xf32>
    %cst_60 = arith.constant dense<0.000000e+00> : vector<8xf32>
    %195 = vector.multi_reduction <add>, %194, %cst_60 [1] : vector<8x8xf32> to vector<8xf32>
    %196 = vector.shape_cast %195 : vector<8xf32> to vector<8x1xf32>
    %197 = tpu.reciprocal %196 {approx = true} : vector<8x1xf32> -> vector<8x1xf32>
    %198 = vector.broadcast %197 : vector<8x1xf32> to vector<8x8xf32>
    %199 = arith.mulf %194, %198 : vector<8x8xf32>
    %cst_61 = arith.constant dense<0.000000e+00> : vector<8x8xf32>
    %200 = tpu.matmul %199, %183, %cst_61 {dimension_numbers = #tpu.dot_dimension_numbers<[1], [0], [0], [1], [0, 0, 1, 1], [], []>} : vector<8x8xf32>, vector<8x8xf32>, vector<8x8xf32> -> vector<8x8xf32>
    %201 = vector.extract_strided_slice %111 {offsets = [24, 0], sizes = [8, 32], strides = [1, 1]} : vector<32x32xf32> to vector<8x32xf32>
    %cst_62 = arith.constant dense<0.000000e+00> : vector<8x32xf32>
    %202 = tpu.matmul %200, %201, %cst_62 {dimension_numbers = #tpu.dot_dimension_numbers<[1], [0], [0], [1], [0, 0, 1, 1], [], []>} : vector<8x8xf32>, vector<8x32xf32>, vector<8x32xf32> -> vector<8x32xf32>
    %203 = arith.addf %180, %202 : vector<8x32xf32>
    %c0_63 = arith.constant 0 : index
    %c0_64 = arith.constant 0 : index
    %204 = vector.load %arg6[%c0_63, %c0_64] : memref<1x32xf32, #tpu.memory_space<vmem>>, vector<1x32xf32>
    %205 = vector.broadcast %204 : vector<1x32xf32> to vector<8x32xf32>
    %206 = arith.addf %203, %205 : vector<8x32xf32>
    %c0_65 = arith.constant 0 : index
    %c0_66 = arith.constant 0 : index
    %207 = vector.load %arg7[%c0_65, %c0_66] : memref<32x2xf32, #tpu.memory_space<vmem>>, vector<32x2xf32>
    %cst_67 = arith.constant dense<0.000000e+00> : vector<8x2xf32>
    %208 = tpu.matmul %206, %207, %cst_67 {dimension_numbers = #tpu.dot_dimension_numbers<[1], [0], [0], [1], [0, 0, 1, 1], [], []>} : vector<8x32xf32>, vector<32x2xf32>, vector<8x2xf32> -> vector<8x2xf32>
    %c0_68 = arith.constant 0 : index
    %c0_69 = arith.constant 0 : index
    %209 = vector.load %arg8[%c0_68, %c0_69] : memref<1x2xf32, #tpu.memory_space<vmem>>, vector<1x2xf32>
    %210 = vector.broadcast %209 : vector<1x2xf32> to vector<8x2xf32>
    %211 = arith.addf %208, %210 : vector<8x2xf32>
    %cst_70 = arith.constant dense<0xFF800000> : vector<8xf32>
    %212 = vector.multi_reduction <maximumf>, %211, %cst_70 [1] : vector<8x2xf32> to vector<8xf32>
    %213 = vector.shape_cast %212 : vector<8xf32> to vector<8x1xf32>
    %214 = vector.broadcast %213 : vector<8x1xf32> to vector<8x2xf32>
    %215 = arith.subf %211, %214 : vector<8x2xf32>
    %216 = math.exp %215 : vector<8x2xf32>
    %cst_71 = arith.constant dense<0.000000e+00> : vector<8xf32>
    %217 = vector.multi_reduction <add>, %216, %cst_71 [1] : vector<8x2xf32> to vector<8xf32>
    %218 = vector.shape_cast %217 : vector<8xf32> to vector<8x1xf32>
    %219 = tpu.reciprocal %218 {approx = true} : vector<8x1xf32> -> vector<8x1xf32>
    %220 = vector.broadcast %219 : vector<8x1xf32> to vector<8x2xf32>
    %221 = arith.mulf %216, %220 : vector<8x2xf32>
    %cst_72 = arith.constant dense<0xFF800000> : vector<8xf32>
    %222 = vector.multi_reduction <maximumf>, %221, %cst_72 [1] : vector<8x2xf32> to vector<8xf32>
    %223 = vector.shape_cast %222 : vector<8xf32> to vector<8x1xf32>
    %224 = tpu.iota {dimensions = array<i32: 1>} : vector<8x2xi32>
    %225 = vector.broadcast %223 : vector<8x1xf32> to vector<8x2xf32>
    %226 = arith.cmpf oge, %221, %225 : vector<8x2xf32>
    %c2_i32 = arith.constant 2 : i32
    %227 = vector.broadcast %c2_i32 : i32 to vector<8x2xi32>
    %228 = arith.select %226, %224, %227 : vector<8x2xi1>, vector<8x2xi32>
    %cst_73 = arith.constant dense<2147483647> : vector<8xi32>
    %229 = vector.multi_reduction <minsi>, %228, %cst_73 [1] : vector<8x2xi32> to vector<8xi32>
    %230 = vector.shape_cast %229 : vector<8xi32> to vector<8x1xi32>
    %c0_74 = arith.constant 0 : index
    %c0_75 = arith.constant 0 : index
    %231 = vector.load %arg9[%c0_74, %c0_75] : memref<32x128xf32, #tpu.memory_space<vmem>>, vector<32x128xf32>
    %cst_76 = arith.constant dense<0.000000e+00> : vector<8x128xf32>
    %232 = tpu.matmul %206, %231, %cst_76 {dimension_numbers = #tpu.dot_dimension_numbers<[1], [0], [0], [1], [0, 0, 1, 1], [], []>} : vector<8x32xf32>, vector<32x128xf32>, vector<8x128xf32> -> vector<8x128xf32>
    %c0_77 = arith.constant 0 : index
    %c0_78 = arith.constant 0 : index
    %233 = vector.load %arg10[%c0_77, %c0_78] : memref<1x128xf32, #tpu.memory_space<vmem>>, vector<1x128xf32>
    %234 = vector.broadcast %233 : vector<1x128xf32> to vector<8x128xf32>
    %235 = arith.addf %232, %234 : vector<8x128xf32>
    %236 = arith.mulf %235, %235 : vector<8x128xf32>
    %237 = arith.mulf %235, %236 : vector<8x128xf32>
    %cst_79 = arith.constant 4.471500e-02 : f32
    %238 = vector.broadcast %cst_79 : f32 to vector<8x128xf32>
    %239 = arith.mulf %238, %237 : vector<8x128xf32>
    %240 = arith.addf %235, %239 : vector<8x128xf32>
    %cst_80 = arith.constant 0.797884583 : f32
    %241 = vector.broadcast %cst_80 : f32 to vector<8x128xf32>
    %242 = arith.mulf %241, %240 : vector<8x128xf32>
    %243 = math.tanh %242 : vector<8x128xf32>
    %cst_81 = arith.constant 1.000000e+00 : f32
    %244 = vector.broadcast %cst_81 : f32 to vector<8x128xf32>
    %245 = arith.addf %244, %243 : vector<8x128xf32>
    %cst_82 = arith.constant 5.000000e-01 : f32
    %246 = vector.broadcast %cst_82 : f32 to vector<8x128xf32>
    %247 = arith.mulf %246, %245 : vector<8x128xf32>
    %248 = arith.mulf %235, %247 : vector<8x128xf32>
    %c0_83 = arith.constant 0 : index
    %c0_84 = arith.constant 0 : index
    %249 = vector.load %arg11[%c0_83, %c0_84] : memref<128x64xf32, #tpu.memory_space<vmem>>, vector<128x64xf32>
    %cst_85 = arith.constant dense<0.000000e+00> : vector<8x64xf32>
    %250 = tpu.matmul %248, %249, %cst_85 {dimension_numbers = #tpu.dot_dimension_numbers<[1], [0], [0], [1], [0, 0, 1, 1], [], []>} : vector<8x128xf32>, vector<128x64xf32>, vector<8x64xf32> -> vector<8x64xf32>
    %c0_86 = arith.constant 0 : index
    %c0_87 = arith.constant 0 : index
    %251 = vector.load %arg12[%c0_86, %c0_87] : memref<1x64xf32, #tpu.memory_space<vmem>>, vector<1x64xf32>
    %252 = vector.broadcast %251 : vector<1x64xf32> to vector<8x64xf32>
    %253 = arith.addf %250, %252 : vector<8x64xf32>
    %254 = vector.extract_strided_slice %253 {offsets = [0, 0], sizes = [8, 32], strides = [1, 1]} : vector<8x64xf32> to vector<8x32xf32>
    %c1_i32 = arith.constant 1 : i32
    %255 = vector.broadcast %c1_i32 : i32 to vector<8x1xi32>
    %256 = arith.cmpi eq, %230, %255 : vector<8x1xi32>
    %257 = vector.extract_strided_slice %253 {offsets = [0, 32], sizes = [8, 32], strides = [1, 1]} : vector<8x64xf32> to vector<8x32xf32>
    %258 = vector.shape_cast %256 : vector<8x1xi1> to vector<8x1xi1>
    %259 = vector.broadcast %258 : vector<8x1xi1> to vector<8x32xi1>
    %260 = arith.select %259, %257, %254 : vector<8x32xi1>, vector<8x32xf32>
    %261 = vector.broadcast %223 : vector<8x1xf32> to vector<8x32xf32>
    %262 = arith.mulf %260, %261 : vector<8x32xf32>
    %263 = arith.addf %206, %262 : vector<8x32xf32>
    %cst_88 = arith.constant dense<0.000000e+00> : vector<8xf32>
    %264 = vector.multi_reduction <add>, %263, %cst_88 [1] : vector<8x32xf32> to vector<8xf32>
    %265 = vector.shape_cast %264 : vector<8xf32> to vector<8x1xf32>
    %cst_89 = arith.constant 3.200000e+01 : f32
    %266 = vector.broadcast %cst_89 : f32 to vector<8x1xf32>
    %267 = arith.divf %265, %266 : vector<8x1xf32>
    %268 = vector.broadcast %267 : vector<8x1xf32> to vector<8x32xf32>
    %269 = arith.subf %263, %268 : vector<8x32xf32>
    %270 = vector.broadcast %267 : vector<8x1xf32> to vector<8x32xf32>
    %271 = arith.subf %263, %270 : vector<8x32xf32>
    %272 = arith.mulf %269, %271 : vector<8x32xf32>
    %cst_90 = arith.constant dense<0.000000e+00> : vector<8xf32>
    %273 = vector.multi_reduction <add>, %272, %cst_90 [1] : vector<8x32xf32> to vector<8xf32>
    %274 = vector.shape_cast %273 : vector<8xf32> to vector<8x1xf32>
    %cst_91 = arith.constant 3.200000e+01 : f32
    %275 = vector.broadcast %cst_91 : f32 to vector<8x1xf32>
    %276 = arith.divf %274, %275 : vector<8x1xf32>
    %277 = vector.broadcast %267 : vector<8x1xf32> to vector<8x32xf32>
    %278 = arith.subf %263, %277 : vector<8x32xf32>
    %cst_92 = arith.constant 9.99999996E-13 : f32
    %279 = vector.broadcast %cst_92 : f32 to vector<8x1xf32>
    %280 = arith.addf %276, %279 : vector<8x1xf32>
    %281 = math.rsqrt %280 : vector<8x1xf32>
    %282 = vector.broadcast %281 : vector<8x1xf32> to vector<8x32xf32>
    %283 = arith.mulf %278, %282 : vector<8x32xf32>
    %c0_93 = arith.constant 0 : index
    %c0_94 = arith.constant 0 : index
    %284 = vector.load %arg13[%c0_93, %c0_94] : memref<1x32xf32, #tpu.memory_space<vmem>>, vector<1x32xf32>
    %285 = vector.broadcast %284 : vector<1x32xf32> to vector<8x32xf32>
    %286 = arith.mulf %283, %285 : vector<8x32xf32>
    %c0_95 = arith.constant 0 : index
    %c0_96 = arith.constant 0 : index
    %287 = vector.load %arg14[%c0_95, %c0_96] : memref<1x32xf32, #tpu.memory_space<vmem>>, vector<1x32xf32>
    %288 = vector.broadcast %287 : vector<1x32xf32> to vector<8x32xf32>
    %289 = arith.addf %286, %288 : vector<8x32xf32>
    %c0_97 = arith.constant 0 : index
    %c0_98 = arith.constant 0 : index
    %c0_99 = arith.constant 0 : index
    %290 = vector.load %arg15[%c0_97, %c0_98, %c0_99] : memref<1x8x32xf32, #tpu.memory_space<vmem>>, vector<1x8x32xf32>
    %291 = vector.shape_cast %290 : vector<1x8x32xf32> to vector<8x32xf32>
    %292 = vector.shape_cast %289 : vector<8x32xf32> to vector<1x8x32xf32>
    tpu.vector_store %arg15[%c0_97, %c0_98, %c0_99], %292 {strides = array<i32>} : memref<1x8x32xf32, #tpu.memory_space<vmem>>, vector<1x8x32xf32>,
    return
  }
  func.func @transform_0(%arg0: i32) -> (i32, i32, i32) {
    %c0_i32 = arith.constant 0 : i32
    %c0_i32_0 = arith.constant 0 : i32
    %c0_i32_1 = arith.constant 0 : i32
    return %arg0, %c0_i32, %c0_i32_0 : i32, i32, i32
  }
  func.func @transform_1(%arg0: i32) -> (i32, i32, i32) {
    %c0_i32 = arith.constant 0 : i32
    %c0_i32_0 = arith.constant 0 : i32
    %c0_i32_1 = arith.constant 0 : i32
    return %arg0, %c0_i32, %c0_i32_0 : i32, i32, i32
  }
  func.func @transform_2(%arg0: i32) -> (i32, i32) {
    %c0_i32 = arith.constant 0 : i32
    %c0_i32_0 = arith.constant 0 : i32
    %c0_i32_1 = arith.constant 0 : i32
    return %c0_i32, %c0_i32_0 : i32, i32
  }
  func.func @transform_3(%arg0: i32) -> (i32, i32) {
    %c0_i32 = arith.constant 0 : i32
    %c0_i32_0 = arith.constant 0 : i32
    %c0_i32_1 = arith.constant 0 : i32
    return %c0_i32, %c0_i32_0 : i32, i32
  }
  func.func @transform_4(%arg0: i32) -> (i32, i32, i32) {
    %c0_i32 = arith.constant 0 : i32
    %c0_i32_0 = arith.constant 0 : i32
    %c0_i32_1 = arith.constant 0 : i32
    %c0_i32_2 = arith.constant 0 : i32
    return %c0_i32, %c0_i32_0, %c0_i32_1 : i32, i32, i32
  }
  func.func @transform_5(%arg0: i32) -> (i32, i32) {
    %c0_i32 = arith.constant 0 : i32
    %c0_i32_0 = arith.constant 0 : i32
    %c0_i32_1 = arith.constant 0 : i32
    return %c0_i32, %c0_i32_0 : i32, i32
  }
  func.func @transform_6(%arg0: i32) -> (i32, i32) {
    %c0_i32 = arith.constant 0 : i32
    %c0_i32_0 = arith.constant 0 : i32
    %c0_i32_1 = arith.constant 0 : i32
    return %c0_i32, %c0_i32_0 : i32, i32
  }
  func.func @transform_7(%arg0: i32) -> (i32, i32) {
    %c0_i32 = arith.constant 0 : i32
    %c0_i32_0 = arith.constant 0 : i32
    %c0_i32_1 = arith.constant 0 : i32
    return %c0_i32, %c0_i32_0 : i32, i32
  }
  func.func @transform_8(%arg0: i32) -> (i32, i32) {
    %c0_i32 = arith.constant 0 : i32
    %c0_i32_0 = arith.constant 0 : i32
    %c0_i32_1 = arith.constant 0 : i32
    return %c0_i32, %c0_i32_0 : i32, i32
  }
  func.func @transform_9(%arg0: i32) -> (i32, i32) {
    %c0_i32 = arith.constant 0 : i32
    %c0_i32_0 = arith.constant 0 : i32
    %c0_i32_1 = arith.constant 0 : i32
    return %c0_i32, %c0_i32_0 : i32, i32
  }
  func.func @transform_10(%arg0: i32) -> (i32, i32) {
    %c0_i32 = arith.constant 0 : i32
    %c0_i32_0 = arith.constant 0 : i32
    %c0_i32_1 = arith.constant 0 : i32
    return %c0_i32, %c0_i32_0 : i32, i32
  }
  func.func @transform_11(%arg0: i32) -> (i32, i32) {
    %c0_i32 = arith.constant 0 : i32
    %c0_i32_0 = arith.constant 0 : i32
    %c0_i32_1 = arith.constant 0 : i32
    return %c0_i32, %c0_i32_0 : i32, i32
  }
  func.func @transform_12(%arg0: i32) -> (i32, i32) {
    %c0_i32 = arith.constant 0 : i32
    %c0_i32_0 = arith.constant 0 : i32
    %c0_i32_1 = arith.constant 0 : i32
    return %c0_i32, %c0_i32_0 : i32, i32
  }
  func.func @transform_13(%arg0: i32) -> (i32, i32) {
    %c0_i32 = arith.constant 0 : i32
    %c0_i32_0 = arith.constant 0 : i32
    %c0_i32_1 = arith.constant 0 : i32
    return %c0_i32, %c0_i32_0 : i32, i32
  }
  func.func @transform_14(%arg0: i32) -> (i32, i32, i32) {
    %c0_i32 = arith.constant 0 : i32
    %c0_i32_0 = arith.constant 0 : i32
    %c0_i32_1 = arith.constant 0 : i32
    return %arg0, %c0_i32, %c0_i32_0 : i32, i32, i32
  }
}

</mosaic_0001>

<llo_original>
// kernel: momo_share_layer.1
$region0: #{momo_share_layer.1}
  #allocation0 [shape = 'u32[]', space=smem, size = 0x4, offset = 0x4, fixed_abs, tag = 'smem constant byte address 0x4 - core index']
  #allocation1 [shape = 'u32[144,128]{1,0:T(1,128)}', space=vmem, size = 0x12000, scoped, tag = 'internal scratch']
  %s0 = inlined_call_operand.vmem [shape: f32[2,8,32], index: 0, kind: input, shape index: {}]
  %s1 = inlined_call_operand.vmem [shape: f32[2,1,8], index: 1, kind: input, shape index: {}]
  %s2 = inlined_call_operand.vmem [shape: f32[32,192], index: 2, kind: input, shape index: {}]
  %s3 = inlined_call_operand.vmem [shape: f32[1,192], index: 3, kind: input, shape index: {}]
  %s4 = inlined_call_operand.vmem [shape: f32[2,32,32], index: 4, kind: input, shape index: {}]
  %s5 = inlined_call_operand.vmem [shape: f32[1,32], index: 5, kind: input, shape index: {}]
  %s6 = inlined_call_operand.vmem [shape: f32[32,2], index: 6, kind: input, shape index: {}]
  %s7 = inlined_call_operand.vmem [shape: f32[1,2], index: 7, kind: input, shape index: {}]
  %s8 = inlined_call_operand.vmem [shape: f32[32,128], index: 8, kind: input, shape index: {}]
  %s9 = inlined_call_operand.vmem [shape: f32[1,128], index: 9, kind: input, shape index: {}]
  %s10 = inlined_call_operand.vmem [shape: f32[128,64], index: 10, kind: input, shape index: {}]
  %s11 = inlined_call_operand.vmem [shape: f32[1,64], index: 11, kind: input, shape index: {}]
  %s12 = inlined_call_operand.vmem [shape: f32[1,32], index: 12, kind: input, shape index: {}]
  %s13 = inlined_call_operand.vmem [shape: f32[1,32], index: 13, kind: input, shape index: {}]
  %s14 = inlined_call_operand.hbm [shape: f32[2,8,32], index: 14, kind: output, shape index: {}]
  %s15 = sld [smem:[#allocation0]]
  $region89: #{momo_share_layer.1} parent=0
    _
  %s17 = ssub.s32 1, %s15
  %s18 = scalar_select 0, %s17, %s15
  $region1: #{momo_share_layer.1} parent=0
    #allocation2 [shape = 'u8[8192]{0}', space=vmem, size = 0x2000, scoped, tag = 'output window, operand 0']
    #allocation3 [shape = 's32[2]{0}', space=sflag, size = 0x8, scoped, tag = 'scoped memory for momo_share_layer.1']
    %19 = vsyncpa [#allocation3], 0
    %s20 = scalar_lea.sflag [#allocation3], 1
    %21 = vsyncpa %s20, 0
    loop: start=0, step=1, limit=4
    $region2: #{momo_share_layer.1} parent=1 // loop_pre_header
      _
    $region3: #{momo_share_layer.1} parent=1 // loop_header
      %s23 = sphi 0, %s27
      %p24 = scmp.ge.s32.totalorder %s23, 4
      %s33 = sphi 0, %s35
      %s36 = sphi 0, %s33
      %s37 = sphi 0, %s36
      %s53 = sphi 0, %s37
      %s59 = sphi 0, %s61
      %s62 = sphi 0, %s59
      %s63 = sphi 0, %s62
      %s79 = sphi 0, %s63
      %s83 = sphi 0, %s83
      %s85 = sphi 0, %s83
      %s86 = sphi 0, %s85
      %s100 = sphi 0, %s86
      %s104 = sphi 0, %s104
      %s106 = sphi 0, %s104
      %s107 = sphi 0, %s106
      %s121 = sphi 0, %s107
      %s125 = sphi 0, %s125
      %s127 = sphi 0, %s125
      %s128 = sphi 0, %s127
      %s142 = sphi 0, %s128
      %s146 = sphi 0, %s146
      %s148 = sphi 0, %s146
      %s149 = sphi 0, %s148
      %s163 = sphi 0, %s149
      %s167 = sphi 0, %s167
      %s169 = sphi 0, %s167
      %s170 = sphi 0, %s169
      %s184 = sphi 0, %s170
      %s188 = sphi 0, %s188
      %s190 = sphi 0, %s188
      %s191 = sphi 0, %s190
      %s205 = sphi 0, %s191
      %s209 = sphi 0, %s209
      %s211 = sphi 0, %s209
      %s212 = sphi 0, %s211
      %s226 = sphi 0, %s212
      %s230 = sphi 0, %s230
      %s232 = sphi 0, %s230
      %s233 = sphi 0, %s232
      %s247 = sphi 0, %s233
      %s251 = sphi 0, %s251
      %s253 = sphi 0, %s251
      %s254 = sphi 0, %s253
      %s268 = sphi 0, %s254
      %s272 = sphi 0, %s272
      %s274 = sphi 0, %s272
      %s275 = sphi 0, %s274
      %s289 = sphi 0, %s275
      %s293 = sphi 0, %s293
      %s295 = sphi 0, %s293
      %s296 = sphi 0, %s295
      %s310 = sphi 0, %s296
      %s314 = sphi 0, %s314
      %s316 = sphi 0, %s314
      %s317 = sphi 0, %s316
      %s331 = sphi 0, %s317
      %s337 = sphi 0, %s339
      %s340 = sphi 0, %s337
      %s341 = sphi 0, %s340
      %s357 = sphi 0, %s341
    $region4: #{momo_share_layer.1} parent=1 // loop_header_branch
      %26 = sbr.rel (%p24) target = $region8
    $region5: #{momo_share_layer.1} parent=1 // loop_body
      %s28 = ssub.s32 %s23, 1
      %s29 = ssub.s32 %s23, 2
      %s30 = sadd.s32 %s23, 1
      %s31 = ssub.s32 %s23, %s30
      %p32 = scmp.eq.s32.totalorder %s31, 0
      %s34 = sadd.s32 %s33, 1
      %s35 = scalar_select %p32, %s33, %s34
      %p38 = pneg %p32
      %p39 = scmp.eq.s32.totalorder %s23, 1
      %p40 = por %p38, %p39
      %p41 = scmp.ne.s32.totalorder %s33, %s36
      %p42 = scmp.eq.s32.totalorder %s23, 0
      %p43 = por %p41, %p42
      %p44 = scmp.ne.s32.totalorder %s33, %s36
      %p45 = scmp.eq.s32.totalorder %s28, 1
      %p46 = por %p44, %p45
      %p47 = scmp.ne.s32.totalorder %s36, %s37
      %p48 = scmp.eq.s32.totalorder %s28, 0
      %p49 = por %p47, %p48
      %p50 = scmp.ne.s32.totalorder %s36, %s37
      %p51 = scmp.eq.s32.totalorder %s29, 1
      %p52 = por %p50, %p51
      %p54 = scmp.ne.s32.totalorder %s37, %s53
      %p55 = scmp.eq.s32.totalorder %s29, 0
      %p56 = por %p54, %p55
      %s57 = ssub.s32 %s23, %s30
      %p58 = scmp.eq.s32.totalorder %s57, 0
      %s60 = sadd.s32 %s59, 1
      %s61 = scalar_select %p58, %s59, %s60
      %p64 = pneg %p58
      %p65 = scmp.eq.s32.totalorder %s23, 1
      %p66 = por %p64, %p65
      %p67 = scmp.ne.s32.totalorder %s59, %s62
      %p68 = scmp.eq.s32.totalorder %s23, 0
      %p69 = por %p67, %p68
      %p70 = scmp.ne.s32.totalorder %s59, %s62
      %p71 = scmp.eq.s32.totalorder %s28, 1
      %p72 = por %p70, %p71
      %p73 = scmp.ne.s32.totalorder %s62, %s63
      %p74 = scmp.eq.s32.totalorder %s28, 0
      %p75 = por %p73, %p74
      %p76 = scmp.ne.s32.totalorder %s62, %s63
      %p77 = scmp.eq.s32.totalorder %s29, 1
      %p78 = por %p76, %p77
      %p80 = scmp.ne.s32.totalorder %s63, %s79
      %p81 = scmp.eq.s32.totalorder %s29, 0
      %p82 = por %p80, %p81
      %s84 = sadd.s32 %s83, 1
      %p87 = scmp.eq.s32.totalorder %s23, 1
      %p88 = scmp.ne.s32.totalorder %s83, %s85
      %p89 = scmp.eq.s32.totalorder %s23, 0
      %p90 = por %p88, %p89
      %p91 = scmp.ne.s32.totalorder %s83, %s85
      %p92 = scmp.eq.s32.totalorder %s28, 1
      %p93 = por %p91, %p92
      %p94 = scmp.ne.s32.totalorder %s85, %s86
      %p95 = scmp.eq.s32.totalorder %s28, 0
      %p96 = por %p94, %p95
      %p97 = scmp.ne.s32.totalorder %s85, %s86
      %p98 = scmp.eq.s32.totalorder %s29, 1
      %p99 = por %p97, %p98
      %p101 = scmp.ne.s32.totalorder %s86, %s100
      %p102 = scmp.eq.s32.totalorder %s29, 0
      %p103 = por %p101, %p102
      %s105 = sadd.s32 %s104, 1
      %p108 = scmp.eq.s32.totalorder %s23, 1
      %p109 = scmp.ne.s32.totalorder %s104, %s106
      %p110 = scmp.eq.s32.totalorder %s23, 0
      %p111 = por %p109, %p110
      %p112 = scmp.ne.s32.totalorder %s104, %s106
      %p113 = scmp.eq.s32.totalorder %s28, 1
      %p114 = por %p112, %p113
      %p115 = scmp.ne.s32.totalorder %s106, %s107
      %p116 = scmp.eq.s32.totalorder %s28, 0
      %p117 = por %p115, %p116
      %p118 = scmp.ne.s32.totalorder %s106, %s107
      %p119 = scmp.eq.s32.totalorder %s29, 1
      %p120 = por %p118, %p119
      %p122 = scmp.ne.s32.totalorder %s107, %s121
      %p123 = scmp.eq.s32.totalorder %s29, 0
      %p124 = por %p122, %p123
      %s126 = sadd.s32 %s125, 1
      %p129 = scmp.eq.s32.totalorder %s23, 1
      %p130 = scmp.ne.s32.totalorder %s125, %s127
      %p131 = scmp.eq.s32.totalorder %s23, 0
      %p132 = por %p130, %p131
      %p133 = scmp.ne.s32.totalorder %s125, %s127
      %p134 = scmp.eq.s32.totalorder %s28, 1
      %p135 = por %p133, %p134
      %p136 = scmp.ne.s32.totalorder %s127, %s128
      %p137 = scmp.eq.s32.totalorder %s28, 0
      %p138 = por %p136, %p137
      %p139 = scmp.ne.s32.totalorder %s127, %s128
      %p140 = scmp.eq.s32.totalorder %s29, 1
      %p141 = por %p139, %p140
      %p143 = scmp.ne.s32.totalorder %s128, %s142
      %p144 = scmp.eq.s32.totalorder %s29, 0
      %p145 = por %p143, %p144
      %s147 = sadd.s32 %s146, 1
      %p150 = scmp.eq.s32.totalorder %s23, 1
      %p151 = scmp.ne.s32.totalorder %s146, %s148
      %p152 = scmp.eq.s32.totalorder %s23, 0
      %p153 = por %p151, %p152
      %p154 = scmp.ne.s32.totalorder %s146, %s148
      %p155 = scmp.eq.s32.totalorder %s28, 1
      %p156 = por %p154, %p155
      %p157 = scmp.ne.s32.totalorder %s148, %s149
      %p158 = scmp.eq.s32.totalorder %s28, 0
      %p159 = por %p157, %p158
      %p160 = scmp.ne.s32.totalorder %s148, %s149
      %p161 = scmp.eq.s32.totalorder %s29, 1
      %p162 = por %p160, %p161
      %p164 = scmp.ne.s32.totalorder %s149, %s163
      %p165 = scmp.eq.s32.totalorder %s29, 0
      %p166 = por %p164, %p165
      %s168 = sadd.s32 %s167, 1
      %p171 = scmp.eq.s32.totalorder %s23, 1
      %p172 = scmp.ne.s32.totalorder %s167, %s169
      %p173 = scmp.eq.s32.totalorder %s23, 0
      %p174 = por %p172, %p173
      %p175 = scmp.ne.s32.totalorder %s167, %s169
      %p176 = scmp.eq.s32.totalorder %s28, 1
      %p177 = por %p175, %p176
      %p178 = scmp.ne.s32.totalorder %s169, %s170
      %p179 = scmp.eq.s32.totalorder %s28, 0
      %p180 = por %p178, %p179
      %p181 = scmp.ne.s32.totalorder %s169, %s170
      %p182 = scmp.eq.s32.totalorder %s29, 1
      %p183 = por %p181, %p182
      %p185 = scmp.ne.s32.totalorder %s170, %s184
      %p186 = scmp.eq.s32.totalorder %s29, 0
      %p187 = por %p185, %p186
      %s189 = sadd.s32 %s188, 1
      %p192 = scmp.eq.s32.totalorder %s23, 1
      %p193 = scmp.ne.s32.totalorder %s188, %s190
      %p194 = scmp.eq.s32.totalorder %s23, 0
      %p195 = por %p193, %p194
      %p196 = scmp.ne.s32.totalorder %s188, %s190
      %p197 = scmp.eq.s32.totalorder %s28, 1
      %p198 = por %p196, %p197
      %p199 = scmp.ne.s32.totalorder %s190, %s191
      %p200 = scmp.eq.s32.totalorder %s28, 0
      %p201 = por %p199, %p200
      %p202 = scmp.ne.s32.totalorder %s190, %s191
      %p203 = scmp.eq.s32.totalorder %s29, 1
      %p204 = por %p202, %p203
      %p206 = scmp.ne.s32.totalorder %s191, %s205
      %p207 = scmp.eq.s32.totalorder %s29, 0
      %p208 = por %p206, %p207
      %s210 = sadd.s32 %s209, 1
      %p213 = scmp.eq.s32.totalorder %s23, 1
      %p214 = scmp.ne.s32.totalorder %s209, %s211
      %p215 = scmp.eq.s32.totalorder %s23, 0
      %p216 = por %p214, %p215
      %p217 = scmp.ne.s32.totalorder %s209, %s211
      %p218 = scmp.eq.s32.totalorder %s28, 1
      %p219 = por %p217, %p218
      %p220 = scmp.ne.s32.totalorder %s211, %s212
      %p221 = scmp.eq.s32.totalorder %s28, 0
      %p222 = por %p220, %p221
      %p223 = scmp.ne.s32.totalorder %s211, %s212
      %p224 = scmp.eq.s32.totalorder %s29, 1
      %p225 = por %p223, %p224
      %p227 = scmp.ne.s32.totalorder %s212, %s226
      %p228 = scmp.eq.s32.totalorder %s29, 0
      %p229 = por %p227, %p228
      %s231 = sadd.s32 %s230, 1
      %p234 = scmp.eq.s32.totalorder %s23, 1
      %p235 = scmp.ne.s32.totalorder %s230, %s232
      %p236 = scmp.eq.s32.totalorder %s23, 0
      %p237 = por %p235, %p236
      %p238 = scmp.ne.s32.totalorder %s230, %s232
      %p239 = scmp.eq.s32.totalorder %s28, 1
      %p240 = por %p238, %p239
      %p241 = scmp.ne.s32.totalorder %s232, %s233
      %p242 = scmp.eq.s32.totalorder %s28, 0
      %p243 = por %p241, %p242
      %p244 = scmp.ne.s32.totalorder %s232, %s233
      %p245 = scmp.eq.s32.totalorder %s29, 1
      %p246 = por %p244, %p245
      %p248 = scmp.ne.s32.totalorder %s233, %s247
      %p249 = scmp.eq.s32.totalorder %s29, 0
      %p250 = por %p248, %p249
      %s252 = sadd.s32 %s251, 1
      %p255 = scmp.eq.s32.totalorder %s23, 1
      %p256 = scmp.ne.s32.totalorder %s251, %s253
      %p257 = scmp.eq.s32.totalorder %s23, 0
      %p258 = por %p256, %p257
      %p259 = scmp.ne.s32.totalorder %s251, %s253
      %p260 = scmp.eq.s32.totalorder %s28, 1
      %p261 = por %p259, %p260
      %p262 = scmp.ne.s32.totalorder %s253, %s254
      %p263 = scmp.eq.s32.totalorder %s28, 0
      %p264 = por %p262, %p263
      %p265 = scmp.ne.s32.totalorder %s253, %s254
      %p266 = scmp.eq.s32.totalorder %s29, 1
      %p267 = por %p265, %p266
      %p269 = scmp.ne.s32.totalorder %s254, %s268
      %p270 = scmp.eq.s32.totalorder %s29, 0
      %p271 = por %p269, %p270
      %s273 = sadd.s32 %s272, 1
      %p276 = scmp.eq.s32.totalorder %s23, 1
      %p277 = scmp.ne.s32.totalorder %s272, %s274
      %p278 = scmp.eq.s32.totalorder %s23, 0
      %p279 = por %p277, %p278
      %p280 = scmp.ne.s32.totalorder %s272, %s274
      %p281 = scmp.eq.s32.totalorder %s28, 1
      %p282 = por %p280, %p281
      %p283 = scmp.ne.s32.totalorder %s274, %s275
      %p284 = scmp.eq.s32.totalorder %s28, 0
      %p285 = por %p283, %p284
      %p286 = scmp.ne.s32.totalorder %s274, %s275
      %p287 = scmp.eq.s32.totalorder %s29, 1
      %p288 = por %p286, %p287
      %p290 = scmp.ne.s32.totalorder %s275, %s289
      %p291 = scmp.eq.s32.totalorder %s29, 0
      %p292 = por %p290, %p291
      %s294 = sadd.s32 %s293, 1
      %p297 = scmp.eq.s32.totalorder %s23, 1
      %p298 = scmp.ne.s32.totalorder %s293, %s295
      %p299 = scmp.eq.s32.totalorder %s23, 0
      %p300 = por %p298, %p299
      %p301 = scmp.ne.s32.totalorder %s293, %s295
      %p302 = scmp.eq.s32.totalorder %s28, 1
      %p303 = por %p301, %p302
      %p304 = scmp.ne.s32.totalorder %s295, %s296
      %p305 = scmp.eq.s32.totalorder %s28, 0
      %p306 = por %p304, %p305
      %p307 = scmp.ne.s32.totalorder %s295, %s296
      %p308 = scmp.eq.s32.totalorder %s29, 1
      %p309 = por %p307, %p308
      %p311 = scmp.ne.s32.totalorder %s296, %s310
      %p312 = scmp.eq.s32.totalorder %s29, 0
      %p313 = por %p311, %p312
      %s315 = sadd.s32 %s314, 1
      %p318 = scmp.eq.s32.totalorder %s23, 1
      %p319 = scmp.ne.s32.totalorder %s314, %s316
      %p320 = scmp.eq.s32.totalorder %s23, 0
      %p321 = por %p319, %p320
      %p322 = scmp.ne.s32.totalorder %s314, %s316
      %p323 = scmp.eq.s32.totalorder %s28, 1
      %p324 = por %p322, %p323
      %p325 = scmp.ne.s32.totalorder %s316, %s317
      %p326 = scmp.eq.s32.totalorder %s28, 0
      %p327 = por %p325, %p326
      %p328 = scmp.ne.s32.totalorder %s316, %s317
      %p329 = scmp.eq.s32.totalorder %s29, 1
      %p330 = por %p328, %p329
      %p332 = scmp.ne.s32.totalorder %s317, %s331
      %p333 = scmp.eq.s32.totalorder %s29, 0
      %p334 = por %p332, %p333
      %s335 = ssub.s32 %s23, %s30
      %p336 = scmp.eq.s32.totalorder %s335, 0
      %s338 = sadd.s32 %s337, 1
      %s339 = scalar_select %p336, %s337, %s338
      %p342 = pneg %p336
      %p343 = scmp.eq.s32.totalorder %s23, 1
      %p344 = por %p342, %p343
      %p345 = scmp.ne.s32.totalorder %s337, %s340
      %p346 = scmp.eq.s32.totalorder %s23, 0
      %p347 = por %p345, %p346
      %p348 = scmp.ne.s32.totalorder %s337, %s340
      %p349 = scmp.eq.s32.totalorder %s28, 1
      %p350 = por %p348, %p349
      %p351 = scmp.ne.s32.totalorder %s340, %s341
      %p352 = scmp.eq.s32.totalorder %s28, 0
      %p353 = por %p351, %p352
      %p354 = scmp.ne.s32.totalorder %s340, %s341
      %p355 = scmp.eq.s32.totalorder %s29, 1
      %p356 = por %p354, %p355
      %p358 = scmp.ne.s32.totalorder %s341, %s357
      %p359 = scmp.eq.s32.totalorder %s29, 0
      %p360 = por %p358, %p359
      %p361 = scmp.le.s32.totalorder 1, %s23
      %p362 = scmp.lt.s32.totalorder %s23, 3
      %p363 = pnand %p361, %p362
      %p364 = pneg %p363
      // Predicated region
      $region9: #{momo_share_layer.1} parent=5 // pred_check
        _
      $region10: #{momo_share_layer.1} parent=5 // pred_check_branch
        %366 = sbr.rel (%p363) target = $region12
      $region11: #{momo_share_layer.1} parent=5 // pred_region
        %s367 = ssub.s32 %s23, 1
        // Predicated region
        $region13: #{momo_share_layer.1} parent=11 // pred_check
          %p368 = pneg %p96
        $region14: #{momo_share_layer.1} parent=11 // pred_check_branch
          %370 = sbr.rel (%p368) target = $region16
        $region15: #{momo_share_layer.1} parent=11 // pred_region
          _
        $region16: #{momo_share_layer.1} parent=11 // pred_fallthru
          _
        // Predicated region
        $region17: #{momo_share_layer.1} parent=11 // pred_check
          %p371 = pneg %p117
        $region18: #{momo_share_layer.1} parent=11 // pred_check_branch
          %373 = sbr.rel (%p371) target = $region20
        $region19: #{momo_share_layer.1} parent=11 // pred_region
          _
        $region20: #{momo_share_layer.1} parent=11 // pred_fallthru
          _
        // Predicated region
        $region21: #{momo_share_layer.1} parent=11 // pred_check
          %p374 = pneg %p138
        $region22: #{momo_share_layer.1} parent=11 // pred_check_branch
          %376 = sbr.rel (%p374) target = $region24
        $region23: #{momo_share_layer.1} parent=11 // pred_region
          _
        $region24: #{momo_share_layer.1} parent=11 // pred_fallthru
          _
        // Predicated region
        $region25: #{momo_share_layer.1} parent=11 // pred_check
          %p377 = pneg %p159
        $region26: #{momo_share_layer.1} parent=11 // pred_check_branch
          %379 = sbr.rel (%p377) target = $region28
        $region27: #{momo_share_layer.1} parent=11 // pred_region
          _
        $region28: #{momo_share_layer.1} parent=11 // pred_fallthru
          _
        // Predicated region
        $region29: #{momo_share_layer.1} parent=11 // pred_check
          %p380 = pneg %p180
        $region30: #{momo_share_layer.1} parent=11 // pred_check_branch
          %382 = sbr.rel (%p380) target = $region32
        $region31: #{momo_share_layer.1} parent=11 // pred_region
          _
        $region32: #{momo_share_layer.1} parent=11 // pred_fallthru
          _
        // Predicated region
        $region33: #{momo_share_layer.1} parent=11 // pred_check
          %p383 = pneg %p201
        $region34: #{momo_share_layer.1} parent=11 // pred_check_branch
          %385 = sbr.rel (%p383) target = $region36
        $region35: #{momo_share_layer.1} parent=11 // pred_region
          _
        $region36: #{momo_share_layer.1} parent=11 // pred_fallthru
          _
        // Predicated region
        $region37: #{momo_share_layer.1} parent=11 // pred_check
          %p386 = pneg %p222
        $region38: #{momo_share_layer.1} parent=11 // pred_check_branch
          %388 = sbr.rel (%p386) target = $region40
        $region39: #{momo_share_layer.1} parent=11 // pred_region
          _
        $region40: #{momo_share_layer.1} parent=11 // pred_fallthru
          _
        // Predicated region
        $region41: #{momo_share_layer.1} parent=11 // pred_check
          %p389 = pneg %p243
        $region42: #{momo_share_layer.1} parent=11 // pred_check_branch
          %391 = sbr.rel (%p389) target = $region44
        $region43: #{momo_share_layer.1} parent=11 // pred_region
          _
        $region44: #{momo_share_layer.1} parent=11 // pred_fallthru
          _
        // Predicated region
        $region45: #{momo_share_layer.1} parent=11 // pred_check
          %p392 = pneg %p264
        $region46: #{momo_share_layer.1} parent=11 // pred_check_branch
          %394 = sbr.rel (%p392) target = $region48
        $region47: #{momo_share_layer.1} parent=11 // pred_region
          _
        $region48: #{momo_share_layer.1} parent=11 // pred_fallthru
          _
        // Predicated region
        $region49: #{momo_share_layer.1} parent=11 // pred_check
          %p395 = pneg %p285
        $region50: #{momo_share_layer.1} parent=11 // pred_check_branch
          %397 = sbr.rel (%p395) target = $region52
        $region51: #{momo_share_layer.1} parent=11 // pred_region
          _
        $region52: #{momo_share_layer.1} parent=11 // pred_fallthru
          _
        // Predicated region
        $region53: #{momo_share_layer.1} parent=11 // pred_check
          %p398 = pneg %p306
        $region54: #{momo_share_layer.1} parent=11 // pred_check_branch
          %400 = sbr.rel (%p398) target = $region56
        $region55: #{momo_share_layer.1} parent=11 // pred_region
          _
        $region56: #{momo_share_layer.1} parent=11 // pred_fallthru
          _
        // Predicated region
        $region57: #{momo_share_layer.1} parent=11 // pred_check
          %p401 = pneg %p327
        $region58: #{momo_share_layer.1} parent=11 // pred_check_branch
          %403 = sbr.rel (%p401) target = $region60
        $region59: #{momo_share_layer.1} parent=11 // pred_region
          _
        $region60: #{momo_share_layer.1} parent=11 // pred_fallthru
          _
      $region12: #{momo_share_layer.1} parent=5 // pred_fallthru
        _
      %p404 = scmp.lt.s32.totalorder %s23, 2
      // Predicated region
      $region61: #{momo_share_layer.1} parent=5 // pred_check
        %p405 = pneg %p404
      $region62: #{momo_share_layer.1} parent=5 // pred_check_branch
        %407 = sbr.rel (%p405) target = $region64
      $region63: #{momo_share_layer.1} parent=5 // pred_region
        // Predicated region
        $region65: #{momo_share_layer.1} parent=63 // pred_check
          %p408 = pneg %p43
        $region66: #{momo_share_layer.1} parent=63 // pred_check_branch
          %410 = sbr.rel (%p408) target = $region68
        $region67: #{momo_share_layer.1} parent=63 // pred_region
          %p411 = scmp.lt.s32.totalorder %s23, 1
          %s412 = scalar_select %p411, %s23, 1
          %s413 = smul.addr %s412, 8
          %s414 = scalar_lea.vmem %s0, %s413
        $region68: #{momo_share_layer.1} parent=63 // pred_fallthru
          _
        // Predicated region
        $region69: #{momo_share_layer.1} parent=63 // pred_check
          %p415 = pneg %p69
        $region70: #{momo_share_layer.1} parent=63 // pred_check_branch
          %417 = sbr.rel (%p415) target = $region72
        $region71: #{momo_share_layer.1} parent=63 // pred_region
          %p418 = scmp.lt.s32.totalorder %s23, 1
          %s419 = scalar_select %p418, %s23, 1
          %s420 = scalar_lea.vmem %s1, %s419
        $region72: #{momo_share_layer.1} parent=63 // pred_fallthru
          _
      $region64: #{momo_share_layer.1} parent=5 // pred_fallthru
        _
      %p421 = scmp.le.s32.totalorder 1, %s23
      %p422 = scmp.lt.s32.totalorder %s23, 3
      %p423 = pnand %p421, %p422
      %p424 = pneg %p423
      // Predicated region
      $region73: #{momo_share_layer.1} parent=5 // pred_check
        _
      $region74: #{momo_share_layer.1} parent=5 // pred_check_branch
        %426 = sbr.rel (%p423) target = $region76
      $region75: #{momo_share_layer.1} parent=5 // pred_region
        %s427 = ssub.s32 %s23, 1
        %p428 = scmp.lt.s32.totalorder %s28, 1
        %s429 = scalar_select %p428, %s28, 1
        %s430 = smul.addr %s429, 8
        %s431 = scalar_lea.vmem %s0, %s430
        %p432 = pneg %p49
        %p433 = pneg %p46
        %p434 = scmp.lt.s32.totalorder %s28, 1
        %s435 = scalar_select %p434, %s28, 1
        %s436 = scalar_lea.vmem %s1, %s435
        %p437 = pneg %p75
        %p438 = pneg %p72
        %p439 = pneg %p96
        %p440 = pneg %p93
        %p441 = pneg %p117
        %p442 = pneg %p114
        %p443 = pneg %p138
        %p444 = pneg %p135
        %p445 = pneg %p159
        %p446 = pneg %p156
        %p447 = pneg %p180
        %p448 = pneg %p177
        %p449 = pneg %p201
        %p450 = pneg %p198
        %p451 = pneg %p222
        %p452 = pneg %p219
        %p453 = pneg %p243
        %p454 = pneg %p240
        %p455 = pneg %p264
        %p456 = pneg %p261
        %p457 = pneg %p285
        %p458 = pneg %p282
        %p459 = pneg %p306
        %p460 = pneg %p303
        %p461 = pneg %p327
        %p462 = pneg %p324
        %p463 = pneg %p353
        %p464 = pneg %p350
        %s465 = sand.u32 %s340, 1
        %s466 = scalar_lea.sflag [#allocation3], %s465
        %s467 = sand.u32 %s340, 1
        %s468 = smul.addr %s467, 8
        %s469 = scalar_lea.vmem [#allocation2], %s468
        %p470 = scmp.lt.s32.totalorder %s28, 1
        %s471 = scalar_select %p470, %s28, 1
        %s472 = smul.addr %s471, 8
        %s473 = scalar_lea.vmem %s0, %s472
        %p474 = scmp.lt.s32.totalorder %s28, 1
        %s475 = scalar_select %p474, %s28, 1
        %s476 = scalar_lea.vmem %s1, %s475
        %v477 = vld [vmem:[%s473] sm:$0xff]
        %v478 = vld [vmem:[%s476] sm:$0x1]
        %v479 = vld [vmem:[%s2] sm:$0xff]
        %v480 = vld [vmem:[%s2 + $0x8] sm:$0xff]
        %v481 = vld [vmem:[%s2 + $0x10] sm:$0xff]
        %v482 = vld [vmem:[%s2 + $0x18] sm:$0xff]
        %v483 = vld [vmem:[%s2 + $0x20] sm:$0xff]
        %v484 = vld [vmem:[%s2 + $0x28] sm:$0xff]
        %v485 = vld [vmem:[%s2 + $0x30] sm:$0xff]
        %v486 = vld [vmem:[%s2 + $0x38] sm:$0xff]
        %v487 = vld [vmem:[%s3] sm:$0x3]
        %v489 = vlaneseq
        %v490 = vshrl.u32 %v489, 7
        %v491 = vsub.s32 0, %v490
        %v492 = vrot.slane %v487, %v491
        %v493 = vlaneseq
        %v494 = vshrl.u32 %v493, 7
        %v495 = vsub.s32 1, %v494
        %v496 = vrot.slane %v487, %v495
        %vm499 = vcmask 261120
        %v501 = vsel %vm499, %v477, 0
        %503 = vmatprep.subr.mxu0 %v480
        %504 = vmatpush1.msra.mxu0 %v479
        %505 = vmatprep.subr.mxu0 %v482
        %506 = vmatpush1.msra.mxu0 %v481
        %507 = vmatprep.subr.mxu0 %v484
        %508 = vmatpush1.msra.mxu0 %v483
        %509 = vmatprep.subr.mxu0 %v486
        %510 = vmatpush1.msra.mxu0 %v485
        %511 = vmatprep.subr.mxu0 0.0
        %512 = vmatpush1.msra.mxu0 0.0
        %513 = vmatprep.subr.mxu0 0.0
        %514 = vmatpush1.msra.mxu0 0.0
        %515 = vmatprep.subr.mxu0 0.0
        %516 = vmatpush1.msra.mxu0 0.0
        %517 = vmatprep.subr.mxu0 0.0
        %518 = vmatpush1.msra.mxu0 0.0
        %519 = vmatprep.subr.mxu0 0.0
        %520 = vmatpush1.msra.mxu0 0.0
        %521 = vmatprep.subr.mxu0 0.0
        %522 = vmatpush1.msra.mxu0 0.0
        %523 = vmatprep.subr.mxu0 0.0
        %524 = vmatpush1.msra.mxu0 0.0
        %525 = vmatprep.subr.mxu0 0.0
        %526 = vmatpush1.msra.mxu0 0.0
        %527 = vmatprep.subr.mxu0 0.0
        %528 = vmatpush1.msra.mxu0 0.0
        %529 = vmatprep.subr.mxu0 0.0
        %530 = vmatpush1.msra.mxu0 0.0
        %531 = vmatprep.subr.mxu0 0.0
        %532 = vmatpush1.msra.mxu0 0.0
        %533 = vmatprep.subr.mxu0 0.0
        %534 = vmatpush1.msra.mxu0 0.0
        %535 = vmatprep.subr.mxu0 0.0
        %536 = vmatpush1.msra.mxu0 0.0
        %537 = vmatprep.subr.mxu0 0.0
        %538 = vmatpush1.msra.mxu0 0.0
        %539 = vmatprep.subr.mxu0 0.0
        %540 = vmatpush1.msra.mxu0 0.0
        %541 = vmatprep.subr.mxu0 0.0
        %542 = vmatpush1.msra.mxu0 0.0
        %543 = vmatprep.subr.mxu0 0.0
        %544 = vmatpush1.msra.mxu0 0.0
        %545 = vmatprep.subr.mxu0 0.0
        %546 = vmatpush1.msra.mxu0 0.0
        %547 = vmatprep.subr.mxu0 0.0
        %548 = vmatpush1.msra.mxu0 0.0
        %549 = vmatprep.subr.mxu0 0.0
        %550 = vmatpush1.msra.mxu0 0.0
        %551 = vmatprep.subr.mxu0 0.0
        %552 = vmatpush1.msra.mxu0 0.0
        %553 = vmatprep.subr.mxu0 0.0
        %554 = vmatpush1.msra.mxu0 0.0
        %555 = vmatprep.subr.mxu0 0.0
        %556 = vmatpush1.msra.mxu0 0.0
        %557 = vmatprep.subr.mxu0 0.0
        %558 = vmatpush1.msra.mxu0 0.0
        %559 = vmatprep.subr.mxu0 0.0
        %560 = vmatpush1.msra.mxu0 0.0
        %561 = vmatprep.subr.mxu0 0.0
        %562 = vmatpush1.msra.mxu0 0.0
        %563 = vmatprep.subr.mxu0 0.0
        %564 = vmatpush1.msra.mxu0 0.0
        %565 = vmatprep.subr.mxu0 0.0
        %566 = vmatpush1.msra.mxu0 0.0
        %567 = vmatprep.mubr.f32.mxu0 0.0
        %568 = vmatmul.mubr.f32.gmra.mrb[0].mxu0 %v501
        %v569 = vpop.f32.mrb[0].mxu0
        %v570 = vadd.f32 %v492, %v569
        %v571 = vpop.f32.mrb[0].mxu0
        %v572 = vadd.f32 %v496, %v571
        %573 = vdwg.mxu0
        %v574 = vld [vmem:[%s4] sm:$0xff]
        %v575 = vld [vmem:[%s4 + $0x8] sm:$0xff]
        %v576 = vld [vmem:[%s4 + $0x10] sm:$0xff]
        %v577 = vld [vmem:[%s4 + $0x18] sm:$0xff]
        %579 = vrot.lane.b32.xlu0 %v570, 96
        %v580 = vpop.permute.xlu0 %579
        %vm581 = vcmask 64512
        %v582 = vsel %vm581, %v570, 0
        %v584 = vsel %vm581, %v580, 0
        %586 = vmatprep.subr.mxu0 0.0
        %587 = vmatpush1.xpose.msra.mxu0 %v584
        %588 = vmatprep.subr.mxu0 0.0
        %589 = vmatpush1.xpose.msra.mxu0 0.0
        %590 = vmatprep.subr.mxu0 0.0
        %591 = vmatpush1.xpose.msra.mxu0 0.0
        %592 = vmatprep.subr.mxu0 0.0
        %593 = vmatpush1.xpose.msra.mxu0 0.0
        %594 = vmatprep.subr.mxu0 0.0
        %595 = vmatpush1.xpose.msra.mxu0 0.0
        %596 = vmatprep.subr.mxu0 0.0
        %597 = vmatpush1.xpose.msra.mxu0 0.0
        %598 = vmatprep.subr.mxu0 0.0
        %599 = vmatpush1.xpose.msra.mxu0 0.0
        %600 = vmatprep.subr.mxu0 0.0
        %601 = vmatpush1.xpose.msra.mxu0 0.0
        %602 = vmatprep.subr.mxu0 0.0
        %603 = vmatpush1.xpose.msra.mxu0 0.0
        %604 = vmatprep.subr.mxu0 0.0
        %605 = vmatpush1.xpose.msra.mxu0 0.0
        %606 = vmatprep.subr.mxu0 0.0
        %607 = vmatpush1.xpose.msra.mxu0 0.0
        %608 = vmatprep.subr.mxu0 0.0
        %609 = vmatpush1.xpose.msra.mxu0 0.0
        %610 = vmatprep.subr.mxu0 0.0
        %611 = vmatpush1.xpose.msra.mxu0 0.0
        %612 = vmatprep.subr.mxu0 0.0
        %613 = vmatpush1.xpose.msra.mxu0 0.0
        %614 = vmatprep.subr.mxu0 0.0
        %615 = vmatpush1.xpose.msra.mxu0 0.0
        %616 = vmatprep.subr.mxu0 0.0
        %617 = vmatpush1.xpose.msra.mxu0 0.0
        %618 = vmatprep.subr.mxu0 0.0
        %619 = vmatpush1.xpose.msra.mxu0 0.0
        %620 = vmatprep.subr.mxu0 0.0
        %621 = vmatpush1.xpose.msra.mxu0 0.0
        %622 = vmatprep.subr.mxu0 0.0
        %623 = vmatpush1.xpose.msra.mxu0 0.0
        %624 = vmatprep.subr.mxu0 0.0
        %625 = vmatpush1.xpose.msra.mxu0 0.0
        %626 = vmatprep.subr.mxu0 0.0
        %627 = vmatpush1.xpose.msra.mxu0 0.0
        %628 = vmatprep.subr.mxu0 0.0
        %629 = vmatpush1.xpose.msra.mxu0 0.0
        %630 = vmatprep.subr.mxu0 0.0
        %631 = vmatpush1.xpose.msra.mxu0 0.0
        %632 = vmatprep.subr.mxu0 0.0
        %633 = vmatpush1.xpose.msra.mxu0 0.0
        %634 = vmatprep.subr.mxu0 0.0
        %635 = vmatpush1.xpose.msra.mxu0 0.0
        %636 = vmatprep.subr.mxu0 0.0
        %637 = vmatpush1.xpose.msra.mxu0 0.0
        %638 = vmatprep.subr.mxu0 0.0
        %639 = vmatpush1.xpose.msra.mxu0 0.0
        %640 = vmatprep.subr.mxu0 0.0
        %641 = vmatpush1.xpose.msra.mxu0 0.0
        %642 = vmatprep.subr.mxu0 0.0
        %643 = vmatpush1.xpose.msra.mxu0 0.0
        %644 = vmatprep.subr.mxu0 0.0
        %645 = vmatpush1.xpose.msra.mxu0 0.0
        %646 = vmatprep.subr.mxu0 0.0
        %647 = vmatpush1.xpose.msra.mxu0 0.0
        %648 = vmatprep.subr.mxu0 0.0
        %649 = vmatpush1.xpose.msra.mxu0 0.0
        %650 = vmatprep.mubr.f32.mxu0 0.0
        %651 = vmatmul.mubr.f32.gmra.mrb[0].mxu0 %v582
        %v652 = vpop.f32.mrb[0].mxu0
        %v653 = vadd.f32 0.0, %v652
        %v654 = vpop.f32.mrb[0].mxu0
        %655 = vdwg.mxu0
        %v656 = vmul.f32 %v653, 0.35355338
        %v658 = vlaneseq
        %v659 = vshrl.u32 %v658, 7
        %v660 = vsub.s32 0, %v659
        %v661 = vrot.slane %v478, %v660
        %v663 = vadd.f32 %v656, %v661
        %v664 = vsel %vm581, %v663, -inf
        %665 = vmax.xlane.f32.xlu0 %v664
        %v666 = vpop.xlane.xlu0 %665
        %v667 = vsub.f32 %v663, %v666
        %v668 = vmul.f32 %v667, 1.442695
        %v669 = vpow.pop %v668
        %v670 = vsel %vm581, %v669, 0.0
        %671 = vadd.xlane.f32.xlu0 %v670
        %v672 = vpop.xlane.xlu0 %671
        %v673 = vrcp.pop %v672
        %v674 = vmul.f32 %v669, %v673
        %675 = vrot.lane.b32.xlu0 %v570, 64
        %v676 = vpop.permute.xlu0 %675
        %v679 = vsel %vm581, %v674, 0
        %681 = vmatprep.subr.mxu0 0.0
        %682 = vmatpush1.msra.mxu0 %v676
        %683 = vmatprep.subr.mxu0 0.0
        %684 = vmatpush1.msra.mxu0 0.0
        %685 = vmatprep.subr.mxu0 0.0
        %686 = vmatpush1.msra.mxu0 0.0
        %687 = vmatprep.subr.mxu0 0.0
        %688 = vmatpush1.msra.mxu0 0.0
        %689 = vmatprep.subr.mxu0 0.0
        %690 = vmatpush1.msra.mxu0 0.0
        %691 = vmatprep.subr.mxu0 0.0
        %692 = vmatpush1.msra.mxu0 0.0
        %693 = vmatprep.subr.mxu0 0.0
        %694 = vmatpush1.msra.mxu0 0.0
        %695 = vmatprep.subr.mxu0 0.0
        %696 = vmatpush1.msra.mxu0 0.0
        %697 = vmatprep.subr.mxu0 0.0
        %698 = vmatpush1.msra.mxu0 0.0
        %699 = vmatprep.subr.mxu0 0.0
        %700 = vmatpush1.msra.mxu0 0.0
        %701 = vmatprep.subr.mxu0 0.0
        %702 = vmatpush1.msra.mxu0 0.0
        %703 = vmatprep.subr.mxu0 0.0
        %704 = vmatpush1.msra.mxu0 0.0
        %705 = vmatprep.subr.mxu0 0.0
        %706 = vmatpush1.msra.mxu0 0.0
        %707 = vmatprep.subr.mxu0 0.0
        %708 = vmatpush1.msra.mxu0 0.0
        %709 = vmatprep.subr.mxu0 0.0
        %710 = vmatpush1.msra.mxu0 0.0
        %711 = vmatprep.subr.mxu0 0.0
        %712 = vmatpush1.msra.mxu0 0.0
        %713 = vmatprep.subr.mxu0 0.0
        %714 = vmatpush1.msra.mxu0 0.0
        %715 = vmatprep.subr.mxu0 0.0
        %716 = vmatpush1.msra.mxu0 0.0
        %717 = vmatprep.subr.mxu0 0.0
        %718 = vmatpush1.msra.mxu0 0.0
        %719 = vmatprep.subr.mxu0 0.0
        %720 = vmatpush1.msra.mxu0 0.0
        %721 = vmatprep.subr.mxu0 0.0
        %722 = vmatpush1.msra.mxu0 0.0
        %723 = vmatprep.subr.mxu0 0.0
        %724 = vmatpush1.msra.mxu0 0.0
        %725 = vmatprep.subr.mxu0 0.0
        %726 = vmatpush1.msra.mxu0 0.0
        %727 = vmatprep.subr.mxu0 0.0
        %728 = vmatpush1.msra.mxu0 0.0
        %729 = vmatprep.subr.mxu0 0.0
        %730 = vmatpush1.msra.mxu0 0.0
        %731 = vmatprep.subr.mxu0 0.0
        %732 = vmatpush1.msra.mxu0 0.0
        %733 = vmatprep.subr.mxu0 0.0
        %734 = vmatpush1.msra.mxu0 0.0
        %735 = vmatprep.subr.mxu0 0.0
        %736 = vmatpush1.msra.mxu0 0.0
        %737 = vmatprep.subr.mxu0 0.0
        %738 = vmatpush1.msra.mxu0 0.0
        %739 = vmatprep.subr.mxu0 0.0
        %740 = vmatpush1.msra.mxu0 0.0
        %741 = vmatprep.subr.mxu0 0.0
        %742 = vmatpush1.msra.mxu0 0.0
        %743 = vmatprep.subr.mxu0 0.0
        %744 = vmatpush1.msra.mxu0 0.0
        %745 = vmatprep.mubr.f32.mxu0 0.0
        %746 = vmatmul.mubr.f32.gmra.mrb[0].mxu0 %v679
        %v747 = vpop.f32.mrb[0].mxu0
        %v748 = vadd.f32 0.0, %v747
        %v749 = vpop.f32.mrb[0].mxu0
        %750 = vdwg.mxu0
        %751 = vrot.lane.b32.xlu0 %v570, 120
        %v752 = vpop.permute.xlu0 %751
        %753 = vrot.lane.b32.xlu0 %v570, 88
        %v754 = vpop.permute.xlu0 %753
        %v755 = vsel %vm581, %v752, 0
        %v757 = vsel %vm581, %v754, 0
        %759 = vmatprep.subr.mxu0 0.0
        %760 = vmatpush1.xpose.msra.mxu0 %v757
        %761 = vmatprep.subr.mxu0 0.0
        %762 = vmatpush1.xpose.msra.mxu0 0.0
        %763 = vmatprep.subr.mxu0 0.0
        %764 = vmatpush1.xpose.msra.mxu0 0.0
        %765 = vmatprep.subr.mxu0 0.0
        %766 = vmatpush1.xpose.msra.mxu0 0.0
        %767 = vmatprep.subr.mxu0 0.0
        %768 = vmatpush1.xpose.msra.mxu0 0.0
        %769 = vmatprep.subr.mxu0 0.0
        %770 = vmatpush1.xpose.msra.mxu0 0.0
        %771 = vmatprep.subr.mxu0 0.0
        %772 = vmatpush1.xpose.msra.mxu0 0.0
        %773 = vmatprep.subr.mxu0 0.0
        %774 = vmatpush1.xpose.msra.mxu0 0.0
        %775 = vmatprep.subr.mxu0 0.0
        %776 = vmatpush1.xpose.msra.mxu0 0.0
        %777 = vmatprep.subr.mxu0 0.0
        %778 = vmatpush1.xpose.msra.mxu0 0.0
        %779 = vmatprep.subr.mxu0 0.0
        %780 = vmatpush1.xpose.msra.mxu0 0.0
        %781 = vmatprep.subr.mxu0 0.0
        %782 = vmatpush1.xpose.msra.mxu0 0.0
        %783 = vmatprep.subr.mxu0 0.0
        %784 = vmatpush1.xpose.msra.mxu0 0.0
        %785 = vmatprep.subr.mxu0 0.0
        %786 = vmatpush1.xpose.msra.mxu0 0.0
        %787 = vmatprep.subr.mxu0 0.0
        %788 = vmatpush1.xpose.msra.mxu0 0.0
        %789 = vmatprep.subr.mxu0 0.0
        %790 = vmatpush1.xpose.msra.mxu0 0.0
        %791 = vmatprep.subr.mxu0 0.0
        %792 = vmatpush1.xpose.msra.mxu0 0.0
        %793 = vmatprep.subr.mxu0 0.0
        %794 = vmatpush1.xpose.msra.mxu0 0.0
        %795 = vmatprep.subr.mxu0 0.0
        %796 = vmatpush1.xpose.msra.mxu0 0.0
        %797 = vmatprep.subr.mxu0 0.0
        %798 = vmatpush1.xpose.msra.mxu0 0.0
        %799 = vmatprep.subr.mxu0 0.0
        %800 = vmatpush1.xpose.msra.mxu0 0.0
        %801 = vmatprep.subr.mxu0 0.0
        %802 = vmatpush1.xpose.msra.mxu0 0.0
        %803 = vmatprep.subr.mxu0 0.0
        %804 = vmatpush1.xpose.msra.mxu0 0.0
        %805 = vmatprep.subr.mxu0 0.0
        %806 = vmatpush1.xpose.msra.mxu0 0.0
        %807 = vmatprep.subr.mxu0 0.0
        %808 = vmatpush1.xpose.msra.mxu0 0.0
        %809 = vmatprep.subr.mxu0 0.0
        %810 = vmatpush1.xpose.msra.mxu0 0.0
        %811 = vmatprep.subr.mxu0 0.0
        %812 = vmatpush1.xpose.msra.mxu0 0.0
        %813 = vmatprep.subr.mxu0 0.0
        %814 = vmatpush1.xpose.msra.mxu0 0.0
        %815 = vmatprep.subr.mxu0 0.0
        %816 = vmatpush1.xpose.msra.mxu0 0.0
        %817 = vmatprep.subr.mxu0 0.0
        %818 = vmatpush1.xpose.msra.mxu0 0.0
        %819 = vmatprep.subr.mxu0 0.0
        %820 = vmatpush1.xpose.msra.mxu0 0.0
        %821 = vmatprep.subr.mxu0 0.0
        %822 = vmatpush1.xpose.msra.mxu0 0.0
        %823 = vmatprep.mubr.f32.mxu0 0.0
        %824 = vmatmul.mubr.f32.gmra.mrb[0].mxu0 %v755
        %v825 = vpop.f32.mrb[0].mxu0
        %v826 = vadd.f32 0.0, %v825
        %v827 = vpop.f32.mrb[0].mxu0
        %828 = vdwg.mxu0
        %v829 = vmul.f32 %v826, 0.35355338
        %v830 = vadd.f32 %v829, %v661
        %v831 = vsel %vm581, %v830, -inf
        %832 = vmax.xlane.f32.xlu0 %v831
        %v833 = vpop.xlane.xlu0 %832
        %v834 = vsub.f32 %v830, %v833
        %v835 = vmul.f32 %v834, 1.442695
        %v836 = vpow.pop %v835
        %v837 = vsel %vm581, %v836, 0.0
        %838 = vadd.xlane.f32.xlu0 %v837
        %v839 = vpop.xlane.xlu0 %838
        %v840 = vrcp.pop %v839
        %v841 = vmul.f32 %v836, %v840
        %842 = vrot.lane.b32.xlu0 %v570, 56
        %v843 = vpop.permute.xlu0 %842
        %v846 = vsel %vm581, %v841, 0
        %848 = vmatprep.subr.mxu0 0.0
        %849 = vmatpush1.msra.mxu0 %v843
        %850 = vmatprep.subr.mxu0 0.0
        %851 = vmatpush1.msra.mxu0 0.0
        %852 = vmatprep.subr.mxu0 0.0
        %853 = vmatpush1.msra.mxu0 0.0
        %854 = vmatprep.subr.mxu0 0.0
        %855 = vmatpush1.msra.mxu0 0.0
        %856 = vmatprep.subr.mxu0 0.0
        %857 = vmatpush1.msra.mxu0 0.0
        %858 = vmatprep.subr.mxu0 0.0
        %859 = vmatpush1.msra.mxu0 0.0
        %860 = vmatprep.subr.mxu0 0.0
        %861 = vmatpush1.msra.mxu0 0.0
        %862 = vmatprep.subr.mxu0 0.0
        %863 = vmatpush1.msra.mxu0 0.0
        %864 = vmatprep.subr.mxu0 0.0
        %865 = vmatpush1.msra.mxu0 0.0
        %866 = vmatprep.subr.mxu0 0.0
        %867 = vmatpush1.msra.mxu0 0.0
        %868 = vmatprep.subr.mxu0 0.0
        %869 = vmatpush1.msra.mxu0 0.0
        %870 = vmatprep.subr.mxu0 0.0
        %871 = vmatpush1.msra.mxu0 0.0
        %872 = vmatprep.subr.mxu0 0.0
        %873 = vmatpush1.msra.mxu0 0.0
        %874 = vmatprep.subr.mxu0 0.0
        %875 = vmatpush1.msra.mxu0 0.0
        %876 = vmatprep.subr.mxu0 0.0
        %877 = vmatpush1.msra.mxu0 0.0
        %878 = vmatprep.subr.mxu0 0.0
        %879 = vmatpush1.msra.mxu0 0.0
        %880 = vmatprep.subr.mxu0 0.0
        %881 = vmatpush1.msra.mxu0 0.0
        %882 = vmatprep.subr.mxu0 0.0
        %883 = vmatpush1.msra.mxu0 0.0
        %884 = vmatprep.subr.mxu0 0.0
        %885 = vmatpush1.msra.mxu0 0.0
        %886 = vmatprep.subr.mxu0 0.0
        %887 = vmatpush1.msra.mxu0 0.0
        %888 = vmatprep.subr.mxu0 0.0
        %889 = vmatpush1.msra.mxu0 0.0
        %890 = vmatprep.subr.mxu0 0.0
        %891 = vmatpush1.msra.mxu0 0.0
        %892 = vmatprep.subr.mxu0 0.0
        %893 = vmatpush1.msra.mxu0 0.0
        %894 = vmatprep.subr.mxu0 0.0
        %895 = vmatpush1.msra.mxu0 0.0
        %896 = vmatprep.subr.mxu0 0.0
        %897 = vmatpush1.msra.mxu0 0.0
        %898 = vmatprep.subr.mxu0 0.0
        %899 = vmatpush1.msra.mxu0 0.0
        %900 = vmatprep.subr.mxu0 0.0
        %901 = vmatpush1.msra.mxu0 0.0
        %902 = vmatprep.subr.mxu0 0.0
        %903 = vmatpush1.msra.mxu0 0.0
        %904 = vmatprep.subr.mxu0 0.0
        %905 = vmatpush1.msra.mxu0 0.0
        %906 = vmatprep.subr.mxu0 0.0
        %907 = vmatpush1.msra.mxu0 0.0
        %908 = vmatprep.subr.mxu0 0.0
        %909 = vmatpush1.msra.mxu0 0.0
        %910 = vmatprep.subr.mxu0 0.0
        %911 = vmatpush1.msra.mxu0 0.0
        %912 = vmatprep.mubr.f32.mxu0 0.0
        %913 = vmatmul.mubr.f32.gmra.mrb[0].mxu0 %v846
        %v914 = vpop.f32.mrb[0].mxu0
        %v915 = vadd.f32 0.0, %v914
        %v916 = vpop.f32.mrb[0].mxu0
        %917 = vdwg.mxu0
        %v919 = vsel %vm581, %v915, 0
        %921 = vmatprep.subr.mxu0 0.0
        %922 = vmatpush1.msra.mxu0 %v575
        %923 = vmatprep.subr.mxu0 0.0
        %924 = vmatpush1.msra.mxu0 0.0
        %925 = vmatprep.subr.mxu0 0.0
        %926 = vmatpush1.msra.mxu0 0.0
        %927 = vmatprep.subr.mxu0 0.0
        %928 = vmatpush1.msra.mxu0 0.0
        %929 = vmatprep.subr.mxu0 0.0
        %930 = vmatpush1.msra.mxu0 0.0
        %931 = vmatprep.subr.mxu0 0.0
        %932 = vmatpush1.msra.mxu0 0.0
        %933 = vmatprep.subr.mxu0 0.0
        %934 = vmatpush1.msra.mxu0 0.0
        %935 = vmatprep.subr.mxu0 0.0
        %936 = vmatpush1.msra.mxu0 0.0
        %937 = vmatprep.subr.mxu0 0.0
        %938 = vmatpush1.msra.mxu0 0.0
        %939 = vmatprep.subr.mxu0 0.0
        %940 = vmatpush1.msra.mxu0 0.0
        %941 = vmatprep.subr.mxu0 0.0
        %942 = vmatpush1.msra.mxu0 0.0
        %943 = vmatprep.subr.mxu0 0.0
        %944 = vmatpush1.msra.mxu0 0.0
        %945 = vmatprep.subr.mxu0 0.0
        %946 = vmatpush1.msra.mxu0 0.0
        %947 = vmatprep.subr.mxu0 0.0
        %948 = vmatpush1.msra.mxu0 0.0
        %949 = vmatprep.subr.mxu0 0.0
        %950 = vmatpush1.msra.mxu0 0.0
        %951 = vmatprep.subr.mxu0 0.0
        %952 = vmatpush1.msra.mxu0 0.0
        %953 = vmatprep.subr.mxu0 0.0
        %954 = vmatpush1.msra.mxu0 0.0
        %955 = vmatprep.subr.mxu0 0.0
        %956 = vmatpush1.msra.mxu0 0.0
        %957 = vmatprep.subr.mxu0 0.0
        %958 = vmatpush1.msra.mxu0 0.0
        %959 = vmatprep.subr.mxu0 0.0
        %960 = vmatpush1.msra.mxu0 0.0
        %961 = vmatprep.subr.mxu0 0.0
        %962 = vmatpush1.msra.mxu0 0.0
        %963 = vmatprep.subr.mxu0 0.0
        %964 = vmatpush1.msra.mxu0 0.0
        %965 = vmatprep.subr.mxu0 0.0
        %966 = vmatpush1.msra.mxu0 0.0
        %967 = vmatprep.subr.mxu0 0.0
        %968 = vmatpush1.msra.mxu0 0.0
        %969 = vmatprep.subr.mxu0 0.0
        %970 = vmatpush1.msra.mxu0 0.0
        %971 = vmatprep.subr.mxu0 0.0
        %972 = vmatpush1.msra.mxu0 0.0
        %973 = vmatprep.subr.mxu0 0.0
        %974 = vmatpush1.msra.mxu0 0.0
        %975 = vmatprep.subr.mxu0 0.0
        %976 = vmatpush1.msra.mxu0 0.0
        %977 = vmatprep.subr.mxu0 0.0
        %978 = vmatpush1.msra.mxu0 0.0
        %979 = vmatprep.subr.mxu0 0.0
        %980 = vmatpush1.msra.mxu0 0.0
        %981 = vmatprep.subr.mxu0 0.0
        %982 = vmatpush1.msra.mxu0 0.0
        %983 = vmatprep.subr.mxu0 0.0
        %984 = vmatpush1.msra.mxu0 0.0
        %985 = vmatprep.mubr.f32.mxu0 0.0
        %986 = vmatmul.mubr.f32.gmra.mrb[0].mxu0 %v919
        %v987 = vpop.f32.mrb[0].mxu0
        %v988 = vadd.f32 0.0, %v987
        %v989 = vpop.f32.mrb[0].mxu0
        %990 = vdwg.mxu0
        %v992 = vsel %vm581, %v748, 0
        %994 = vmatprep.subr.mxu0 0.0
        %995 = vmatpush1.msra.mxu0 %v574
        %996 = vmatprep.subr.mxu0 0.0
        %997 = vmatpush1.msra.mxu0 0.0
        %998 = vmatprep.subr.mxu0 0.0
        %999 = vmatpush1.msra.mxu0 0.0
        %1000 = vmatprep.subr.mxu0 0.0
        %1001 = vmatpush1.msra.mxu0 0.0
        %1002 = vmatprep.subr.mxu0 0.0
        %1003 = vmatpush1.msra.mxu0 0.0
        %1004 = vmatprep.subr.mxu0 0.0
        %1005 = vmatpush1.msra.mxu0 0.0
        %1006 = vmatprep.subr.mxu0 0.0
        %1007 = vmatpush1.msra.mxu0 0.0
        %1008 = vmatprep.subr.mxu0 0.0
        %1009 = vmatpush1.msra.mxu0 0.0
        %1010 = vmatprep.subr.mxu0 0.0
        %1011 = vmatpush1.msra.mxu0 0.0
        %1012 = vmatprep.subr.mxu0 0.0
        %1013 = vmatpush1.msra.mxu0 0.0
        %1014 = vmatprep.subr.mxu0 0.0
        %1015 = vmatpush1.msra.mxu0 0.0
        %1016 = vmatprep.subr.mxu0 0.0
        %1017 = vmatpush1.msra.mxu0 0.0
        %1018 = vmatprep.subr.mxu0 0.0
        %1019 = vmatpush1.msra.mxu0 0.0
        %1020 = vmatprep.subr.mxu0 0.0
        %1021 = vmatpush1.msra.mxu0 0.0
        %1022 = vmatprep.subr.mxu0 0.0
        %1023 = vmatpush1.msra.mxu0 0.0
        %1024 = vmatprep.subr.mxu0 0.0
        %1025 = vmatpush1.msra.mxu0 0.0
        %1026 = vmatprep.subr.mxu0 0.0
        %1027 = vmatpush1.msra.mxu0 0.0
        %1028 = vmatprep.subr.mxu0 0.0
        %1029 = vmatpush1.msra.mxu0 0.0
        %1030 = vmatprep.subr.mxu0 0.0
        %1031 = vmatpush1.msra.mxu0 0.0
        %1032 = vmatprep.subr.mxu0 0.0
        %1033 = vmatpush1.msra.mxu0 0.0
        %1034 = vmatprep.subr.mxu0 0.0
        %1035 = vmatpush1.msra.mxu0 0.0
        %1036 = vmatprep.subr.mxu0 0.0
        %1037 = vmatpush1.msra.mxu0 0.0
        %1038 = vmatprep.subr.mxu0 0.0
        %1039 = vmatpush1.msra.mxu0 0.0
        %1040 = vmatprep.subr.mxu0 0.0
        %1041 = vmatpush1.msra.mxu0 0.0
        %1042 = vmatprep.subr.mxu0 0.0
        %1043 = vmatpush1.msra.mxu0 0.0
        %1044 = vmatprep.subr.mxu0 0.0
        %1045 = vmatpush1.msra.mxu0 0.0
        %1046 = vmatprep.subr.mxu0 0.0
        %1047 = vmatpush1.msra.mxu0 0.0
        %1048 = vmatprep.subr.mxu0 0.0
        %1049 = vmatpush1.msra.mxu0 0.0
        %1050 = vmatprep.subr.mxu0 0.0
        %1051 = vmatpush1.msra.mxu0 0.0
        %1052 = vmatprep.subr.mxu0 0.0
        %1053 = vmatpush1.msra.mxu0 0.0
        %1054 = vmatprep.subr.mxu0 0.0
        %1055 = vmatpush1.msra.mxu0 0.0
        %1056 = vmatprep.subr.mxu0 0.0
        %1057 = vmatpush1.msra.mxu0 0.0
        %1058 = vmatprep.mubr.f32.mxu0 0.0
        %1059 = vmatmul.mubr.f32.gmra.mrb[0].mxu0 %v992
        %v1060 = vpop.f32.mrb[0].mxu0
        %v1061 = vadd.f32 %v988, %v1060
        %v1062 = vpop.f32.mrb[0].mxu0
        %1063 = vdwg.mxu0
        %1064 = vrot.lane.b32.xlu0 %v570, 112
        %v1065 = vpop.permute.xlu0 %1064
        %1066 = vrot.lane.b32.xlu0 %v570, 80
        %v1067 = vpop.permute.xlu0 %1066
        %v1068 = vsel %vm581, %v1065, 0
        %v1070 = vsel %vm581, %v1067, 0
        %1072 = vmatprep.subr.mxu0 0.0
        %1073 = vmatpush1.xpose.msra.mxu0 %v1070
        %1074 = vmatprep.subr.mxu0 0.0
        %1075 = vmatpush1.xpose.msra.mxu0 0.0
        %1076 = vmatprep.subr.mxu0 0.0
        %1077 = vmatpush1.xpose.msra.mxu0 0.0
        %1078 = vmatprep.subr.mxu0 0.0
        %1079 = vmatpush1.xpose.msra.mxu0 0.0
        %1080 = vmatprep.subr.mxu0 0.0
        %1081 = vmatpush1.xpose.msra.mxu0 0.0
        %1082 = vmatprep.subr.mxu0 0.0
        %1083 = vmatpush1.xpose.msra.mxu0 0.0
        %1084 = vmatprep.subr.mxu0 0.0
        %1085 = vmatpush1.xpose.msra.mxu0 0.0
        %1086 = vmatprep.subr.mxu0 0.0
        %1087 = vmatpush1.xpose.msra.mxu0 0.0
        %1088 = vmatprep.subr.mxu0 0.0
        %1089 = vmatpush1.xpose.msra.mxu0 0.0
        %1090 = vmatprep.subr.mxu0 0.0
        %1091 = vmatpush1.xpose.msra.mxu0 0.0
        %1092 = vmatprep.subr.mxu0 0.0
        %1093 = vmatpush1.xpose.msra.mxu0 0.0
        %1094 = vmatprep.subr.mxu0 0.0
        %1095 = vmatpush1.xpose.msra.mxu0 0.0
        %1096 = vmatprep.subr.mxu0 0.0
        %1097 = vmatpush1.xpose.msra.mxu0 0.0
        %1098 = vmatprep.subr.mxu0 0.0
        %1099 = vmatpush1.xpose.msra.mxu0 0.0
        %1100 = vmatprep.subr.mxu0 0.0
        %1101 = vmatpush1.xpose.msra.mxu0 0.0
        %1102 = vmatprep.subr.mxu0 0.0
        %1103 = vmatpush1.xpose.msra.mxu0 0.0
        %1104 = vmatprep.subr.mxu0 0.0
        %1105 = vmatpush1.xpose.msra.mxu0 0.0
        %1106 = vmatprep.subr.mxu0 0.0
        %1107 = vmatpush1.xpose.msra.mxu0 0.0
        %1108 = vmatprep.subr.mxu0 0.0
        %1109 = vmatpush1.xpose.msra.mxu0 0.0
        %1110 = vmatprep.subr.mxu0 0.0
        %1111 = vmatpush1.xpose.msra.mxu0 0.0
        %1112 = vmatprep.subr.mxu0 0.0
        %1113 = vmatpush1.xpose.msra.mxu0 0.0
        %1114 = vmatprep.subr.mxu0 0.0
        %1115 = vmatpush1.xpose.msra.mxu0 0.0
        %1116 = vmatprep.subr.mxu0 0.0
        %1117 = vmatpush1.xpose.msra.mxu0 0.0
        %1118 = vmatprep.subr.mxu0 0.0
        %1119 = vmatpush1.xpose.msra.mxu0 0.0
        %1120 = vmatprep.subr.mxu0 0.0
        %1121 = vmatpush1.xpose.msra.mxu0 0.0
        %1122 = vmatprep.subr.mxu0 0.0
        %1123 = vmatpush1.xpose.msra.mxu0 0.0
        %1124 = vmatprep.subr.mxu0 0.0
        %1125 = vmatpush1.xpose.msra.mxu0 0.0
        %1126 = vmatprep.subr.mxu0 0.0
        %1127 = vmatpush1.xpose.msra.mxu0 0.0
        %1128 = vmatprep.subr.mxu0 0.0
        %1129 = vmatpush1.xpose.msra.mxu0 0.0
        %1130 = vmatprep.subr.mxu0 0.0
        %1131 = vmatpush1.xpose.msra.mxu0 0.0
        %1132 = vmatprep.subr.mxu0 0.0
        %1133 = vmatpush1.xpose.msra.mxu0 0.0
        %1134 = vmatprep.subr.mxu0 0.0
        %1135 = vmatpush1.xpose.msra.mxu0 0.0
        %1136 = vmatprep.mubr.f32.mxu0 0.0
        %1137 = vmatmul.mubr.f32.gmra.mrb[0].mxu0 %v1068
        %v1138 = vpop.f32.mrb[0].mxu0
        %v1139 = vadd.f32 0.0, %v1138
        %v1140 = vpop.f32.mrb[0].mxu0
        %1141 = vdwg.mxu0
        %v1142 = vmul.f32 %v1139, 0.35355338
        %v1143 = vadd.f32 %v1142, %v661
        %v1144 = vsel %vm581, %v1143, -inf
        %1145 = vmax.xlane.f32.xlu0 %v1144
        %v1146 = vpop.xlane.xlu0 %1145
        %v1147 = vsub.f32 %v1143, %v1146
        %v1148 = vmul.f32 %v1147, 1.442695
        %v1149 = vpow.pop %v1148
        %v1150 = vsel %vm581, %v1149, 0.0
        %1151 = vadd.xlane.f32.xlu0 %v1150
        %v1152 = vpop.xlane.xlu0 %1151
        %v1153 = vrcp.pop %v1152
        %v1154 = vmul.f32 %v1149, %v1153
        %1155 = vrot.lane.b32.xlu0 %v570, 48
        %v1156 = vpop.permute.xlu0 %1155
        %v1159 = vsel %vm581, %v1154, 0
        %1161 = vmatprep.subr.mxu0 0.0
        %1162 = vmatpush1.msra.mxu0 %v1156
        %1163 = vmatprep.subr.mxu0 0.0
        %1164 = vmatpush1.msra.mxu0 0.0
        %1165 = vmatprep.subr.mxu0 0.0
        %1166 = vmatpush1.msra.mxu0 0.0
        %1167 = vmatprep.subr.mxu0 0.0
        %1168 = vmatpush1.msra.mxu0 0.0
        %1169 = vmatprep.subr.mxu0 0.0
        %1170 = vmatpush1.msra.mxu0 0.0
        %1171 = vmatprep.subr.mxu0 0.0
        %1172 = vmatpush1.msra.mxu0 0.0
        %1173 = vmatprep.subr.mxu0 0.0
        %1174 = vmatpush1.msra.mxu0 0.0
        %1175 = vmatprep.subr.mxu0 0.0
        %1176 = vmatpush1.msra.mxu0 0.0
        %1177 = vmatprep.subr.mxu0 0.0
        %1178 = vmatpush1.msra.mxu0 0.0
        %1179 = vmatprep.subr.mxu0 0.0
        %1180 = vmatpush1.msra.mxu0 0.0
        %1181 = vmatprep.subr.mxu0 0.0
        %1182 = vmatpush1.msra.mxu0 0.0
        %1183 = vmatprep.subr.mxu0 0.0
        %1184 = vmatpush1.msra.mxu0 0.0
        %1185 = vmatprep.subr.mxu0 0.0
        %1186 = vmatpush1.msra.mxu0 0.0
        %1187 = vmatprep.subr.mxu0 0.0
        %1188 = vmatpush1.msra.mxu0 0.0
        %1189 = vmatprep.subr.mxu0 0.0
        %1190 = vmatpush1.msra.mxu0 0.0
        %1191 = vmatprep.subr.mxu0 0.0
        %1192 = vmatpush1.msra.mxu0 0.0
        %1193 = vmatprep.subr.mxu0 0.0
        %1194 = vmatpush1.msra.mxu0 0.0
        %1195 = vmatprep.subr.mxu0 0.0
        %1196 = vmatpush1.msra.mxu0 0.0
        %1197 = vmatprep.subr.mxu0 0.0
        %1198 = vmatpush1.msra.mxu0 0.0
        %1199 = vmatprep.subr.mxu0 0.0
        %1200 = vmatpush1.msra.mxu0 0.0
        %1201 = vmatprep.subr.mxu0 0.0
        %1202 = vmatpush1.msra.mxu0 0.0
        %1203 = vmatprep.subr.mxu0 0.0
        %1204 = vmatpush1.msra.mxu0 0.0
        %1205 = vmatprep.subr.mxu0 0.0
        %1206 = vmatpush1.msra.mxu0 0.0
        %1207 = vmatprep.subr.mxu0 0.0
        %1208 = vmatpush1.msra.mxu0 0.0
        %1209 = vmatprep.subr.mxu0 0.0
        %1210 = vmatpush1.msra.mxu0 0.0
        %1211 = vmatprep.subr.mxu0 0.0
        %1212 = vmatpush1.msra.mxu0 0.0
        %1213 = vmatprep.subr.mxu0 0.0
        %1214 = vmatpush1.msra.mxu0 0.0
        %1215 = vmatprep.subr.mxu0 0.0
        %1216 = vmatpush1.msra.mxu0 0.0
        %1217 = vmatprep.subr.mxu0 0.0
        %1218 = vmatpush1.msra.mxu0 0.0
        %1219 = vmatprep.subr.mxu0 0.0
        %1220 = vmatpush1.msra.mxu0 0.0
        %1221 = vmatprep.subr.mxu0 0.0
        %1222 = vmatpush1.msra.mxu0 0.0
        %1223 = vmatprep.subr.mxu0 0.0
        %1224 = vmatpush1.msra.mxu0 0.0
        %1225 = vmatprep.mubr.f32.mxu0 0.0
        %1226 = vmatmul.mubr.f32.gmra.mrb[0].mxu0 %v1159
        %v1227 = vpop.f32.mrb[0].mxu0
        %v1228 = vadd.f32 0.0, %v1227
        %v1229 = vpop.f32.mrb[0].mxu0
        %1230 = vdwg.mxu0
        %v1232 = vsel %vm581, %v1228, 0
        %1234 = vmatprep.subr.mxu0 0.0
        %1235 = vmatpush1.msra.mxu0 %v576
        %1236 = vmatprep.subr.mxu0 0.0
        %1237 = vmatpush1.msra.mxu0 0.0
        %1238 = vmatprep.subr.mxu0 0.0
        %1239 = vmatpush1.msra.mxu0 0.0
        %1240 = vmatprep.subr.mxu0 0.0
        %1241 = vmatpush1.msra.mxu0 0.0
        %1242 = vmatprep.subr.mxu0 0.0
        %1243 = vmatpush1.msra.mxu0 0.0
        %1244 = vmatprep.subr.mxu0 0.0
        %1245 = vmatpush1.msra.mxu0 0.0
        %1246 = vmatprep.subr.mxu0 0.0
        %1247 = vmatpush1.msra.mxu0 0.0
        %1248 = vmatprep.subr.mxu0 0.0
        %1249 = vmatpush1.msra.mxu0 0.0
        %1250 = vmatprep.subr.mxu0 0.0
        %1251 = vmatpush1.msra.mxu0 0.0
        %1252 = vmatprep.subr.mxu0 0.0
        %1253 = vmatpush1.msra.mxu0 0.0
        %1254 = vmatprep.subr.mxu0 0.0
        %1255 = vmatpush1.msra.mxu0 0.0
        %1256 = vmatprep.subr.mxu0 0.0
        %1257 = vmatpush1.msra.mxu0 0.0
        %1258 = vmatprep.subr.mxu0 0.0
        %1259 = vmatpush1.msra.mxu0 0.0
        %1260 = vmatprep.subr.mxu0 0.0
        %1261 = vmatpush1.msra.mxu0 0.0
        %1262 = vmatprep.subr.mxu0 0.0
        %1263 = vmatpush1.msra.mxu0 0.0
        %1264 = vmatprep.subr.mxu0 0.0
        %1265 = vmatpush1.msra.mxu0 0.0
        %1266 = vmatprep.subr.mxu0 0.0
        %1267 = vmatpush1.msra.mxu0 0.0
        %1268 = vmatprep.subr.mxu0 0.0
        %1269 = vmatpush1.msra.mxu0 0.0
        %1270 = vmatprep.subr.mxu0 0.0
        %1271 = vmatpush1.msra.mxu0 0.0
        %1272 = vmatprep.subr.mxu0 0.0
        %1273 = vmatpush1.msra.mxu0 0.0
        %1274 = vmatprep.subr.mxu0 0.0
        %1275 = vmatpush1.msra.mxu0 0.0
        %1276 = vmatprep.subr.mxu0 0.0
        %1277 = vmatpush1.msra.mxu0 0.0
        %1278 = vmatprep.subr.mxu0 0.0
        %1279 = vmatpush1.msra.mxu0 0.0
        %1280 = vmatprep.subr.mxu0 0.0
        %1281 = vmatpush1.msra.mxu0 0.0
        %1282 = vmatprep.subr.mxu0 0.0
        %1283 = vmatpush1.msra.mxu0 0.0
        %1284 = vmatprep.subr.mxu0 0.0
        %1285 = vmatpush1.msra.mxu0 0.0
        %1286 = vmatprep.subr.mxu0 0.0
        %1287 = vmatpush1.msra.mxu0 0.0
        %1288 = vmatprep.subr.mxu0 0.0
        %1289 = vmatpush1.msra.mxu0 0.0
        %1290 = vmatprep.subr.mxu0 0.0
        %1291 = vmatpush1.msra.mxu0 0.0
        %1292 = vmatprep.subr.mxu0 0.0
        %1293 = vmatpush1.msra.mxu0 0.0
        %1294 = vmatprep.subr.mxu0 0.0
        %1295 = vmatpush1.msra.mxu0 0.0
        %1296 = vmatprep.subr.mxu0 0.0
        %1297 = vmatpush1.msra.mxu0 0.0
        %1298 = vmatprep.mubr.f32.mxu0 0.0
        %1299 = vmatmul.mubr.f32.gmra.mrb[0].mxu0 %v1232
        %v1300 = vpop.f32.mrb[0].mxu0
        %v1301 = vadd.f32 0.0, %v1300
        %v1302 = vpop.f32.mrb[0].mxu0
        %1303 = vdwg.mxu0
        %v1304 = vadd.f32 %v1061, %v1301
        %1305 = vrot.lane.b32.xlu0 %v570, 104
        %v1306 = vpop.permute.xlu0 %1305
        %1307 = vrot.lane.b32.xlu0 %v570, 72
        %v1308 = vpop.permute.xlu0 %1307
        %v1309 = vsel %vm581, %v1306, 0
        %v1311 = vsel %vm581, %v1308, 0
        %1313 = vmatprep.subr.mxu0 0.0
        %1314 = vmatpush1.xpose.msra.mxu0 %v1311
        %1315 = vmatprep.subr.mxu0 0.0
        %1316 = vmatpush1.xpose.msra.mxu0 0.0
        %1317 = vmatprep.subr.mxu0 0.0
        %1318 = vmatpush1.xpose.msra.mxu0 0.0
        %1319 = vmatprep.subr.mxu0 0.0
        %1320 = vmatpush1.xpose.msra.mxu0 0.0
        %1321 = vmatprep.subr.mxu0 0.0
        %1322 = vmatpush1.xpose.msra.mxu0 0.0
        %1323 = vmatprep.subr.mxu0 0.0
        %1324 = vmatpush1.xpose.msra.mxu0 0.0
        %1325 = vmatprep.subr.mxu0 0.0
        %1326 = vmatpush1.xpose.msra.mxu0 0.0
        %1327 = vmatprep.subr.mxu0 0.0
        %1328 = vmatpush1.xpose.msra.mxu0 0.0
        %1329 = vmatprep.subr.mxu0 0.0
        %1330 = vmatpush1.xpose.msra.mxu0 0.0
        %1331 = vmatprep.subr.mxu0 0.0
        %1332 = vmatpush1.xpose.msra.mxu0 0.0
        %1333 = vmatprep.subr.mxu0 0.0
        %1334 = vmatpush1.xpose.msra.mxu0 0.0
        %1335 = vmatprep.subr.mxu0 0.0
        %1336 = vmatpush1.xpose.msra.mxu0 0.0
        %1337 = vmatprep.subr.mxu0 0.0
        %1338 = vmatpush1.xpose.msra.mxu0 0.0
        %1339 = vmatprep.subr.mxu0 0.0
        %1340 = vmatpush1.xpose.msra.mxu0 0.0
        %1341 = vmatprep.subr.mxu0 0.0
        %1342 = vmatpush1.xpose.msra.mxu0 0.0
        %1343 = vmatprep.subr.mxu0 0.0
        %1344 = vmatpush1.xpose.msra.mxu0 0.0
        %1345 = vmatprep.subr.mxu0 0.0
        %1346 = vmatpush1.xpose.msra.mxu0 0.0
        %1347 = vmatprep.subr.mxu0 0.0
        %1348 = vmatpush1.xpose.msra.mxu0 0.0
        %1349 = vmatprep.subr.mxu0 0.0
        %1350 = vmatpush1.xpose.msra.mxu0 0.0
        %1351 = vmatprep.subr.mxu0 0.0
        %1352 = vmatpush1.xpose.msra.mxu0 0.0
        %1353 = vmatprep.subr.mxu0 0.0
        %1354 = vmatpush1.xpose.msra.mxu0 0.0
        %1355 = vmatprep.subr.mxu0 0.0
        %1356 = vmatpush1.xpose.msra.mxu0 0.0
        %1357 = vmatprep.subr.mxu0 0.0
        %1358 = vmatpush1.xpose.msra.mxu0 0.0
        %1359 = vmatprep.subr.mxu0 0.0
        %1360 = vmatpush1.xpose.msra.mxu0 0.0
        %1361 = vmatprep.subr.mxu0 0.0
        %1362 = vmatpush1.xpose.msra.mxu0 0.0
        %1363 = vmatprep.subr.mxu0 0.0
        %1364 = vmatpush1.xpose.msra.mxu0 0.0
        %1365 = vmatprep.subr.mxu0 0.0
        %1366 = vmatpush1.xpose.msra.mxu0 0.0
        %1367 = vmatprep.subr.mxu0 0.0
        %1368 = vmatpush1.xpose.msra.mxu0 0.0
        %1369 = vmatprep.subr.mxu0 0.0
        %1370 = vmatpush1.xpose.msra.mxu0 0.0
        %1371 = vmatprep.subr.mxu0 0.0
        %1372 = vmatpush1.xpose.msra.mxu0 0.0
        %1373 = vmatprep.subr.mxu0 0.0
        %1374 = vmatpush1.xpose.msra.mxu0 0.0
        %1375 = vmatprep.subr.mxu0 0.0
        %1376 = vmatpush1.xpose.msra.mxu0 0.0
        %1377 = vmatprep.mubr.f32.mxu0 0.0
        %1378 = vmatmul.mubr.f32.gmra.mrb[0].mxu0 %v1309
        %v1379 = vpop.f32.mrb[0].mxu0
        %v1380 = vadd.f32 0.0, %v1379
        %v1381 = vpop.f32.mrb[0].mxu0
        %1382 = vdwg.mxu0
        %v1383 = vmul.f32 %v1380, 0.35355338
        %v1384 = vadd.f32 %v1383, %v661
        %v1385 = vsel %vm581, %v1384, -inf
        %1386 = vmax.xlane.f32.xlu0 %v1385
        %v1387 = vpop.xlane.xlu0 %1386
        %v1388 = vsub.f32 %v1384, %v1387
        %v1389 = vmul.f32 %v1388, 1.442695
        %v1390 = vpow.pop %v1389
        %v1391 = vsel %vm581, %v1390, 0.0
        %1392 = vadd.xlane.f32.xlu0 %v1391
        %v1393 = vpop.xlane.xlu0 %1392
        %v1394 = vrcp.pop %v1393
        %v1395 = vmul.f32 %v1390, %v1394
        %1396 = vrot.lane.b32.xlu0 %v570, 40
        %v1397 = vpop.permute.xlu0 %1396
        %v1400 = vsel %vm581, %v1395, 0
        %1402 = vmatprep.subr.mxu0 0.0
        %1403 = vmatpush1.msra.mxu0 %v1397
        %1404 = vmatprep.subr.mxu0 0.0
        %1405 = vmatpush1.msra.mxu0 0.0
        %1406 = vmatprep.subr.mxu0 0.0
        %1407 = vmatpush1.msra.mxu0 0.0
        %1408 = vmatprep.subr.mxu0 0.0
        %1409 = vmatpush1.msra.mxu0 0.0
        %1410 = vmatprep.subr.mxu0 0.0
        %1411 = vmatpush1.msra.mxu0 0.0
        %1412 = vmatprep.subr.mxu0 0.0
        %1413 = vmatpush1.msra.mxu0 0.0
        %1414 = vmatprep.subr.mxu0 0.0
        %1415 = vmatpush1.msra.mxu0 0.0
        %1416 = vmatprep.subr.mxu0 0.0
        %1417 = vmatpush1.msra.mxu0 0.0
        %1418 = vmatprep.subr.mxu0 0.0
        %1419 = vmatpush1.msra.mxu0 0.0
        %1420 = vmatprep.subr.mxu0 0.0
        %1421 = vmatpush1.msra.mxu0 0.0
        %1422 = vmatprep.subr.mxu0 0.0
        %1423 = vmatpush1.msra.mxu0 0.0
        %1424 = vmatprep.subr.mxu0 0.0
        %1425 = vmatpush1.msra.mxu0 0.0
        %1426 = vmatprep.subr.mxu0 0.0
        %1427 = vmatpush1.msra.mxu0 0.0
        %1428 = vmatprep.subr.mxu0 0.0
        %1429 = vmatpush1.msra.mxu0 0.0
        %1430 = vmatprep.subr.mxu0 0.0
        %1431 = vmatpush1.msra.mxu0 0.0
        %1432 = vmatprep.subr.mxu0 0.0
        %1433 = vmatpush1.msra.mxu0 0.0
        %1434 = vmatprep.subr.mxu0 0.0
        %1435 = vmatpush1.msra.mxu0 0.0
        %1436 = vmatprep.subr.mxu0 0.0
        %1437 = vmatpush1.msra.mxu0 0.0
        %1438 = vmatprep.subr.mxu0 0.0
        %1439 = vmatpush1.msra.mxu0 0.0
        %1440 = vmatprep.subr.mxu0 0.0
        %1441 = vmatpush1.msra.mxu0 0.0
        %1442 = vmatprep.subr.mxu0 0.0
        %1443 = vmatpush1.msra.mxu0 0.0
        %1444 = vmatprep.subr.mxu0 0.0
        %1445 = vmatpush1.msra.mxu0 0.0
        %1446 = vmatprep.subr.mxu0 0.0
        %1447 = vmatpush1.msra.mxu0 0.0
        %1448 = vmatprep.subr.mxu0 0.0
        %1449 = vmatpush1.msra.mxu0 0.0
        %1450 = vmatprep.subr.mxu0 0.0
        %1451 = vmatpush1.msra.mxu0 0.0
        %1452 = vmatprep.subr.mxu0 0.0
        %1453 = vmatpush1.msra.mxu0 0.0
        %1454 = vmatprep.subr.mxu0 0.0
        %1455 = vmatpush1.msra.mxu0 0.0
        %1456 = vmatprep.subr.mxu0 0.0
        %1457 = vmatpush1.msra.mxu0 0.0
        %1458 = vmatprep.subr.mxu0 0.0
        %1459 = vmatpush1.msra.mxu0 0.0
        %1460 = vmatprep.subr.mxu0 0.0
        %1461 = vmatpush1.msra.mxu0 0.0
        %1462 = vmatprep.subr.mxu0 0.0
        %1463 = vmatpush1.msra.mxu0 0.0
        %1464 = vmatprep.subr.mxu0 0.0
        %1465 = vmatpush1.msra.mxu0 0.0
        %1466 = vmatprep.mubr.f32.mxu0 0.0
        %1467 = vmatmul.mubr.f32.gmra.mrb[0].mxu0 %v1400
        %v1468 = vpop.f32.mrb[0].mxu0
        %v1469 = vadd.f32 0.0, %v1468
        %v1470 = vpop.f32.mrb[0].mxu0
        %1471 = vdwg.mxu0
        %v1473 = vsel %vm581, %v1469, 0
        %1475 = vmatprep.subr.mxu0 0.0
        %1476 = vmatpush1.msra.mxu0 %v577
        %1477 = vmatprep.subr.mxu0 0.0
        %1478 = vmatpush1.msra.mxu0 0.0
        %1479 = vmatprep.subr.mxu0 0.0
        %1480 = vmatpush1.msra.mxu0 0.0
        %1481 = vmatprep.subr.mxu0 0.0
        %1482 = vmatpush1.msra.mxu0 0.0
        %1483 = vmatprep.subr.mxu0 0.0
        %1484 = vmatpush1.msra.mxu0 0.0
        %1485 = vmatprep.subr.mxu0 0.0
        %1486 = vmatpush1.msra.mxu0 0.0
        %1487 = vmatprep.subr.mxu0 0.0
        %1488 = vmatpush1.msra.mxu0 0.0
        %1489 = vmatprep.subr.mxu0 0.0
        %1490 = vmatpush1.msra.mxu0 0.0
        %1491 = vmatprep.subr.mxu0 0.0
        %1492 = vmatpush1.msra.mxu0 0.0
        %1493 = vmatprep.subr.mxu0 0.0
        %1494 = vmatpush1.msra.mxu0 0.0
        %1495 = vmatprep.subr.mxu0 0.0
        %1496 = vmatpush1.msra.mxu0 0.0
        %1497 = vmatprep.subr.mxu0 0.0
        %1498 = vmatpush1.msra.mxu0 0.0
        %1499 = vmatprep.subr.mxu0 0.0
        %1500 = vmatpush1.msra.mxu0 0.0
        %1501 = vmatprep.subr.mxu0 0.0
        %1502 = vmatpush1.msra.mxu0 0.0
        %1503 = vmatprep.subr.mxu0 0.0
        %1504 = vmatpush1.msra.mxu0 0.0
        %1505 = vmatprep.subr.mxu0 0.0
        %1506 = vmatpush1.msra.mxu0 0.0
        %1507 = vmatprep.subr.mxu0 0.0
        %1508 = vmatpush1.msra.mxu0 0.0
        %1509 = vmatprep.subr.mxu0 0.0
        %1510 = vmatpush1.msra.mxu0 0.0
        %1511 = vmatprep.subr.mxu0 0.0
        %1512 = vmatpush1.msra.mxu0 0.0
        %1513 = vmatprep.subr.mxu0 0.0
        %1514 = vmatpush1.msra.mxu0 0.0
        %1515 = vmatprep.subr.mxu0 0.0
        %1516 = vmatpush1.msra.mxu0 0.0
        %1517 = vmatprep.subr.mxu0 0.0
        %1518 = vmatpush1.msra.mxu0 0.0
        %1519 = vmatprep.subr.mxu0 0.0
        %1520 = vmatpush1.msra.mxu0 0.0
        %1521 = vmatprep.subr.mxu0 0.0
        %1522 = vmatpush1.msra.mxu0 0.0
        %1523 = vmatprep.subr.mxu0 0.0
        %1524 = vmatpush1.msra.mxu0 0.0
        %1525 = vmatprep.subr.mxu0 0.0
        %1526 = vmatpush1.msra.mxu0 0.0
        %1527 = vmatprep.subr.mxu0 0.0
        %1528 = vmatpush1.msra.mxu0 0.0
        %1529 = vmatprep.subr.mxu0 0.0
        %1530 = vmatpush1.msra.mxu0 0.0
        %1531 = vmatprep.subr.mxu0 0.0
        %1532 = vmatpush1.msra.mxu0 0.0
        %1533 = vmatprep.subr.mxu0 0.0
        %1534 = vmatpush1.msra.mxu0 0.0
        %1535 = vmatprep.subr.mxu0 0.0
        %1536 = vmatpush1.msra.mxu0 0.0
        %1537 = vmatprep.subr.mxu0 0.0
        %1538 = vmatpush1.msra.mxu0 0.0
        %1539 = vmatprep.mubr.f32.mxu0 0.0
        %1540 = vmatmul.mubr.f32.gmra.mrb[0].mxu0 %v1473
        %v1541 = vpop.f32.mrb[0].mxu0
        %v1542 = vadd.f32 0.0, %v1541
        %v1543 = vpop.f32.mrb[0].mxu0
        %1544 = vdwg.mxu0
        %v1545 = vadd.f32 %v1304, %v1542
        %s1546 = scalar_lea.vmem %s4, 32
        %v1547 = vld [vmem:[%s1546] sm:$0xff]
        %v1548 = vld [vmem:[%s1546 + $0x8] sm:$0xff]
        %v1549 = vld [vmem:[%s1546 + $0x10] sm:$0xff]
        %v1550 = vld [vmem:[%s1546 + $0x18] sm:$0xff]
        %1551 = vrot.lane.b32.xlu0 %v570, 32
        %v1552 = vpop.permute.xlu0 %1551
        %v1553 = vsel %vm581, %v1552, 0
        %v1556 = vsel %vm581, %v572, 0
        %1558 = vmatprep.subr.mxu0 0.0
        %1559 = vmatpush1.xpose.msra.mxu0 %v1556
        %1560 = vmatprep.subr.mxu0 0.0
        %1561 = vmatpush1.xpose.msra.mxu0 0.0
        %1562 = vmatprep.subr.mxu0 0.0
        %1563 = vmatpush1.xpose.msra.mxu0 0.0
        %1564 = vmatprep.subr.mxu0 0.0
        %1565 = vmatpush1.xpose.msra.mxu0 0.0
        %1566 = vmatprep.subr.mxu0 0.0
        %1567 = vmatpush1.xpose.msra.mxu0 0.0
        %1568 = vmatprep.subr.mxu0 0.0
        %1569 = vmatpush1.xpose.msra.mxu0 0.0
        %1570 = vmatprep.subr.mxu0 0.0
        %1571 = vmatpush1.xpose.msra.mxu0 0.0
        %1572 = vmatprep.subr.mxu0 0.0
        %1573 = vmatpush1.xpose.msra.mxu0 0.0
        %1574 = vmatprep.subr.mxu0 0.0
        %1575 = vmatpush1.xpose.msra.mxu0 0.0
        %1576 = vmatprep.subr.mxu0 0.0
        %1577 = vmatpush1.xpose.msra.mxu0 0.0
        %1578 = vmatprep.subr.mxu0 0.0
        %1579 = vmatpush1.xpose.msra.mxu0 0.0
        %1580 = vmatprep.subr.mxu0 0.0
        %1581 = vmatpush1.xpose.msra.mxu0 0.0
        %1582 = vmatprep.subr.mxu0 0.0
        %1583 = vmatpush1.xpose.msra.mxu0 0.0
        %1584 = vmatprep.subr.mxu0 0.0
        %1585 = vmatpush1.xpose.msra.mxu0 0.0
        %1586 = vmatprep.subr.mxu0 0.0
        %1587 = vmatpush1.xpose.msra.mxu0 0.0
        %1588 = vmatprep.subr.mxu0 0.0
        %1589 = vmatpush1.xpose.msra.mxu0 0.0
        %1590 = vmatprep.subr.mxu0 0.0
        %1591 = vmatpush1.xpose.msra.mxu0 0.0
        %1592 = vmatprep.subr.mxu0 0.0
        %1593 = vmatpush1.xpose.msra.mxu0 0.0
        %1594 = vmatprep.subr.mxu0 0.0
        %1595 = vmatpush1.xpose.msra.mxu0 0.0
        %1596 = vmatprep.subr.mxu0 0.0
        %1597 = vmatpush1.xpose.msra.mxu0 0.0
        %1598 = vmatprep.subr.mxu0 0.0
        %1599 = vmatpush1.xpose.msra.mxu0 0.0
        %1600 = vmatprep.subr.mxu0 0.0
        %1601 = vmatpush1.xpose.msra.mxu0 0.0
        %1602 = vmatprep.subr.mxu0 0.0
        %1603 = vmatpush1.xpose.msra.mxu0 0.0
        %1604 = vmatprep.subr.mxu0 0.0
        %1605 = vmatpush1.xpose.msra.mxu0 0.0
        %1606 = vmatprep.subr.mxu0 0.0
        %1607 = vmatpush1.xpose.msra.mxu0 0.0
        %1608 = vmatprep.subr.mxu0 0.0
        %1609 = vmatpush1.xpose.msra.mxu0 0.0
        %1610 = vmatprep.subr.mxu0 0.0
        %1611 = vmatpush1.xpose.msra.mxu0 0.0
        %1612 = vmatprep.subr.mxu0 0.0
        %1613 = vmatpush1.xpose.msra.mxu0 0.0
        %1614 = vmatprep.subr.mxu0 0.0
        %1615 = vmatpush1.xpose.msra.mxu0 0.0
        %1616 = vmatprep.subr.mxu0 0.0
        %1617 = vmatpush1.xpose.msra.mxu0 0.0
        %1618 = vmatprep.subr.mxu0 0.0
        %1619 = vmatpush1.xpose.msra.mxu0 0.0
        %1620 = vmatprep.subr.mxu0 0.0
        %1621 = vmatpush1.xpose.msra.mxu0 0.0
        %1622 = vmatprep.mubr.f32.mxu0 0.0
        %1623 = vmatmul.mubr.f32.gmra.mrb[0].mxu0 %v1553
        %v1624 = vpop.f32.mrb[0].mxu0
        %v1625 = vadd.f32 0.0, %v1624
        %v1626 = vpop.f32.mrb[0].mxu0
        %1627 = vdwg.mxu0
        %v1628 = vmul.f32 %v1625, 0.35355338
        %v1629 = vadd.f32 %v1628, %v661
        %v1630 = vsel %vm581, %v1629, -inf
        %1631 = vmax.xlane.f32.xlu0 %v1630
        %v1632 = vpop.xlane.xlu0 %1631
        %v1633 = vsub.f32 %v1629, %v1632
        %v1634 = vmul.f32 %v1633, 1.442695
        %v1635 = vpow.pop %v1634
        %v1636 = vsel %vm581, %v1635, 0.0
        %1637 = vadd.xlane.f32.xlu0 %v1636
        %v1638 = vpop.xlane.xlu0 %1637
        %v1639 = vrcp.pop %v1638
        %v1640 = vmul.f32 %v1635, %v1639
        %1641 = vrot.lane.b32.xlu0 %v572, 96
        %v1642 = vpop.permute.xlu0 %1641
        %v1645 = vsel %vm581, %v1640, 0
        %1647 = vmatprep.subr.mxu0 0.0
        %1648 = vmatpush1.msra.mxu0 %v1642
        %1649 = vmatprep.subr.mxu0 0.0
        %1650 = vmatpush1.msra.mxu0 0.0
        %1651 = vmatprep.subr.mxu0 0.0
        %1652 = vmatpush1.msra.mxu0 0.0
        %1653 = vmatprep.subr.mxu0 0.0
        %1654 = vmatpush1.msra.mxu0 0.0
        %1655 = vmatprep.subr.mxu0 0.0
        %1656 = vmatpush1.msra.mxu0 0.0
        %1657 = vmatprep.subr.mxu0 0.0
        %1658 = vmatpush1.msra.mxu0 0.0
        %1659 = vmatprep.subr.mxu0 0.0
        %1660 = vmatpush1.msra.mxu0 0.0
        %1661 = vmatprep.subr.mxu0 0.0
        %1662 = vmatpush1.msra.mxu0 0.0
        %1663 = vmatprep.subr.mxu0 0.0
        %1664 = vmatpush1.msra.mxu0 0.0
        %1665 = vmatprep.subr.mxu0 0.0
        %1666 = vmatpush1.msra.mxu0 0.0
        %1667 = vmatprep.subr.mxu0 0.0
        %1668 = vmatpush1.msra.mxu0 0.0
        %1669 = vmatprep.subr.mxu0 0.0
        %1670 = vmatpush1.msra.mxu0 0.0
        %1671 = vmatprep.subr.mxu0 0.0
        %1672 = vmatpush1.msra.mxu0 0.0
        %1673 = vmatprep.subr.mxu0 0.0
        %1674 = vmatpush1.msra.mxu0 0.0
        %1675 = vmatprep.subr.mxu0 0.0
        %1676 = vmatpush1.msra.mxu0 0.0
        %1677 = vmatprep.subr.mxu0 0.0
        %1678 = vmatpush1.msra.mxu0 0.0
        %1679 = vmatprep.subr.mxu0 0.0
        %1680 = vmatpush1.msra.mxu0 0.0
        %1681 = vmatprep.subr.mxu0 0.0
        %1682 = vmatpush1.msra.mxu0 0.0
        %1683 = vmatprep.subr.mxu0 0.0
        %1684 = vmatpush1.msra.mxu0 0.0
        %1685 = vmatprep.subr.mxu0 0.0
        %1686 = vmatpush1.msra.mxu0 0.0
        %1687 = vmatprep.subr.mxu0 0.0
        %1688 = vmatpush1.msra.mxu0 0.0
        %1689 = vmatprep.subr.mxu0 0.0
        %1690 = vmatpush1.msra.mxu0 0.0
        %1691 = vmatprep.subr.mxu0 0.0
        %1692 = vmatpush1.msra.mxu0 0.0
        %1693 = vmatprep.subr.mxu0 0.0
        %1694 = vmatpush1.msra.mxu0 0.0
        %1695 = vmatprep.subr.mxu0 0.0
        %1696 = vmatpush1.msra.mxu0 0.0
        %1697 = vmatprep.subr.mxu0 0.0
        %1698 = vmatpush1.msra.mxu0 0.0
        %1699 = vmatprep.subr.mxu0 0.0
        %1700 = vmatpush1.msra.mxu0 0.0
        %1701 = vmatprep.subr.mxu0 0.0
        %1702 = vmatpush1.msra.mxu0 0.0
        %1703 = vmatprep.subr.mxu0 0.0
        %1704 = vmatpush1.msra.mxu0 0.0
        %1705 = vmatprep.subr.mxu0 0.0
        %1706 = vmatpush1.msra.mxu0 0.0
        %1707 = vmatprep.subr.mxu0 0.0
        %1708 = vmatpush1.msra.mxu0 0.0
        %1709 = vmatprep.subr.mxu0 0.0
        %1710 = vmatpush1.msra.mxu0 0.0
        %1711 = vmatprep.mubr.f32.mxu0 0.0
        %1712 = vmatmul.mubr.f32.gmra.mrb[0].mxu0 %v1645
        %v1713 = vpop.f32.mrb[0].mxu0
        %v1714 = vadd.f32 0.0, %v1713
        %v1715 = vpop.f32.mrb[0].mxu0
        %1716 = vdwg.mxu0
        %v1718 = vsel %vm581, %v1714, 0
        %1720 = vmatprep.subr.mxu0 0.0
        %1721 = vmatpush1.msra.mxu0 %v1547
        %1722 = vmatprep.subr.mxu0 0.0
        %1723 = vmatpush1.msra.mxu0 0.0
        %1724 = vmatprep.subr.mxu0 0.0
        %1725 = vmatpush1.msra.mxu0 0.0
        %1726 = vmatprep.subr.mxu0 0.0
        %1727 = vmatpush1.msra.mxu0 0.0
        %1728 = vmatprep.subr.mxu0 0.0
        %1729 = vmatpush1.msra.mxu0 0.0
        %1730 = vmatprep.subr.mxu0 0.0
        %1731 = vmatpush1.msra.mxu0 0.0
        %1732 = vmatprep.subr.mxu0 0.0
        %1733 = vmatpush1.msra.mxu0 0.0
        %1734 = vmatprep.subr.mxu0 0.0
        %1735 = vmatpush1.msra.mxu0 0.0
        %1736 = vmatprep.subr.mxu0 0.0
        %1737 = vmatpush1.msra.mxu0 0.0
        %1738 = vmatprep.subr.mxu0 0.0
        %1739 = vmatpush1.msra.mxu0 0.0
        %1740 = vmatprep.subr.mxu0 0.0
        %1741 = vmatpush1.msra.mxu0 0.0
        %1742 = vmatprep.subr.mxu0 0.0
        %1743 = vmatpush1.msra.mxu0 0.0
        %1744 = vmatprep.subr.mxu0 0.0
        %1745 = vmatpush1.msra.mxu0 0.0
        %1746 = vmatprep.subr.mxu0 0.0
        %1747 = vmatpush1.msra.mxu0 0.0
        %1748 = vmatprep.subr.mxu0 0.0
        %1749 = vmatpush1.msra.mxu0 0.0
        %1750 = vmatprep.subr.mxu0 0.0
        %1751 = vmatpush1.msra.mxu0 0.0
        %1752 = vmatprep.subr.mxu0 0.0
        %1753 = vmatpush1.msra.mxu0 0.0
        %1754 = vmatprep.subr.mxu0 0.0
        %1755 = vmatpush1.msra.mxu0 0.0
        %1756 = vmatprep.subr.mxu0 0.0
        %1757 = vmatpush1.msra.mxu0 0.0
        %1758 = vmatprep.subr.mxu0 0.0
        %1759 = vmatpush1.msra.mxu0 0.0
        %1760 = vmatprep.subr.mxu0 0.0
        %1761 = vmatpush1.msra.mxu0 0.0
        %1762 = vmatprep.subr.mxu0 0.0
        %1763 = vmatpush1.msra.mxu0 0.0
        %1764 = vmatprep.subr.mxu0 0.0
        %1765 = vmatpush1.msra.mxu0 0.0
        %1766 = vmatprep.subr.mxu0 0.0
        %1767 = vmatpush1.msra.mxu0 0.0
        %1768 = vmatprep.subr.mxu0 0.0
        %1769 = vmatpush1.msra.mxu0 0.0
        %1770 = vmatprep.subr.mxu0 0.0
        %1771 = vmatpush1.msra.mxu0 0.0
        %1772 = vmatprep.subr.mxu0 0.0
        %1773 = vmatpush1.msra.mxu0 0.0
        %1774 = vmatprep.subr.mxu0 0.0
        %1775 = vmatpush1.msra.mxu0 0.0
        %1776 = vmatprep.subr.mxu0 0.0
        %1777 = vmatpush1.msra.mxu0 0.0
        %1778 = vmatprep.subr.mxu0 0.0
        %1779 = vmatpush1.msra.mxu0 0.0
        %1780 = vmatprep.subr.mxu0 0.0
        %1781 = vmatpush1.msra.mxu0 0.0
        %1782 = vmatprep.subr.mxu0 0.0
        %1783 = vmatpush1.msra.mxu0 0.0
        %1784 = vmatprep.mubr.f32.mxu0 0.0
        %1785 = vmatmul.mubr.f32.gmra.mrb[0].mxu0 %v1718
        %v1786 = vpop.f32.mrb[0].mxu0
        %v1787 = vadd.f32 0.0, %v1786
        %v1788 = vpop.f32.mrb[0].mxu0
        %1789 = vdwg.mxu0
        %v1790 = vadd.f32 %v1545, %v1787
        %1791 = vrot.lane.b32.xlu0 %v570, 24
        %v1792 = vpop.permute.xlu0 %1791
        %1793 = vrot.lane.b32.xlu0 %v572, 120
        %v1794 = vpop.permute.xlu0 %1793
        %v1795 = vsel %vm581, %v1792, 0
        %v1797 = vsel %vm581, %v1794, 0
        %1799 = vmatprep.subr.mxu0 0.0
        %1800 = vmatpush1.xpose.msra.mxu0 %v1797
        %1801 = vmatprep.subr.mxu0 0.0
        %1802 = vmatpush1.xpose.msra.mxu0 0.0
        %1803 = vmatprep.subr.mxu0 0.0
        %1804 = vmatpush1.xpose.msra.mxu0 0.0
        %1805 = vmatprep.subr.mxu0 0.0
        %1806 = vmatpush1.xpose.msra.mxu0 0.0
        %1807 = vmatprep.subr.mxu0 0.0
        %1808 = vmatpush1.xpose.msra.mxu0 0.0
        %1809 = vmatprep.subr.mxu0 0.0
        %1810 = vmatpush1.xpose.msra.mxu0 0.0
        %1811 = vmatprep.subr.mxu0 0.0
        %1812 = vmatpush1.xpose.msra.mxu0 0.0
        %1813 = vmatprep.subr.mxu0 0.0
        %1814 = vmatpush1.xpose.msra.mxu0 0.0
        %1815 = vmatprep.subr.mxu0 0.0
        %1816 = vmatpush1.xpose.msra.mxu0 0.0
        %1817 = vmatprep.subr.mxu0 0.0
        %1818 = vmatpush1.xpose.msra.mxu0 0.0
        %1819 = vmatprep.subr.mxu0 0.0
        %1820 = vmatpush1.xpose.msra.mxu0 0.0
        %1821 = vmatprep.subr.mxu0 0.0
        %1822 = vmatpush1.xpose.msra.mxu0 0.0
        %1823 = vmatprep.subr.mxu0 0.0
        %1824 = vmatpush1.xpose.msra.mxu0 0.0
        %1825 = vmatprep.subr.mxu0 0.0
        %1826 = vmatpush1.xpose.msra.mxu0 0.0
        %1827 = vmatprep.subr.mxu0 0.0
        %1828 = vmatpush1.xpose.msra.mxu0 0.0
        %1829 = vmatprep.subr.mxu0 0.0
        %1830 = vmatpush1.xpose.msra.mxu0 0.0
        %1831 = vmatprep.subr.mxu0 0.0
        %1832 = vmatpush1.xpose.msra.mxu0 0.0
        %1833 = vmatprep.subr.mxu0 0.0
        %1834 = vmatpush1.xpose.msra.mxu0 0.0
        %1835 = vmatprep.subr.mxu0 0.0
        %1836 = vmatpush1.xpose.msra.mxu0 0.0
        %1837 = vmatprep.subr.mxu0 0.0
        %1838 = vmatpush1.xpose.msra.mxu0 0.0
        %1839 = vmatprep.subr.mxu0 0.0
        %1840 = vmatpush1.xpose.msra.mxu0 0.0
        %1841 = vmatprep.subr.mxu0 0.0
        %1842 = vmatpush1.xpose.msra.mxu0 0.0
        %1843 = vmatprep.subr.mxu0 0.0
        %1844 = vmatpush1.xpose.msra.mxu0 0.0
        %1845 = vmatprep.subr.mxu0 0.0
        %1846 = vmatpush1.xpose.msra.mxu0 0.0
        %1847 = vmatprep.subr.mxu0 0.0
        %1848 = vmatpush1.xpose.msra.mxu0 0.0
        %1849 = vmatprep.subr.mxu0 0.0
        %1850 = vmatpush1.xpose.msra.mxu0 0.0
        %1851 = vmatprep.subr.mxu0 0.0
        %1852 = vmatpush1.xpose.msra.mxu0 0.0
        %1853 = vmatprep.subr.mxu0 0.0
        %1854 = vmatpush1.xpose.msra.mxu0 0.0
        %1855 = vmatprep.subr.mxu0 0.0
        %1856 = vmatpush1.xpose.msra.mxu0 0.0
        %1857 = vmatprep.subr.mxu0 0.0
        %1858 = vmatpush1.xpose.msra.mxu0 0.0
        %1859 = vmatprep.subr.mxu0 0.0
        %1860 = vmatpush1.xpose.msra.mxu0 0.0
        %1861 = vmatprep.subr.mxu0 0.0
        %1862 = vmatpush1.xpose.msra.mxu0 0.0
        %1863 = vmatprep.mubr.f32.mxu0 0.0
        %1864 = vmatmul.mubr.f32.gmra.mrb[0].mxu0 %v1795
        %v1865 = vpop.f32.mrb[0].mxu0
        %v1866 = vadd.f32 0.0, %v1865
        %v1867 = vpop.f32.mrb[0].mxu0
        %1868 = vdwg.mxu0
        %v1869 = vmul.f32 %v1866, 0.35355338
        %v1870 = vadd.f32 %v1869, %v661
        %v1871 = vsel %vm581, %v1870, -inf
        %1872 = vmax.xlane.f32.xlu0 %v1871
        %v1873 = vpop.xlane.xlu0 %1872
        %v1874 = vsub.f32 %v1870, %v1873
        %v1875 = vmul.f32 %v1874, 1.442695
        %v1876 = vpow.pop %v1875
        %v1877 = vsel %vm581, %v1876, 0.0
        %1878 = vadd.xlane.f32.xlu0 %v1877
        %v1879 = vpop.xlane.xlu0 %1878
        %v1880 = vrcp.pop %v1879
        %v1881 = vmul.f32 %v1876, %v1880
        %1882 = vrot.lane.b32.xlu0 %v572, 88
        %v1883 = vpop.permute.xlu0 %1882
        %v1886 = vsel %vm581, %v1881, 0
        %1888 = vmatprep.subr.mxu0 0.0
        %1889 = vmatpush1.msra.mxu0 %v1883
        %1890 = vmatprep.subr.mxu0 0.0
        %1891 = vmatpush1.msra.mxu0 0.0
        %1892 = vmatprep.subr.mxu0 0.0
        %1893 = vmatpush1.msra.mxu0 0.0
        %1894 = vmatprep.subr.mxu0 0.0
        %1895 = vmatpush1.msra.mxu0 0.0
        %1896 = vmatprep.subr.mxu0 0.0
        %1897 = vmatpush1.msra.mxu0 0.0
        %1898 = vmatprep.subr.mxu0 0.0
        %1899 = vmatpush1.msra.mxu0 0.0
        %1900 = vmatprep.subr.mxu0 0.0
        %1901 = vmatpush1.msra.mxu0 0.0
        %1902 = vmatprep.subr.mxu0 0.0
        %1903 = vmatpush1.msra.mxu0 0.0
        %1904 = vmatprep.subr.mxu0 0.0
        %1905 = vmatpush1.msra.mxu0 0.0
        %1906 = vmatprep.subr.mxu0 0.0
        %1907 = vmatpush1.msra.mxu0 0.0
        %1908 = vmatprep.subr.mxu0 0.0
        %1909 = vmatpush1.msra.mxu0 0.0
        %1910 = vmatprep.subr.mxu0 0.0
        %1911 = vmatpush1.msra.mxu0 0.0
        %1912 = vmatprep.subr.mxu0 0.0
        %1913 = vmatpush1.msra.mxu0 0.0
        %1914 = vmatprep.subr.mxu0 0.0
        %1915 = vmatpush1.msra.mxu0 0.0
        %1916 = vmatprep.subr.mxu0 0.0
        %1917 = vmatpush1.msra.mxu0 0.0
        %1918 = vmatprep.subr.mxu0 0.0
        %1919 = vmatpush1.msra.mxu0 0.0
        %1920 = vmatprep.subr.mxu0 0.0
        %1921 = vmatpush1.msra.mxu0 0.0
        %1922 = vmatprep.subr.mxu0 0.0
        %1923 = vmatpush1.msra.mxu0 0.0
        %1924 = vmatprep.subr.mxu0 0.0
        %1925 = vmatpush1.msra.mxu0 0.0
        %1926 = vmatprep.subr.mxu0 0.0
        %1927 = vmatpush1.msra.mxu0 0.0
        %1928 = vmatprep.subr.mxu0 0.0
        %1929 = vmatpush1.msra.mxu0 0.0
        %1930 = vmatprep.subr.mxu0 0.0
        %1931 = vmatpush1.msra.mxu0 0.0
        %1932 = vmatprep.subr.mxu0 0.0
        %1933 = vmatpush1.msra.mxu0 0.0
        %1934 = vmatprep.subr.mxu0 0.0
        %1935 = vmatpush1.msra.mxu0 0.0
        %1936 = vmatprep.subr.mxu0 0.0
        %1937 = vmatpush1.msra.mxu0 0.0
        %1938 = vmatprep.subr.mxu0 0.0
        %1939 = vmatpush1.msra.mxu0 0.0
        %1940 = vmatprep.subr.mxu0 0.0
        %1941 = vmatpush1.msra.mxu0 0.0
        %1942 = vmatprep.subr.mxu0 0.0
        %1943 = vmatpush1.msra.mxu0 0.0
        %1944 = vmatprep.subr.mxu0 0.0
        %1945 = vmatpush1.msra.mxu0 0.0
        %1946 = vmatprep.subr.mxu0 0.0
        %1947 = vmatpush1.msra.mxu0 0.0
        %1948 = vmatprep.subr.mxu0 0.0
        %1949 = vmatpush1.msra.mxu0 0.0
        %1950 = vmatprep.subr.mxu0 0.0
        %1951 = vmatpush1.msra.mxu0 0.0
        %1952 = vmatprep.mubr.f32.mxu0 0.0
        %1953 = vmatmul.mubr.f32.gmra.mrb[0].mxu0 %v1886
        %v1954 = vpop.f32.mrb[0].mxu0
        %v1955 = vadd.f32 0.0, %v1954
        %v1956 = vpop.f32.mrb[0].mxu0
        %1957 = vdwg.mxu0
        %v1959 = vsel %vm581, %v1955, 0
        %1961 = vmatprep.subr.mxu0 0.0
        %1962 = vmatpush1.msra.mxu0 %v1548
        %1963 = vmatprep.subr.mxu0 0.0
        %1964 = vmatpush1.msra.mxu0 0.0
        %1965 = vmatprep.subr.mxu0 0.0
        %1966 = vmatpush1.msra.mxu0 0.0
        %1967 = vmatprep.subr.mxu0 0.0
        %1968 = vmatpush1.msra.mxu0 0.0
        %1969 = vmatprep.subr.mxu0 0.0
        %1970 = vmatpush1.msra.mxu0 0.0
        %1971 = vmatprep.subr.mxu0 0.0
        %1972 = vmatpush1.msra.mxu0 0.0
        %1973 = vmatprep.subr.mxu0 0.0
        %1974 = vmatpush1.msra.mxu0 0.0
        %1975 = vmatprep.subr.mxu0 0.0
        %1976 = vmatpush1.msra.mxu0 0.0
        %1977 = vmatprep.subr.mxu0 0.0
        %1978 = vmatpush1.msra.mxu0 0.0
        %1979 = vmatprep.subr.mxu0 0.0
        %1980 = vmatpush1.msra.mxu0 0.0
        %1981 = vmatprep.subr.mxu0 0.0
        %1982 = vmatpush1.msra.mxu0 0.0
        %1983 = vmatprep.subr.mxu0 0.0
        %1984 = vmatpush1.msra.mxu0 0.0
        %1985 = vmatprep.subr.mxu0 0.0
        %1986 = vmatpush1.msra.mxu0 0.0
        %1987 = vmatprep.subr.mxu0 0.0
        %1988 = vmatpush1.msra.mxu0 0.0
        %1989 = vmatprep.subr.mxu0 0.0
        %1990 = vmatpush1.msra.mxu0 0.0
        %1991 = vmatprep.subr.mxu0 0.0
        %1992 = vmatpush1.msra.mxu0 0.0
        %1993 = vmatprep.subr.mxu0 0.0
        %1994 = vmatpush1.msra.mxu0 0.0
        %1995 = vmatprep.subr.mxu0 0.0
        %1996 = vmatpush1.msra.mxu0 0.0
        %1997 = vmatprep.subr.mxu0 0.0
        %1998 = vmatpush1.msra.mxu0 0.0
        %1999 = vmatprep.subr.mxu0 0.0
        %2000 = vmatpush1.msra.mxu0 0.0
        %2001 = vmatprep.subr.mxu0 0.0
        %2002 = vmatpush1.msra.mxu0 0.0
        %2003 = vmatprep.subr.mxu0 0.0
        %2004 = vmatpush1.msra.mxu0 0.0
        %2005 = vmatprep.subr.mxu0 0.0
        %2006 = vmatpush1.msra.mxu0 0.0
        %2007 = vmatprep.subr.mxu0 0.0
        %2008 = vmatpush1.msra.mxu0 0.0
        %2009 = vmatprep.subr.mxu0 0.0
        %2010 = vmatpush1.msra.mxu0 0.0
        %2011 = vmatprep.subr.mxu0 0.0
        %2012 = vmatpush1.msra.mxu0 0.0
        %2013 = vmatprep.subr.mxu0 0.0
        %2014 = vmatpush1.msra.mxu0 0.0
        %2015 = vmatprep.subr.mxu0 0.0
        %2016 = vmatpush1.msra.mxu0 0.0
        %2017 = vmatprep.subr.mxu0 0.0
        %2018 = vmatpush1.msra.mxu0 0.0
        %2019 = vmatprep.subr.mxu0 0.0
        %2020 = vmatpush1.msra.mxu0 0.0
        %2021 = vmatprep.subr.mxu0 0.0
        %2022 = vmatpush1.msra.mxu0 0.0
        %2023 = vmatprep.subr.mxu0 0.0
        %2024 = vmatpush1.msra.mxu0 0.0
        %2025 = vmatprep.mubr.f32.mxu0 0.0
        %2026 = vmatmul.mubr.f32.gmra.mrb[0].mxu0 %v1959
        %v2027 = vpop.f32.mrb[0].mxu0
        %v2028 = vadd.f32 0.0, %v2027
        %v2029 = vpop.f32.mrb[0].mxu0
        %2030 = vdwg.mxu0
        %v2031 = vadd.f32 %v1790, %v2028
        %2032 = vrot.lane.b32.xlu0 %v570, 16
        %v2033 = vpop.permute.xlu0 %2032
        %2034 = vrot.lane.b32.xlu0 %v572, 112
        %v2035 = vpop.permute.xlu0 %2034
        %v2036 = vsel %vm581, %v2033, 0
        %v2038 = vsel %vm581, %v2035, 0
        %2040 = vmatprep.subr.mxu0 0.0
        %2041 = vmatpush1.xpose.msra.mxu0 %v2038
        %2042 = vmatprep.subr.mxu0 0.0
        %2043 = vmatpush1.xpose.msra.mxu0 0.0
        %2044 = vmatprep.subr.mxu0 0.0
        %2045 = vmatpush1.xpose.msra.mxu0 0.0
        %2046 = vmatprep.subr.mxu0 0.0
        %2047 = vmatpush1.xpose.msra.mxu0 0.0
        %2048 = vmatprep.subr.mxu0 0.0
        %2049 = vmatpush1.xpose.msra.mxu0 0.0
        %2050 = vmatprep.subr.mxu0 0.0
        %2051 = vmatpush1.xpose.msra.mxu0 0.0
        %2052 = vmatprep.subr.mxu0 0.0
        %2053 = vmatpush1.xpose.msra.mxu0 0.0
        %2054 = vmatprep.subr.mxu0 0.0
        %2055 = vmatpush1.xpose.msra.mxu0 0.0
        %2056 = vmatprep.subr.mxu0 0.0
        %2057 = vmatpush1.xpose.msra.mxu0 0.0
        %2058 = vmatprep.subr.mxu0 0.0
        %2059 = vmatpush1.xpose.msra.mxu0 0.0
        %2060 = vmatprep.subr.mxu0 0.0
        %2061 = vmatpush1.xpose.msra.mxu0 0.0
        %2062 = vmatprep.subr.mxu0 0.0
        %2063 = vmatpush1.xpose.msra.mxu0 0.0
        %2064 = vmatprep.subr.mxu0 0.0
        %2065 = vmatpush1.xpose.msra.mxu0 0.0
        %2066 = vmatprep.subr.mxu0 0.0
        %2067 = vmatpush1.xpose.msra.mxu0 0.0
        %2068 = vmatprep.subr.mxu0 0.0
        %2069 = vmatpush1.xpose.msra.mxu0 0.0
        %2070 = vmatprep.subr.mxu0 0.0
        %2071 = vmatpush1.xpose.msra.mxu0 0.0
        %2072 = vmatprep.subr.mxu0 0.0
        %2073 = vmatpush1.xpose.msra.mxu0 0.0
        %2074 = vmatprep.subr.mxu0 0.0
        %2075 = vmatpush1.xpose.msra.mxu0 0.0
        %2076 = vmatprep.subr.mxu0 0.0
        %2077 = vmatpush1.xpose.msra.mxu0 0.0
        %2078 = vmatprep.subr.mxu0 0.0
        %2079 = vmatpush1.xpose.msra.mxu0 0.0
        %2080 = vmatprep.subr.mxu0 0.0
        %2081 = vmatpush1.xpose.msra.mxu0 0.0
        %2082 = vmatprep.subr.mxu0 0.0
        %2083 = vmatpush1.xpose.msra.mxu0 0.0
        %2084 = vmatprep.subr.mxu0 0.0
        %2085 = vmatpush1.xpose.msra.mxu0 0.0
        %2086 = vmatprep.subr.mxu0 0.0
        %2087 = vmatpush1.xpose.msra.mxu0 0.0
        %2088 = vmatprep.subr.mxu0 0.0
        %2089 = vmatpush1.xpose.msra.mxu0 0.0
        %2090 = vmatprep.subr.mxu0 0.0
        %2091 = vmatpush1.xpose.msra.mxu0 0.0
        %2092 = vmatprep.subr.mxu0 0.0
        %2093 = vmatpush1.xpose.msra.mxu0 0.0
        %2094 = vmatprep.subr.mxu0 0.0
        %2095 = vmatpush1.xpose.msra.mxu0 0.0
        %2096 = vmatprep.subr.mxu0 0.0
        %2097 = vmatpush1.xpose.msra.mxu0 0.0
        %2098 = vmatprep.subr.mxu0 0.0
        %2099 = vmatpush1.xpose.msra.mxu0 0.0
        %2100 = vmatprep.subr.mxu0 0.0
        %2101 = vmatpush1.xpose.msra.mxu0 0.0
        %2102 = vmatprep.subr.mxu0 0.0
        %2103 = vmatpush1.xpose.msra.mxu0 0.0
        %2104 = vmatprep.mubr.f32.mxu0 0.0
        %2105 = vmatmul.mubr.f32.gmra.mrb[0].mxu0 %v2036
        %v2106 = vpop.f32.mrb[0].mxu0
        %v2107 = vadd.f32 0.0, %v2106
        %v2108 = vpop.f32.mrb[0].mxu0
        %2109 = vdwg.mxu0
        %v2110 = vmul.f32 %v2107, 0.35355338
        %v2111 = vadd.f32 %v2110, %v661
        %v2112 = vsel %vm581, %v2111, -inf
        %2113 = vmax.xlane.f32.xlu0 %v2112
        %v2114 = vpop.xlane.xlu0 %2113
        %v2115 = vsub.f32 %v2111, %v2114
        %v2116 = vmul.f32 %v2115, 1.442695
        %v2117 = vpow.pop %v2116
        %v2118 = vsel %vm581, %v2117, 0.0
        %2119 = vadd.xlane.f32.xlu0 %v2118
        %v2120 = vpop.xlane.xlu0 %2119
        %v2121 = vrcp.pop %v2120
        %v2122 = vmul.f32 %v2117, %v2121
        %2123 = vrot.lane.b32.xlu0 %v572, 80
        %v2124 = vpop.permute.xlu0 %2123
        %v2127 = vsel %vm581, %v2122, 0
        %2129 = vmatprep.subr.mxu0 0.0
        %2130 = vmatpush1.msra.mxu0 %v2124
        %2131 = vmatprep.subr.mxu0 0.0
        %2132 = vmatpush1.msra.mxu0 0.0
        %2133 = vmatprep.subr.mxu0 0.0
        %2134 = vmatpush1.msra.mxu0 0.0
        %2135 = vmatprep.subr.mxu0 0.0
        %2136 = vmatpush1.msra.mxu0 0.0
        %2137 = vmatprep.subr.mxu0 0.0
        %2138 = vmatpush1.msra.mxu0 0.0
        %2139 = vmatprep.subr.mxu0 0.0
        %2140 = vmatpush1.msra.mxu0 0.0
        %2141 = vmatprep.subr.mxu0 0.0
        %2142 = vmatpush1.msra.mxu0 0.0
        %2143 = vmatprep.subr.mxu0 0.0
        %2144 = vmatpush1.msra.mxu0 0.0
        %2145 = vmatprep.subr.mxu0 0.0
        %2146 = vmatpush1.msra.mxu0 0.0
        %2147 = vmatprep.subr.mxu0 0.0
        %2148 = vmatpush1.msra.mxu0 0.0
        %2149 = vmatprep.subr.mxu0 0.0
        %2150 = vmatpush1.msra.mxu0 0.0
        %2151 = vmatprep.subr.mxu0 0.0
        %2152 = vmatpush1.msra.mxu0 0.0
        %2153 = vmatprep.subr.mxu0 0.0
        %2154 = vmatpush1.msra.mxu0 0.0
        %2155 = vmatprep.subr.mxu0 0.0
        %2156 = vmatpush1.msra.mxu0 0.0
        %2157 = vmatprep.subr.mxu0 0.0
        %2158 = vmatpush1.msra.mxu0 0.0
        %2159 = vmatprep.subr.mxu0 0.0
        %2160 = vmatpush1.msra.mxu0 0.0
        %2161 = vmatprep.subr.mxu0 0.0
        %2162 = vmatpush1.msra.mxu0 0.0
        %2163 = vmatprep.subr.mxu0 0.0
        %2164 = vmatpush1.msra.mxu0 0.0
        %2165 = vmatprep.subr.mxu0 0.0
        %2166 = vmatpush1.msra.mxu0 0.0
        %2167 = vmatprep.subr.mxu0 0.0
        %2168 = vmatpush1.msra.mxu0 0.0
        %2169 = vmatprep.subr.mxu0 0.0
        %2170 = vmatpush1.msra.mxu0 0.0
        %2171 = vmatprep.subr.mxu0 0.0
        %2172 = vmatpush1.msra.mxu0 0.0
        %2173 = vmatprep.subr.mxu0 0.0
        %2174 = vmatpush1.msra.mxu0 0.0
        %2175 = vmatprep.subr.mxu0 0.0
        %2176 = vmatpush1.msra.mxu0 0.0
        %2177 = vmatprep.subr.mxu0 0.0
        %2178 = vmatpush1.msra.mxu0 0.0
        %2179 = vmatprep.subr.mxu0 0.0
        %2180 = vmatpush1.msra.mxu0 0.0
        %2181 = vmatprep.subr.mxu0 0.0
        %2182 = vmatpush1.msra.mxu0 0.0
        %2183 = vmatprep.subr.mxu0 0.0
        %2184 = vmatpush1.msra.mxu0 0.0
        %2185 = vmatprep.subr.mxu0 0.0
        %2186 = vmatpush1.msra.mxu0 0.0
        %2187 = vmatprep.subr.mxu0 0.0
        %2188 = vmatpush1.msra.mxu0 0.0
        %2189 = vmatprep.subr.mxu0 0.0
        %2190 = vmatpush1.msra.mxu0 0.0
        %2191 = vmatprep.subr.mxu0 0.0
        %2192 = vmatpush1.msra.mxu0 0.0
        %2193 = vmatprep.mubr.f32.mxu0 0.0
        %2194 = vmatmul.mubr.f32.gmra.mrb[0].mxu0 %v2127
        %v2195 = vpop.f32.mrb[0].mxu0
        %v2196 = vadd.f32 0.0, %v2195
        %v2197 = vpop.f32.mrb[0].mxu0
        %2198 = vdwg.mxu0
        %v2200 = vsel %vm581, %v2196, 0
        %2202 = vmatprep.subr.mxu0 0.0
        %2203 = vmatpush1.msra.mxu0 %v1549
        %2204 = vmatprep.subr.mxu0 0.0
        %2205 = vmatpush1.msra.mxu0 0.0
        %2206 = vmatprep.subr.mxu0 0.0
        %2207 = vmatpush1.msra.mxu0 0.0
        %2208 = vmatprep.subr.mxu0 0.0
        %2209 = vmatpush1.msra.mxu0 0.0
        %2210 = vmatprep.subr.mxu0 0.0
        %2211 = vmatpush1.msra.mxu0 0.0
        %2212 = vmatprep.subr.mxu0 0.0
        %2213 = vmatpush1.msra.mxu0 0.0
        %2214 = vmatprep.subr.mxu0 0.0
        %2215 = vmatpush1.msra.mxu0 0.0
        %2216 = vmatprep.subr.mxu0 0.0
        %2217 = vmatpush1.msra.mxu0 0.0
        %2218 = vmatprep.subr.mxu0 0.0
        %2219 = vmatpush1.msra.mxu0 0.0
        %2220 = vmatprep.subr.mxu0 0.0
        %2221 = vmatpush1.msra.mxu0 0.0
        %2222 = vmatprep.subr.mxu0 0.0
        %2223 = vmatpush1.msra.mxu0 0.0
        %2224 = vmatprep.subr.mxu0 0.0
        %2225 = vmatpush1.msra.mxu0 0.0
        %2226 = vmatprep.subr.mxu0 0.0
        %2227 = vmatpush1.msra.mxu0 0.0
        %2228 = vmatprep.subr.mxu0 0.0
        %2229 = vmatpush1.msra.mxu0 0.0
        %2230 = vmatprep.subr.mxu0 0.0
        %2231 = vmatpush1.msra.mxu0 0.0
        %2232 = vmatprep.subr.mxu0 0.0
        %2233 = vmatpush1.msra.mxu0 0.0
        %2234 = vmatprep.subr.mxu0 0.0
        %2235 = vmatpush1.msra.mxu0 0.0
        %2236 = vmatprep.subr.mxu0 0.0
        %2237 = vmatpush1.msra.mxu0 0.0
        %2238 = vmatprep.subr.mxu0 0.0
        %2239 = vmatpush1.msra.mxu0 0.0
        %2240 = vmatprep.subr.mxu0 0.0
        %2241 = vmatpush1.msra.mxu0 0.0
        %2242 = vmatprep.subr.mxu0 0.0
        %2243 = vmatpush1.msra.mxu0 0.0
        %2244 = vmatprep.subr.mxu0 0.0
        %2245 = vmatpush1.msra.mxu0 0.0
        %2246 = vmatprep.subr.mxu0 0.0
        %2247 = vmatpush1.msra.mxu0 0.0
        %2248 = vmatprep.subr.mxu0 0.0
        %2249 = vmatpush1.msra.mxu0 0.0
        %2250 = vmatprep.subr.mxu0 0.0
        %2251 = vmatpush1.msra.mxu0 0.0
        %2252 = vmatprep.subr.mxu0 0.0
        %2253 = vmatpush1.msra.mxu0 0.0
        %2254 = vmatprep.subr.mxu0 0.0
        %2255 = vmatpush1.msra.mxu0 0.0
        %2256 = vmatprep.subr.mxu0 0.0
        %2257 = vmatpush1.msra.mxu0 0.0
        %2258 = vmatprep.subr.mxu0 0.0
        %2259 = vmatpush1.msra.mxu0 0.0
        %2260 = vmatprep.subr.mxu0 0.0
        %2261 = vmatpush1.msra.mxu0 0.0
        %2262 = vmatprep.subr.mxu0 0.0
        %2263 = vmatpush1.msra.mxu0 0.0
        %2264 = vmatprep.subr.mxu0 0.0
        %2265 = vmatpush1.msra.mxu0 0.0
        %2266 = vmatprep.mubr.f32.mxu0 0.0
        %2267 = vmatmul.mubr.f32.gmra.mrb[0].mxu0 %v2200
        %v2268 = vpop.f32.mrb[0].mxu0
        %v2269 = vadd.f32 0.0, %v2268
        %v2270 = vpop.f32.mrb[0].mxu0
        %2271 = vdwg.mxu0
        %v2272 = vadd.f32 %v2031, %v2269
        %2273 = vrot.lane.b32.xlu0 %v570, 8
        %v2274 = vpop.permute.xlu0 %2273
        %2275 = vrot.lane.b32.xlu0 %v572, 104
        %v2276 = vpop.permute.xlu0 %2275
        %v2277 = vsel %vm581, %v2274, 0
        %v2279 = vsel %vm581, %v2276, 0
        %2281 = vmatprep.subr.mxu0 0.0
        %2282 = vmatpush1.xpose.msra.mxu0 %v2279
        %2283 = vmatprep.subr.mxu0 0.0
        %2284 = vmatpush1.xpose.msra.mxu0 0.0
        %2285 = vmatprep.subr.mxu0 0.0
        %2286 = vmatpush1.xpose.msra.mxu0 0.0
        %2287 = vmatprep.subr.mxu0 0.0
        %2288 = vmatpush1.xpose.msra.mxu0 0.0
        %2289 = vmatprep.subr.mxu0 0.0
        %2290 = vmatpush1.xpose.msra.mxu0 0.0
        %2291 = vmatprep.subr.mxu0 0.0
        %2292 = vmatpush1.xpose.msra.mxu0 0.0
        %2293 = vmatprep.subr.mxu0 0.0
        %2294 = vmatpush1.xpose.msra.mxu0 0.0
        %2295 = vmatprep.subr.mxu0 0.0
        %2296 = vmatpush1.xpose.msra.mxu0 0.0
        %2297 = vmatprep.subr.mxu0 0.0
        %2298 = vmatpush1.xpose.msra.mxu0 0.0
        %2299 = vmatprep.subr.mxu0 0.0
        %2300 = vmatpush1.xpose.msra.mxu0 0.0
        %2301 = vmatprep.subr.mxu0 0.0
        %2302 = vmatpush1.xpose.msra.mxu0 0.0
        %2303 = vmatprep.subr.mxu0 0.0
        %2304 = vmatpush1.xpose.msra.mxu0 0.0
        %2305 = vmatprep.subr.mxu0 0.0
        %2306 = vmatpush1.xpose.msra.mxu0 0.0
        %2307 = vmatprep.subr.mxu0 0.0
        %2308 = vmatpush1.xpose.msra.mxu0 0.0
        %2309 = vmatprep.subr.mxu0 0.0
        %2310 = vmatpush1.xpose.msra.mxu0 0.0
        %2311 = vmatprep.subr.mxu0 0.0
        %2312 = vmatpush1.xpose.msra.mxu0 0.0
        %2313 = vmatprep.subr.mxu0 0.0
        %2314 = vmatpush1.xpose.msra.mxu0 0.0
        %2315 = vmatprep.subr.mxu0 0.0
        %2316 = vmatpush1.xpose.msra.mxu0 0.0
        %2317 = vmatprep.subr.mxu0 0.0
        %2318 = vmatpush1.xpose.msra.mxu0 0.0
        %2319 = vmatprep.subr.mxu0 0.0
        %2320 = vmatpush1.xpose.msra.mxu0 0.0
        %2321 = vmatprep.subr.mxu0 0.0
        %2322 = vmatpush1.xpose.msra.mxu0 0.0
        %2323 = vmatprep.subr.mxu0 0.0
        %2324 = vmatpush1.xpose.msra.mxu0 0.0
        %2325 = vmatprep.subr.mxu0 0.0
        %2326 = vmatpush1.xpose.msra.mxu0 0.0
        %2327 = vmatprep.subr.mxu0 0.0
        %2328 = vmatpush1.xpose.msra.mxu0 0.0
        %2329 = vmatprep.subr.mxu0 0.0
        %2330 = vmatpush1.xpose.msra.mxu0 0.0
        %2331 = vmatprep.subr.mxu0 0.0
        %2332 = vmatpush1.xpose.msra.mxu0 0.0
        %2333 = vmatprep.subr.mxu0 0.0
        %2334 = vmatpush1.xpose.msra.mxu0 0.0
        %2335 = vmatprep.subr.mxu0 0.0
        %2336 = vmatpush1.xpose.msra.mxu0 0.0
        %2337 = vmatprep.subr.mxu0 0.0
        %2338 = vmatpush1.xpose.msra.mxu0 0.0
        %2339 = vmatprep.subr.mxu0 0.0
        %2340 = vmatpush1.xpose.msra.mxu0 0.0
        %2341 = vmatprep.subr.mxu0 0.0
        %2342 = vmatpush1.xpose.msra.mxu0 0.0
        %2343 = vmatprep.subr.mxu0 0.0
        %2344 = vmatpush1.xpose.msra.mxu0 0.0
        %2345 = vmatprep.mubr.f32.mxu0 0.0
        %2346 = vmatmul.mubr.f32.gmra.mrb[0].mxu0 %v2277
        %v2347 = vpop.f32.mrb[0].mxu0
        %v2348 = vadd.f32 0.0, %v2347
        %v2349 = vpop.f32.mrb[0].mxu0
        %2350 = vdwg.mxu0
        %v2351 = vmul.f32 %v2348, 0.35355338
        %v2352 = vadd.f32 %v2351, %v661
        %v2353 = vsel %vm581, %v2352, -inf
        %2354 = vmax.xlane.f32.xlu0 %v2353
        %v2355 = vpop.xlane.xlu0 %2354
        %v2356 = vsub.f32 %v2352, %v2355
        %v2357 = vmul.f32 %v2356, 1.442695
        %v2358 = vpow.pop %v2357
        %v2359 = vsel %vm581, %v2358, 0.0
        %2360 = vadd.xlane.f32.xlu0 %v2359
        %v2361 = vpop.xlane.xlu0 %2360
        %v2362 = vrcp.pop %v2361
        %v2363 = vmul.f32 %v2358, %v2362
        %2364 = vrot.lane.b32.xlu0 %v572, 72
        %v2365 = vpop.permute.xlu0 %2364
        %v2368 = vsel %vm581, %v2363, 0
        %2370 = vmatprep.subr.mxu0 0.0
        %2371 = vmatpush1.msra.mxu0 %v2365
        %2372 = vmatprep.subr.mxu0 0.0
        %2373 = vmatpush1.msra.mxu0 0.0
        %2374 = vmatprep.subr.mxu0 0.0
        %2375 = vmatpush1.msra.mxu0 0.0
        %2376 = vmatprep.subr.mxu0 0.0
        %2377 = vmatpush1.msra.mxu0 0.0
        %2378 = vmatprep.subr.mxu0 0.0
        %2379 = vmatpush1.msra.mxu0 0.0
        %2380 = vmatprep.subr.mxu0 0.0
        %2381 = vmatpush1.msra.mxu0 0.0
        %2382 = vmatprep.subr.mxu0 0.0
        %2383 = vmatpush1.msra.mxu0 0.0
        %2384 = vmatprep.subr.mxu0 0.0
        %2385 = vmatpush1.msra.mxu0 0.0
        %2386 = vmatprep.subr.mxu0 0.0
        %2387 = vmatpush1.msra.mxu0 0.0
        %2388 = vmatprep.subr.mxu0 0.0
        %2389 = vmatpush1.msra.mxu0 0.0
        %2390 = vmatprep.subr.mxu0 0.0
        %2391 = vmatpush1.msra.mxu0 0.0
        %2392 = vmatprep.subr.mxu0 0.0
        %2393 = vmatpush1.msra.mxu0 0.0
        %2394 = vmatprep.subr.mxu0 0.0
        %2395 = vmatpush1.msra.mxu0 0.0
        %2396 = vmatprep.subr.mxu0 0.0
        %2397 = vmatpush1.msra.mxu0 0.0
        %2398 = vmatprep.subr.mxu0 0.0
        %2399 = vmatpush1.msra.mxu0 0.0
        %2400 = vmatprep.subr.mxu0 0.0
        %2401 = vmatpush1.msra.mxu0 0.0
        %2402 = vmatprep.subr.mxu0 0.0
        %2403 = vmatpush1.msra.mxu0 0.0
        %2404 = vmatprep.subr.mxu0 0.0
        %2405 = vmatpush1.msra.mxu0 0.0
        %2406 = vmatprep.subr.mxu0 0.0
        %2407 = vmatpush1.msra.mxu0 0.0
        %2408 = vmatprep.subr.mxu0 0.0
        %2409 = vmatpush1.msra.mxu0 0.0
        %2410 = vmatprep.subr.mxu0 0.0
        %2411 = vmatpush1.msra.mxu0 0.0
        %2412 = vmatprep.subr.mxu0 0.0
        %2413 = vmatpush1.msra.mxu0 0.0
        %2414 = vmatprep.subr.mxu0 0.0
        %2415 = vmatpush1.msra.mxu0 0.0
        %2416 = vmatprep.subr.mxu0 0.0
        %2417 = vmatpush1.msra.mxu0 0.0
        %2418 = vmatprep.subr.mxu0 0.0
        %2419 = vmatpush1.msra.mxu0 0.0
        %2420 = vmatprep.subr.mxu0 0.0
        %2421 = vmatpush1.msra.mxu0 0.0
        %2422 = vmatprep.subr.mxu0 0.0
        %2423 = vmatpush1.msra.mxu0 0.0
        %2424 = vmatprep.subr.mxu0 0.0
        %2425 = vmatpush1.msra.mxu0 0.0
        %2426 = vmatprep.subr.mxu0 0.0
        %2427 = vmatpush1.msra.mxu0 0.0
        %2428 = vmatprep.subr.mxu0 0.0
        %2429 = vmatpush1.msra.mxu0 0.0
        %2430 = vmatprep.subr.mxu0 0.0
        %2431 = vmatpush1.msra.mxu0 0.0
        %2432 = vmatprep.subr.mxu0 0.0
        %2433 = vmatpush1.msra.mxu0 0.0
        %2434 = vmatprep.mubr.f32.mxu0 0.0
        %2435 = vmatmul.mubr.f32.gmra.mrb[0].mxu0 %v2368
        %v2436 = vpop.f32.mrb[0].mxu0
        %v2437 = vadd.f32 0.0, %v2436
        %v2438 = vpop.f32.mrb[0].mxu0
        %2439 = vdwg.mxu0
        %v2441 = vsel %vm581, %v2437, 0
        %2443 = vmatprep.subr.mxu0 0.0
        %2444 = vmatpush1.msra.mxu0 %v1550
        %2445 = vmatprep.subr.mxu0 0.0
        %2446 = vmatpush1.msra.mxu0 0.0
        %2447 = vmatprep.subr.mxu0 0.0
        %2448 = vmatpush1.msra.mxu0 0.0
        %2449 = vmatprep.subr.mxu0 0.0
        %2450 = vmatpush1.msra.mxu0 0.0
        %2451 = vmatprep.subr.mxu0 0.0
        %2452 = vmatpush1.msra.mxu0 0.0
        %2453 = vmatprep.subr.mxu0 0.0
        %2454 = vmatpush1.msra.mxu0 0.0
        %2455 = vmatprep.subr.mxu0 0.0
        %2456 = vmatpush1.msra.mxu0 0.0
        %2457 = vmatprep.subr.mxu0 0.0
        %2458 = vmatpush1.msra.mxu0 0.0
        %2459 = vmatprep.subr.mxu0 0.0
        %2460 = vmatpush1.msra.mxu0 0.0
        %2461 = vmatprep.subr.mxu0 0.0
        %2462 = vmatpush1.msra.mxu0 0.0
        %2463 = vmatprep.subr.mxu0 0.0
        %2464 = vmatpush1.msra.mxu0 0.0
        %2465 = vmatprep.subr.mxu0 0.0
        %2466 = vmatpush1.msra.mxu0 0.0
        %2467 = vmatprep.subr.mxu0 0.0
        %2468 = vmatpush1.msra.mxu0 0.0
        %2469 = vmatprep.subr.mxu0 0.0
        %2470 = vmatpush1.msra.mxu0 0.0
        %2471 = vmatprep.subr.mxu0 0.0
        %2472 = vmatpush1.msra.mxu0 0.0
        %2473 = vmatprep.subr.mxu0 0.0
        %2474 = vmatpush1.msra.mxu0 0.0
        %2475 = vmatprep.subr.mxu0 0.0
        %2476 = vmatpush1.msra.mxu0 0.0
        %2477 = vmatprep.subr.mxu0 0.0
        %2478 = vmatpush1.msra.mxu0 0.0
        %2479 = vmatprep.subr.mxu0 0.0
        %2480 = vmatpush1.msra.mxu0 0.0
        %2481 = vmatprep.subr.mxu0 0.0
        %2482 = vmatpush1.msra.mxu0 0.0
        %2483 = vmatprep.subr.mxu0 0.0
        %2484 = vmatpush1.msra.mxu0 0.0
        %2485 = vmatprep.subr.mxu0 0.0
        %2486 = vmatpush1.msra.mxu0 0.0
        %2487 = vmatprep.subr.mxu0 0.0
        %2488 = vmatpush1.msra.mxu0 0.0
        %2489 = vmatprep.subr.mxu0 0.0
        %2490 = vmatpush1.msra.mxu0 0.0
        %2491 = vmatprep.subr.mxu0 0.0
        %2492 = vmatpush1.msra.mxu0 0.0
        %2493 = vmatprep.subr.mxu0 0.0
        %2494 = vmatpush1.msra.mxu0 0.0
        %2495 = vmatprep.subr.mxu0 0.0
        %2496 = vmatpush1.msra.mxu0 0.0
        %2497 = vmatprep.subr.mxu0 0.0
        %2498 = vmatpush1.msra.mxu0 0.0
        %2499 = vmatprep.subr.mxu0 0.0
        %2500 = vmatpush1.msra.mxu0 0.0
        %2501 = vmatprep.subr.mxu0 0.0
        %2502 = vmatpush1.msra.mxu0 0.0
        %2503 = vmatprep.subr.mxu0 0.0
        %2504 = vmatpush1.msra.mxu0 0.0
        %2505 = vmatprep.subr.mxu0 0.0
        %2506 = vmatpush1.msra.mxu0 0.0
        %2507 = vmatprep.mubr.f32.mxu0 0.0
        %2508 = vmatmul.mubr.f32.gmra.mrb[0].mxu0 %v2441
        %v2509 = vpop.f32.mrb[0].mxu0
        %v2510 = vadd.f32 0.0, %v2509
        %v2511 = vpop.f32.mrb[0].mxu0
        %2512 = vdwg.mxu0
        %v2513 = vadd.f32 %v2272, %v2510
        %v2514 = vld [vmem:[%s5] sm:$0x1]
        %v2516 = vlaneseq
        %v2517 = vshrl.u32 %v2516, 7
        %v2518 = vsub.s32 0, %v2517
        %v2519 = vrot.slane %v2514, %v2518
        %v2521 = vadd.f32 %v2513, %v2519
        %v2522 = vld [vmem:[%s6] sm:$0xff]
        %v2523 = vld [vmem:[%s6 + $0x8] sm:$0xff]
        %v2524 = vld [vmem:[%s6 + $0x10] sm:$0xff]
        %v2525 = vld [vmem:[%s6 + $0x18] sm:$0xff]
        %v2526 = vld [vmem:[%s7] sm:$0x1]
        %v2528 = vlaneseq
        %v2529 = vshrl.u32 %v2528, 7
        %v2530 = vsub.s32 0, %v2529
        %v2531 = vrot.slane %v2526, %v2530
        %v2534 = vsel %vm499, %v2521, 0
        %2536 = vmatprep.subr.mxu0 0.0
        %2537 = vmatpush1.msra.mxu0 %v2522
        %2538 = vmatprep.subr.mxu0 0.0
        %2539 = vmatpush1.msra.mxu0 %v2523
        %2540 = vmatprep.subr.mxu0 0.0
        %2541 = vmatpush1.msra.mxu0 %v2524
        %2542 = vmatprep.subr.mxu0 0.0
        %2543 = vmatpush1.msra.mxu0 %v2525
        %2544 = vmatprep.subr.mxu0 0.0
        %2545 = vmatpush1.msra.mxu0 0.0
        %2546 = vmatprep.subr.mxu0 0.0
        %2547 = vmatpush1.msra.mxu0 0.0
        %2548 = vmatprep.subr.mxu0 0.0
        %2549 = vmatpush1.msra.mxu0 0.0
        %2550 = vmatprep.subr.mxu0 0.0
        %2551 = vmatpush1.msra.mxu0 0.0
        %2552 = vmatprep.subr.mxu0 0.0
        %2553 = vmatpush1.msra.mxu0 0.0
        %2554 = vmatprep.subr.mxu0 0.0
        %2555 = vmatpush1.msra.mxu0 0.0
        %2556 = vmatprep.subr.mxu0 0.0
        %2557 = vmatpush1.msra.mxu0 0.0
        %2558 = vmatprep.subr.mxu0 0.0
        %2559 = vmatpush1.msra.mxu0 0.0
        %2560 = vmatprep.subr.mxu0 0.0
        %2561 = vmatpush1.msra.mxu0 0.0
        %2562 = vmatprep.subr.mxu0 0.0
        %2563 = vmatpush1.msra.mxu0 0.0
        %2564 = vmatprep.subr.mxu0 0.0
        %2565 = vmatpush1.msra.mxu0 0.0
        %2566 = vmatprep.subr.mxu0 0.0
        %2567 = vmatpush1.msra.mxu0 0.0
        %2568 = vmatprep.subr.mxu0 0.0
        %2569 = vmatpush1.msra.mxu0 0.0
        %2570 = vmatprep.subr.mxu0 0.0
        %2571 = vmatpush1.msra.mxu0 0.0
        %2572 = vmatprep.subr.mxu0 0.0
        %2573 = vmatpush1.msra.mxu0 0.0
        %2574 = vmatprep.subr.mxu0 0.0
        %2575 = vmatpush1.msra.mxu0 0.0
        %2576 = vmatprep.subr.mxu0 0.0
        %2577 = vmatpush1.msra.mxu0 0.0
        %2578 = vmatprep.subr.mxu0 0.0
        %2579 = vmatpush1.msra.mxu0 0.0
        %2580 = vmatprep.subr.mxu0 0.0
        %2581 = vmatpush1.msra.mxu0 0.0
        %2582 = vmatprep.subr.mxu0 0.0
        %2583 = vmatpush1.msra.mxu0 0.0
        %2584 = vmatprep.subr.mxu0 0.0
        %2585 = vmatpush1.msra.mxu0 0.0
        %2586 = vmatprep.subr.mxu0 0.0
        %2587 = vmatpush1.msra.mxu0 0.0
        %2588 = vmatprep.subr.mxu0 0.0
        %2589 = vmatpush1.msra.mxu0 0.0
        %2590 = vmatprep.subr.mxu0 0.0
        %2591 = vmatpush1.msra.mxu0 0.0
        %2592 = vmatprep.subr.mxu0 0.0
        %2593 = vmatpush1.msra.mxu0 0.0
        %2594 = vmatprep.subr.mxu0 0.0
        %2595 = vmatpush1.msra.mxu0 0.0
        %2596 = vmatprep.subr.mxu0 0.0
        %2597 = vmatpush1.msra.mxu0 0.0
        %2598 = vmatprep.subr.mxu0 0.0
        %2599 = vmatpush1.msra.mxu0 0.0
        %2600 = vmatprep.mubr.f32.mxu0 0.0
        %2601 = vmatmul.mubr.f32.gmra.mrb[0].mxu0 %v2534
        %v2602 = vpop.f32.mrb[0].mxu0
        %v2603 = vadd.f32 %v2531, %v2602
        %v2604 = vpop.f32.mrb[0].mxu0
        %2605 = vdwg.mxu0
        %vm2606 = vcmask 15360
        %v2607 = vsel %vm2606, %v2603, -inf
        %2608 = vmax.xlane.f32.xlu0 %v2607
        %v2609 = vpop.xlane.xlu0 %2608
        %v2610 = vsub.f32 %v2603, %v2609
        %v2611 = vmul.f32 %v2610, 1.442695
        %v2612 = vpow.pop %v2611
        %v2613 = vsel %vm2606, %v2612, 0.0
        %2614 = vadd.xlane.f32.xlu0 %v2613
        %v2615 = vpop.xlane.xlu0 %2614
        %v2616 = vrcp.pop %v2615
        %v2617 = vmul.f32 %v2612, %v2616
        %v2618 = vsel %vm2606, %v2617, -inf
        %2619 = vmax.xlane.f32.xlu0 %v2618
        %v2620 = vpop.xlane.xlu0 %2619
        %v2621 = vlaneseq
        %v2622 = vand.u32 %v2621, 127
        %vm2623 = vcmp.ge.f32.partialorder %v2617, %v2620
        %v2624 = vsel %vm2623, %v2622, 2
        %v2625 = vsel %vm2606, %v2624, 2147483647
        %v2626 = vand.u32 %v2625, 65535
        %v2627 = vshra.s32 %v2625, 16
        %v2628 = vcvt.s32.f32 %v2626
        %v2629 = vcvt.s32.f32 %v2627
        %2630 = vmin.xlane.f32.xlu0 %v2629
        %v2631 = vpop.xlane.xlu0 %2630
        %vm2632 = vcmp.eq.f32.partialorder %v2629, %v2631
        %v2633 = vsel %vm2632, %v2628, inf
        %2634 = vmin.xlane.f32.xlu0 %v2633
        %v2635 = vpop.xlane.xlu0 %2634
        %v2636 = vcvt.f32.s32 %v2635
        %v2637 = vcvt.f32.s32 %v2631
        %v2638 = vshll.u32 %v2637, 16
        %v2639 = vadd.s32 %v2638, %v2636
        %v2640 = vld [vmem:[%s8] sm:$0xff]
        %v2641 = vld [vmem:[%s8 + $0x8] sm:$0xff]
        %v2642 = vld [vmem:[%s8 + $0x10] sm:$0xff]
        %v2643 = vld [vmem:[%s8 + $0x18] sm:$0xff]
        %v2644 = vld [vmem:[%s9] sm:$0x1]
        %v2646 = vlaneseq
        %v2647 = vshrl.u32 %v2646, 7
        %v2648 = vsub.s32 0, %v2647
        %v2649 = vrot.slane %v2644, %v2648
        %2651 = vmatprep.subr.mxu0 0.0
        %2652 = vmatpush1.msra.mxu0 %v2640
        %2653 = vmatprep.subr.mxu0 0.0
        %2654 = vmatpush1.msra.mxu0 %v2641
        %2655 = vmatprep.subr.mxu0 0.0
        %2656 = vmatpush1.msra.mxu0 %v2642
        %2657 = vmatprep.subr.mxu0 0.0
        %2658 = vmatpush1.msra.mxu0 %v2643
        %2659 = vmatprep.subr.mxu0 0.0
        %2660 = vmatpush1.msra.mxu0 0.0
        %2661 = vmatprep.subr.mxu0 0.0
        %2662 = vmatpush1.msra.mxu0 0.0
        %2663 = vmatprep.subr.mxu0 0.0
        %2664 = vmatpush1.msra.mxu0 0.0
        %2665 = vmatprep.subr.mxu0 0.0
        %2666 = vmatpush1.msra.mxu0 0.0
        %2667 = vmatprep.subr.mxu0 0.0
        %2668 = vmatpush1.msra.mxu0 0.0
        %2669 = vmatprep.subr.mxu0 0.0
        %2670 = vmatpush1.msra.mxu0 0.0
        %2671 = vmatprep.subr.mxu0 0.0
        %2672 = vmatpush1.msra.mxu0 0.0
        %2673 = vmatprep.subr.mxu0 0.0
        %2674 = vmatpush1.msra.mxu0 0.0
        %2675 = vmatprep.subr.mxu0 0.0
        %2676 = vmatpush1.msra.mxu0 0.0
        %2677 = vmatprep.subr.mxu0 0.0
        %2678 = vmatpush1.msra.mxu0 0.0
        %2679 = vmatprep.subr.mxu0 0.0
        %2680 = vmatpush1.msra.mxu0 0.0
        %2681 = vmatprep.subr.mxu0 0.0
        %2682 = vmatpush1.msra.mxu0 0.0
        %2683 = vmatprep.subr.mxu0 0.0
        %2684 = vmatpush1.msra.mxu0 0.0
        %2685 = vmatprep.subr.mxu0 0.0
        %2686 = vmatpush1.msra.mxu0 0.0
        %2687 = vmatprep.subr.mxu0 0.0
        %2688 = vmatpush1.msra.mxu0 0.0
        %2689 = vmatprep.subr.mxu0 0.0
        %2690 = vmatpush1.msra.mxu0 0.0
        %2691 = vmatprep.subr.mxu0 0.0
        %2692 = vmatpush1.msra.mxu0 0.0
        %2693 = vmatprep.subr.mxu0 0.0
        %2694 = vmatpush1.msra.mxu0 0.0
        %2695 = vmatprep.subr.mxu0 0.0
        %2696 = vmatpush1.msra.mxu0 0.0
        %2697 = vmatprep.subr.mxu0 0.0
        %2698 = vmatpush1.msra.mxu0 0.0
        %2699 = vmatprep.subr.mxu0 0.0
        %2700 = vmatpush1.msra.mxu0 0.0
        %2701 = vmatprep.subr.mxu0 0.0
        %2702 = vmatpush1.msra.mxu0 0.0
        %2703 = vmatprep.subr.mxu0 0.0
        %2704 = vmatpush1.msra.mxu0 0.0
        %2705 = vmatprep.subr.mxu0 0.0
        %2706 = vmatpush1.msra.mxu0 0.0
        %2707 = vmatprep.subr.mxu0 0.0
        %2708 = vmatpush1.msra.mxu0 0.0
        %2709 = vmatprep.subr.mxu0 0.0
        %2710 = vmatpush1.msra.mxu0 0.0
        %2711 = vmatprep.subr.mxu0 0.0
        %2712 = vmatpush1.msra.mxu0 0.0
        %2713 = vmatprep.subr.mxu0 0.0
        %2714 = vmatpush1.msra.mxu0 0.0
        %2715 = vmatprep.mubr.f32.mxu0 0.0
        %2716 = vmatmul.mubr.f32.gmra.mrb[0].mxu0 %v2534
        %v2717 = vpop.f32.mrb[0].mxu0
        %v2718 = vadd.f32 %v2649, %v2717
        %v2719 = vpop.f32.mrb[0].mxu0
        %2720 = vdwg.mxu0
        %v2721 = vmul.f32 %v2718, %v2718
        %v2722 = vmul.f32 %v2718, %v2721
        %v2723 = vmul.f32 %v2722, 0.044715
        %v2724 = vadd.f32 %v2718, %v2723
        %v2725 = vmul.f32 %v2724, 0.7978846
        %v2726 = vtanh.pop %v2725
        %v2727 = vadd.f32 %v2726, 1.0
        %v2728 = vmul.f32 %v2727, 0.5
        %v2729 = vmul.f32 %v2718, %v2728
        %v2730 = vld [vmem:[%s10] sm:$0xff]
        %v2731 = vld [vmem:[%s10 + $0x8] sm:$0xff]
        %v2732 = vld [vmem:[%s10 + $0x10] sm:$0xff]
        %v2733 = vld [vmem:[%s10 + $0x18] sm:$0xff]
        %v2734 = vld [vmem:[%s10 + $0x20] sm:$0xff]
        %v2735 = vld [vmem:[%s10 + $0x28] sm:$0xff]
        %v2736 = vld [vmem:[%s10 + $0x30] sm:$0xff]
        %v2737 = vld [vmem:[%s10 + $0x38] sm:$0xff]
        %v2738 = vld [vmem:[%s10 + $0x40] sm:$0xff]
        %v2739 = vld [vmem:[%s10 + $0x48] sm:$0xff]
        %v2740 = vld [vmem:[%s10 + $0x50] sm:$0xff]
        %v2741 = vld [vmem:[%s10 + $0x58] sm:$0xff]
        %v2742 = vld [vmem:[%s10 + $0x60] sm:$0xff]
        %v2743 = vld [vmem:[%s10 + $0x68] sm:$0xff]
        %v2744 = vld [vmem:[%s10 + $0x70] sm:$0xff]
        %v2745 = vld [vmem:[%s10 + $0x78] sm:$0xff]
        %v2746 = vld [vmem:[%s11] sm:$0x1]
        %v2748 = vlaneseq
        %v2749 = vshrl.u32 %v2748, 7
        %v2750 = vsub.s32 0, %v2749
        %v2751 = vrot.slane %v2746, %v2750
        %2753 = vmatprep.subr.mxu0 0.0
        %2754 = vmatpush1.msra.mxu0 %v2730
        %2755 = vmatprep.subr.mxu0 0.0
        %2756 = vmatpush1.msra.mxu0 %v2731
        %2757 = vmatprep.subr.mxu0 0.0
        %2758 = vmatpush1.msra.mxu0 %v2732
        %2759 = vmatprep.subr.mxu0 0.0
        %2760 = vmatpush1.msra.mxu0 %v2733
        %2761 = vmatprep.subr.mxu0 0.0
        %2762 = vmatpush1.msra.mxu0 %v2734
        %2763 = vmatprep.subr.mxu0 0.0
        %2764 = vmatpush1.msra.mxu0 %v2735
        %2765 = vmatprep.subr.mxu0 0.0
        %2766 = vmatpush1.msra.mxu0 %v2736
        %2767 = vmatprep.subr.mxu0 0.0
        %2768 = vmatpush1.msra.mxu0 %v2737
        %2769 = vmatprep.subr.mxu0 0.0
        %2770 = vmatpush1.msra.mxu0 %v2738
        %2771 = vmatprep.subr.mxu0 0.0
        %2772 = vmatpush1.msra.mxu0 %v2739
        %2773 = vmatprep.subr.mxu0 0.0
        %2774 = vmatpush1.msra.mxu0 %v2740
        %2775 = vmatprep.subr.mxu0 0.0
        %2776 = vmatpush1.msra.mxu0 %v2741
        %2777 = vmatprep.subr.mxu0 0.0
        %2778 = vmatpush1.msra.mxu0 %v2742
        %2779 = vmatprep.subr.mxu0 0.0
        %2780 = vmatpush1.msra.mxu0 %v2743
        %2781 = vmatprep.subr.mxu0 0.0
        %2782 = vmatpush1.msra.mxu0 %v2744
        %2783 = vmatprep.subr.mxu0 0.0
        %2784 = vmatpush1.msra.mxu0 %v2745
        %2785 = vmatprep.subr.mxu0 0.0
        %2786 = vmatpush1.msra.mxu0 0.0
        %2787 = vmatprep.subr.mxu0 0.0
        %2788 = vmatpush1.msra.mxu0 0.0
        %2789 = vmatprep.subr.mxu0 0.0
        %2790 = vmatpush1.msra.mxu0 0.0
        %2791 = vmatprep.subr.mxu0 0.0
        %2792 = vmatpush1.msra.mxu0 0.0
        %2793 = vmatprep.subr.mxu0 0.0
        %2794 = vmatpush1.msra.mxu0 0.0
        %2795 = vmatprep.subr.mxu0 0.0
        %2796 = vmatpush1.msra.mxu0 0.0
        %2797 = vmatprep.subr.mxu0 0.0
        %2798 = vmatpush1.msra.mxu0 0.0
        %2799 = vmatprep.subr.mxu0 0.0
        %2800 = vmatpush1.msra.mxu0 0.0
        %2801 = vmatprep.subr.mxu0 0.0
        %2802 = vmatpush1.msra.mxu0 0.0
        %2803 = vmatprep.subr.mxu0 0.0
        %2804 = vmatpush1.msra.mxu0 0.0
        %2805 = vmatprep.subr.mxu0 0.0
        %2806 = vmatpush1.msra.mxu0 0.0
        %2807 = vmatprep.subr.mxu0 0.0
        %2808 = vmatpush1.msra.mxu0 0.0
        %2809 = vmatprep.subr.mxu0 0.0
        %2810 = vmatpush1.msra.mxu0 0.0
        %2811 = vmatprep.subr.mxu0 0.0
        %2812 = vmatpush1.msra.mxu0 0.0
        %2813 = vmatprep.subr.mxu0 0.0
        %2814 = vmatpush1.msra.mxu0 0.0
        %2815 = vmatprep.subr.mxu0 0.0
        %2816 = vmatpush1.msra.mxu0 0.0
        %2817 = vmatprep.mubr.f32.mxu0 0.0
        %2818 = vmatmul.mubr.f32.gmra.mrb[0].mxu0 %v2729
        %v2819 = vpop.f32.mrb[0].mxu0
        %v2820 = vadd.f32 %v2751, %v2819
        %v2821 = vpop.f32.mrb[0].mxu0
        %2822 = vdwg.mxu0
        %vm2823 = vcmp.eq.s32.totalorder %v2639, 1
        %v2824 = vsel %vm2823, 1, 0
        %vm2825 = vcmp.eq.s32.totalorder %v2824, 1
        %2827 = vrot.lane.b32.xlu0 %v2820, 32
        %v2828 = vpop.permute.xlu0 %2827
        %v2830 = vsel %vm2825, %v2820, %v2828
        %v2831 = vmul.f32 %v2830, %v2620
        %2833 = vrot.lane.b32.xlu0 %v2831, 96
        %v2834 = vpop.permute.xlu0 %2833
        %v2836 = vadd.f32 %v2521, %v2834
        %v2837 = vsel %vm499, %v2836, 0.0
        %2838 = vadd.xlane.f32.xlu0 %v2837
        %v2839 = vpop.xlane.xlu0 %2838
        %v2840 = vrcp.pop 32.0
        %v2841 = vmul.f32 %v2839, %v2840
        %v2842 = vsub.f32 %v2836, %v2841
        %v2843 = vmul.f32 %v2842, %v2842
        %v2844 = vsel %vm499, %v2843, 0.0
        %2845 = vadd.xlane.f32.xlu0 %v2844
        %v2846 = vpop.xlane.xlu0 %2845
        %v2847 = vmul.f32 %v2846, %v2840
        %v2848 = vadd.f32 %v2847, 1e-12
        %v2849 = vrsqrt.pop %v2848
        %v2850 = vmul.f32 %v2842, %v2849
        %v2851 = vld [vmem:[%s12] sm:$0x1]
        %v2853 = vlaneseq
        %v2854 = vshrl.u32 %v2853, 7
        %v2855 = vsub.s32 0, %v2854
        %v2856 = vrot.slane %v2851, %v2855
        %v2858 = vmul.f32 %v2850, %v2856
        %v2859 = vld [vmem:[%s13] sm:$0x1]
        %v2861 = vlaneseq
        %v2862 = vshrl.u32 %v2861, 7
        %v2863 = vsub.s32 0, %v2862
        %v2864 = vrot.slane %v2859, %v2863
        %v2866 = vadd.f32 %v2858, %v2864
        %2867 = vst.msk [vmem:[%s469] sm:$0xff] %vm499, %v2866
        %s2868 = sand.u32 %s340, 1
        %s2869 = scalar_lea.sflag [#allocation3], %s2868
        %s2870 = sand.u32 %s340, 1
        %s2871 = smul.addr %s2870, 8
        %s2872 = scalar_lea.vmem [#allocation2], %s2871
        // Predicated region
        $region77: #{momo_share_layer.1} parent=75 // pred_check
          %p2873 = pneg %p350
        $region78: #{momo_share_layer.1} parent=75 // pred_check_branch
          %2875 = sbr.rel (%p2873) target = $region80
        $region79: #{momo_share_layer.1} parent=75 // pred_region
          %s2877 = ssub.s32 128, 128
          %2878 = vsyncadd %s2869, %s2877
          %s2879 = smul.addr %s28, 128
          %s2880 = scalar_lea.hbm %s14, %s2879
          %s2882 = sshll.u32 %s2872, 4
          %s2883 = int_to_ptr.vmem [resolvable:$true] %s2882
          %2885 = dma.vmem_to_hbm [thread:$0]  %s2883, 128, %s2880, %s2869
        $region80: #{momo_share_layer.1} parent=75 // pred_fallthru
          _
      $region76: #{momo_share_layer.1} parent=5 // pred_fallthru
        _
      %p2886 = scmp.le.s32.totalorder 2, %s23
      // Predicated region
      $region81: #{momo_share_layer.1} parent=5 // pred_check
        %p2887 = pneg %p2886
      $region82: #{momo_share_layer.1} parent=5 // pred_check_branch
        %2889 = sbr.rel (%p2887) target = $region84
      $region83: #{momo_share_layer.1} parent=5 // pred_region
        %s2890 = ssub.s32 %s23, 2
        // Predicated region
        $region85: #{momo_share_layer.1} parent=83 // pred_check
          %p2891 = pneg %p356
        $region86: #{momo_share_layer.1} parent=83 // pred_check_branch
          %2893 = sbr.rel (%p2891) target = $region88
        $region87: #{momo_share_layer.1} parent=83 // pred_region
          %s2894 = sand.u32 %s341, 1
          %s2895 = scalar_lea.sflag [#allocation3], %s2894
          %s2896 = sand.u32 %s341, 1
          %s2897 = smul.addr %s2896, 8
          %s2898 = scalar_lea.vmem [#allocation2], %s2897
          %2899 = dma.done %s2895, 128
        $region88: #{momo_share_layer.1} parent=83 // pred_fallthru
          _
      $region84: #{momo_share_layer.1} parent=5 // pred_fallthru
        _
    $region6: #{momo_share_layer.1} parent=1 // loop_footer
      %s27 = sadd.s32 1, %s23
    $region7: #{momo_share_layer.1} parent=1 // loop_footer_branch
      %22 = sbr.rel target = $region3
    $region8: #{momo_share_layer.1} parent=1 // loop_exit
      _
    %2900 = vsyncpa [#allocation3], 1
    %s2901 = scalar_lea.sflag [#allocation3], 1
    %2902 = vsyncpa %s2901, 1

</llo_original>
